<compile_context>
chip_gen: v7x
topology: tpu7x:2x2x1
jax: 0.10.0
libtpu: 0.0.40
codegen_flags: <defaults>
</compile_context>

<pallas_src>
import jax
import jax.numpy as jnp
from jax.experimental import pallas as pl
from jax.experimental.pallas import tpu as pltpu

D = 768            # feature dim (6 * 128 -> lane friendly)
_SPLIT_ROWS = 512  # batches at least this big get >= 2 grid steps (2 TCs on v7x)


def _round_up(n, m):
    return ((n + m - 1) // m) * m


def _pick_batch_tile(b_pad, tb):
    """Pick the per-step batch tile: <= tb, <= padded batch, multiple of 8.

    If the whole (large) batch would fit in a single tile, split it in two so
    dimension_semantics=("parallel",) can shard the grid across both v7x
    TensorCores.
    """
    tb_eff = min(tb, b_pad)
    if b_pad >= _SPLIT_ROWS and b_pad <= tb_eff:
        tb_eff = _round_up((b_pad + 1) // 2, 8)
    return max(8, (tb_eff // 8) * 8)


def mlp_kernel(x_ref, w1_ref, b1_ref, w2_ref, b2_ref, o_ref):
    # x_ref: (tb, D) f32; w*_ref: (D, D) bf16; b*_ref: (1, D) f32; o_ref: (tb, D).
    # Cast activations to bf16 in-kernel (VPU work hidden under the MXU) so the
    # wrapper never does a standalone HBM cast pass.
    x = x_ref[...].astype(jnp.bfloat16)
    h = jnp.dot(x, w1_ref[...], preferred_element_type=jnp.float32) + b1_ref[...]
    h = jnp.maximum(h, 0.0)                 # ReLU in f32 on the VPU
    h = h.astype(jnp.bfloat16)              # back to bf16 for the 2nd MXU pass
    y = jnp.dot(h, w2_ref[...], preferred_element_type=jnp.float32) + b2_ref[...]
    o_ref[...] = y.astype(o_ref.dtype)


def mlp_forward(x, w1, b1, w2, b2, *, tb=512, out_dtype=jnp.float32):
    """x: (B, ...) flattening to (B, 768); w1/w2: (in, out) = PyTorch W.T.

    Returns (B, 768) in `out_dtype` (default f32, matching MLP.forward).
    bf16 MXU operands, f32 accumulation.  Designed to be called under jax.jit
    (see make_mlp) so pad / cast / slice fuse around the pallas_call.
    """
    x2 = x.reshape(x.shape[0], -1)          # mirrors x.view(x.size(0), -1)
    B, Din = x2.shape
    assert Din == D, f"flattened feature dim must be {D}, got {Din}"

    # Pad the batch only up to a whole number of 8-row sublanes; the grid uses
    # cdiv so a partial last tile is masked by Pallas instead of padded to tb.
    b_pad = _round_up(B, 8)
    if b_pad != B:
        x2 = jnp.pad(x2, ((0, b_pad - B), (0, 0)))

    tb_eff = _pick_batch_tile(b_pad, tb)
    grid = (pl.cdiv(b_pad, tb_eff),)

    # Weight casts are no-ops when the caller pre-casts (make_mlp path).
    w1_bf = w1.astype(jnp.bfloat16)
    w2_bf = w2.astype(jnp.bfloat16)
    b1_2d = b1.reshape(1, D).astype(jnp.float32)
    b2_2d = b2.reshape(1, D).astype(jnp.float32)

    out = pl.pallas_call(
        mlp_kernel,
        out_shape=jax.ShapeDtypeStruct((b_pad, D), out_dtype),
        grid_spec=pltpu.PrefetchScalarGridSpec(
            num_scalar_prefetch=0,
            grid=grid,
            in_specs=[
                pl.BlockSpec((tb_eff, D), lambda i: (i, 0)),  # x tile (f32, streams)
                pl.BlockSpec((D, D), lambda i: (0, 0)),       # W1 (bf16, resident)
                pl.BlockSpec((1, D), lambda i: (0, 0)),       # b1 (f32)
                pl.BlockSpec((D, D), lambda i: (0, 0)),       # W2 (bf16, resident)
                pl.BlockSpec((1, D), lambda i: (0, 0)),       # b2 (f32)
            ],
            out_specs=pl.BlockSpec((tb_eff, D), lambda i: (i, 0)),
        ),
        compiler_params=pltpu.CompilerParams(
            # Batch axis shards across TensorCores on v7x whenever grid >= 2.
            dimension_semantics=("parallel",),
            vmem_limit_bytes=32 * 1024 * 1024,
        ),
    )(x2, w1_bf, b1_2d, w2_bf, b2_2d)

    return out[:B] if b_pad != B else out


def make_mlp(w1, b1, w2, b2, *, tb=512, out_dtype=jnp.float32):
    """Hoist the weight casts out of the per-call path and jit the wrapper.

    Weights are cast to bf16 ONCE and kept on device; the returned forward(x)
    is jitted so the reshape/pad/slice fuse instead of being standalone XLA
    HBM round-trips on every call.
    """
    w1_bf = jax.device_put(jnp.asarray(w1).astype(jnp.bfloat16))
    w2_bf = jax.device_put(jnp.asarray(w2).astype(jnp.bfloat16))
    b1_f = jax.device_put(jnp.asarray(b1).astype(jnp.float32))
    b2_f = jax.device_put(jnp.asarray(b2).astype(jnp.float32))

    @jax.jit
    def forward(x):
        return mlp_forward(x, w1_bf, b1_f, w2_bf, b2_f, tb=tb, out_dtype=out_dtype)

    return forward


def mlp_reference_bf16(x_flat, w1, b1, w2, b2):
    """Reference mimicking the kernel's bf16-operand / f32-accumulate casts."""
    xb = x_flat.astype(jnp.bfloat16)
    w1b = w1.astype(jnp.bfloat16)
    w2b = w2.astype(jnp.bfloat16)
    h = jnp.dot(xb, w1b, preferred_element_type=jnp.float32) + b1
    h = jnp.maximum(h, 0.0).astype(jnp.bfloat16)
    return jnp.dot(h, w2b, preferred_element_type=jnp.float32) + b2


def mlp_reference_f32(x_flat, w1, b1, w2, b2):
    """Full-f32 reference of the original module."""
    h = jnp.maximum(x_flat @ w1 + b1, 0.0)
    return h @ w2 + b2


if __name__ == "__main__":
    key = jax.random.PRNGKey(0)
    kx, k1, kb1, k2, kb2 = jax.random.split(key, 5)

    # Input mirrors x.view(x.size(0), -1): (8, 3, 16, 16) flattens to (8, 768).
    B = 8
    x = jax.random.normal(kx, (B, 3, 16, 16), dtype=jnp.float32)

    # Deterministic PyTorch-Linear-style init (uniform, bound 1/sqrt(fan_in)).
    bound = 1.0 / jnp.sqrt(jnp.float32(D))
    w1 = jax.random.uniform(k1, (D, D), jnp.float32, -bound, bound)   # (in, out)
    b1 = jax.random.uniform(kb1, (D,), jnp.float32, -bound, bound)
    w2 = jax.random.uniform(k2, (D, D), jnp.float32, -bound, bound)   # (in, out)
    b2 = jax.random.uniform(kb2, (D,), jnp.float32, -bound, bound)

    forward = make_mlp(w1, b1, w2, b2)
    out = jax.block_until_ready(forward(x))
    assert out.shape == (B, D)
    assert out.dtype == jnp.float32

    x_flat = x.reshape(B, -1)
    ref_bf16 = mlp_reference_bf16(x_flat, w1, b1, w2, b2)
    assert jnp.allclose(out, ref_bf16, atol=1e-3, rtol=1e-3), \
        "mismatch vs bf16-matched reference"
    ref_f32 = mlp_reference_f32(x_flat, w1, b1, w2, b2)
    assert jnp.allclose(out, ref_f32, atol=5e-2, rtol=5e-2), \
        "mismatch vs full-f32 reference"

    # Tail-handling path: odd batch (20 -> padded to 24) with a small tile so
    # the grid is cdiv(24, 16) = 2 with a masked partial last block.
    B2 = 20
    x_tail = jax.random.normal(kx, (B2, 3, 16, 16), dtype=jnp.float32)
    forward_small_tile = make_mlp(w1, b1, w2, b2, tb=16)
    out2 = jax.block_until_ready(forward_small_tile(x_tail))
    assert out2.shape == (B2, D)
    ref2 = mlp_reference_bf16(x_tail.reshape(B2, -1), w1, b1, w2, b2)
    assert jnp.allclose(out2, ref2, atol=1e-3, rtol=1e-3), \
        "mismatch on partial-tile (tail) path"

    print("KERNEL_OK")
</pallas_src>

<mosaic_0001>
module attributes {stable_mosaic.version = 11 : i64} {
  func.func @mlp_kernel(%arg0: i32, %arg1: memref<8x768xf32, #tpu.memory_space<vmem>>, %arg2: memref<768x768xbf16, #tpu.memory_space<vmem>>, %arg3: memref<1x768xf32, #tpu.memory_space<vmem>>, %arg4: memref<768x768xbf16, #tpu.memory_space<vmem>>, %arg5: memref<1x768xf32, #tpu.memory_space<vmem>>, %arg6: memref<8x768xf32, #tpu.memory_space<vmem>>) attributes {dimension_semantics = [#tpu.dimension_semantics<parallel>], iteration_bounds = array<i64: 1>, scalar_prefetch = 0 : i64, scratch_operands = 0 : i64, tpu.core_type = #tpu.core_type<tc>, window_params = [{transform_indices = @transform_0, window_bounds = array<i64: 8, 768>}, {pipeline_mode = #tpu.pipeline_mode<synchronous>, transform_indices = @transform_1, window_bounds = array<i64: 768, 768>}, {pipeline_mode = #tpu.pipeline_mode<synchronous>, transform_indices = @transform_2, window_bounds = array<i64: 1, 768>}, {pipeline_mode = #tpu.pipeline_mode<synchronous>, transform_indices = @transform_3, window_bounds = array<i64: 768, 768>}, {pipeline_mode = #tpu.pipeline_mode<synchronous>, transform_indices = @transform_4, window_bounds = array<i64: 1, 768>}, {transform_indices = @transform_5, window_bounds = array<i64: 8, 768>}]} {
    %c0 = arith.constant 0 : index
    %c0_0 = arith.constant 0 : index
    %0 = vector.load %arg1[%c0, %c0_0] : memref<8x768xf32, #tpu.memory_space<vmem>>, vector<8x768xf32>
    %1 = arith.truncf %0 : vector<8x768xf32> to vector<8x768xbf16>
    %c0_1 = arith.constant 0 : index
    %c0_2 = arith.constant 0 : index
    %2 = vector.load %arg2[%c0_1, %c0_2] : memref<768x768xbf16, #tpu.memory_space<vmem>>, vector<768x768xbf16>
    %cst = arith.constant dense<0.000000e+00> : vector<8x768xf32>
    %3 = tpu.matmul %1, %2, %cst {dimension_numbers = #tpu.dot_dimension_numbers<[1], [0], [0], [1], [0, 0, 1, 1], [], []>} : vector<8x768xbf16>, vector<768x768xbf16>, vector<8x768xf32> -> vector<8x768xf32>
    %c0_3 = arith.constant 0 : index
    %c0_4 = arith.constant 0 : index
    %4 = vector.load %arg3[%c0_3, %c0_4] : memref<1x768xf32, #tpu.memory_space<vmem>>, vector<1x768xf32>
    %5 = vector.broadcast %4 : vector<1x768xf32> to vector<8x768xf32>
    %6 = arith.addf %3, %5 : vector<8x768xf32>
    %cst_5 = arith.constant 0.000000e+00 : f32
    %7 = vector.broadcast %cst_5 : f32 to vector<8x768xf32>
    %8 = arith.maximumf %6, %7 : vector<8x768xf32>
    %9 = arith.truncf %8 : vector<8x768xf32> to vector<8x768xbf16>
    %c0_6 = arith.constant 0 : index
    %c0_7 = arith.constant 0 : index
    %10 = vector.load %arg4[%c0_6, %c0_7] : memref<768x768xbf16, #tpu.memory_space<vmem>>, vector<768x768xbf16>
    %cst_8 = arith.constant dense<0.000000e+00> : vector<8x768xf32>
    %11 = tpu.matmul %9, %10, %cst_8 {dimension_numbers = #tpu.dot_dimension_numbers<[1], [0], [0], [1], [0, 0, 1, 1], [], []>} : vector<8x768xbf16>, vector<768x768xbf16>, vector<8x768xf32> -> vector<8x768xf32>
    %c0_9 = arith.constant 0 : index
    %c0_10 = arith.constant 0 : index
    %12 = vector.load %arg5[%c0_9, %c0_10] : memref<1x768xf32, #tpu.memory_space<vmem>>, vector<1x768xf32>
    %13 = vector.broadcast %12 : vector<1x768xf32> to vector<8x768xf32>
    %14 = arith.addf %11, %13 : vector<8x768xf32>
    %c0_11 = arith.constant 0 : index
    %c0_12 = arith.constant 0 : index
    %15 = vector.load %arg6[%c0_11, %c0_12] : memref<8x768xf32, #tpu.memory_space<vmem>>, vector<8x768xf32>
    tpu.vector_store %arg6[%c0_11, %c0_12], %14 {strides = array<i32>} : memref<8x768xf32, #tpu.memory_space<vmem>>, vector<8x768xf32>,
    return
  }
  func.func @transform_0(%arg0: i32) -> (i32, i32) {
    %c0_i32 = arith.constant 0 : i32
    %c0_i32_0 = arith.constant 0 : i32
    return %arg0, %c0_i32 : i32, i32
  }
  func.func @transform_1(%arg0: i32) -> (i32, i32) {
    %c0_i32 = arith.constant 0 : i32
    %c0_i32_0 = arith.constant 0 : i32
    %c0_i32_1 = arith.constant 0 : i32
    return %c0_i32, %c0_i32_0 : i32, i32
  }
  func.func @transform_2(%arg0: i32) -> (i32, i32) {
    %c0_i32 = arith.constant 0 : i32
    %c0_i32_0 = arith.constant 0 : i32
    %c0_i32_1 = arith.constant 0 : i32
    return %c0_i32, %c0_i32_0 : i32, i32
  }
  func.func @transform_3(%arg0: i32) -> (i32, i32) {
    %c0_i32 = arith.constant 0 : i32
    %c0_i32_0 = arith.constant 0 : i32
    %c0_i32_1 = arith.constant 0 : i32
    return %c0_i32, %c0_i32_0 : i32, i32
  }
  func.func @transform_4(%arg0: i32) -> (i32, i32) {
    %c0_i32 = arith.constant 0 : i32
    %c0_i32_0 = arith.constant 0 : i32
    %c0_i32_1 = arith.constant 0 : i32
    return %c0_i32, %c0_i32_0 : i32, i32
  }
  func.func @transform_5(%arg0: i32) -> (i32, i32) {
    %c0_i32 = arith.constant 0 : i32
    %c0_i32_0 = arith.constant 0 : i32
    return %arg0, %c0_i32 : i32, i32
  }
}

</mosaic_0001>

<llo_original>
// kernel: forward.1
$region0: #{forward.1}
  #allocation0 [shape = 'u32[]', space=smem, size = 0x4, offset = 0x4, fixed_abs, tag = 'smem constant byte address 0x4 - core index']
  #allocation1 [shape = 'u32[144,128]{1,0:T(1,128)}', space=vmem, size = 0x12000, scoped, tag = 'internal scratch']
  %s0 = inlined_call_operand.vmem [shape: f32[8,768], index: 0, kind: input, shape index: {}]
  %s1 = inlined_call_operand.vmem [shape: bf16[768,768], index: 1, kind: input, shape index: {}]
  %s2 = inlined_call_operand.vmem [shape: f32[1,768], index: 2, kind: input, shape index: {}]
  %s3 = inlined_call_operand.vmem [shape: bf16[768,768], index: 3, kind: input, shape index: {}]
  %s4 = inlined_call_operand.vmem [shape: f32[1,768], index: 4, kind: input, shape index: {}]
  %s5 = inlined_call_operand.hbm [shape: f32[8,768], index: 5, kind: output, shape index: {}]
  %s6 = sld [smem:[#allocation0]]
  $region30: #{forward.1} parent=0
    _
  %s8 = ssub.s32 1, %s6
  %s9 = scalar_select 0, %s8, %s6
  $region1: #{forward.1} parent=0
    #allocation2 [shape = 'u8[24576]{0}', space=vmem, size = 0x6000, scoped, tag = 'output window, operand 0, single buffered']
    #allocation3 [shape = 's32[1]{0}', space=sflag, size = 0x4, scoped, tag = 'scoped memory for forward.1']
    %10 = vsyncpa [#allocation3], 0
    // Predicated region
    $region2: #{forward.1} parent=1 // pred_check
      _
    $region3: #{forward.1} parent=1 // pred_check_branch
      %12 = sbr.rel (0) target = $region5
    $region4: #{forward.1} parent=1 // pred_region
      _
    $region5: #{forward.1} parent=1 // pred_fallthru
      _
    // Predicated region
    $region6: #{forward.1} parent=1 // pred_check
      _
    $region7: #{forward.1} parent=1 // pred_check_branch
      %14 = sbr.rel (0) target = $region9
    $region8: #{forward.1} parent=1 // pred_region
      _
    $region9: #{forward.1} parent=1 // pred_fallthru
      _
    // Predicated region
    $region10: #{forward.1} parent=1 // pred_check
      _
    $region11: #{forward.1} parent=1 // pred_check_branch
      %16 = sbr.rel (0) target = $region13
    $region12: #{forward.1} parent=1 // pred_region
      _
    $region13: #{forward.1} parent=1 // pred_fallthru
      _
    // Predicated region
    $region14: #{forward.1} parent=1 // pred_check
      _
    $region15: #{forward.1} parent=1 // pred_check_branch
      %18 = sbr.rel (0) target = $region17
    $region16: #{forward.1} parent=1 // pred_region
      _
    $region17: #{forward.1} parent=1 // pred_fallthru
      _
    // Predicated region
    $region18: #{forward.1} parent=1 // pred_check
      _
    $region19: #{forward.1} parent=1 // pred_check_branch
      %20 = sbr.rel (0) target = $region21
    $region20: #{forward.1} parent=1 // pred_region
      _
    $region21: #{forward.1} parent=1 // pred_fallthru
      _
    %v21 = vld [vmem:[%s0] sm:$0xff]
    %v22 = vld [vmem:[%s0 + $0x8] sm:$0xff]
    %v23 = vld [vmem:[%s0 + $0x10] sm:$0xff]
    %v24 = vld [vmem:[%s0 + $0x18] sm:$0xff]
    %v25 = vld [vmem:[%s0 + $0x20] sm:$0xff]
    %v26 = vld [vmem:[%s0 + $0x28] sm:$0xff]
    %v27 = vpack.c.bf16 %v21, %v21
    %v28 = vpack.c.bf16 %v22, %v22
    %v29 = vpack.c.bf16 %v23, %v23
    %v30 = vpack.c.bf16 %v24, %v24
    %v31 = vpack.c.bf16 %v25, %v25
    %v32 = vpack.c.bf16 %v26, %v26
    %v33 = vld [vmem:[%s1] sm:$0xff]
    %v34 = vld [vmem:[%s1 + $0x8] sm:$0xff]
    %v35 = vld [vmem:[%s1 + $0x10] sm:$0xff]
    %v36 = vld [vmem:[%s1 + $0x18] sm:$0xff]
    %v37 = vld [vmem:[%s1 + $0x20] sm:$0xff]
    %v38 = vld [vmem:[%s1 + $0x28] sm:$0xff]
    %v39 = vld [vmem:[%s1 + $0x30] sm:$0xff]
    %v40 = vld [vmem:[%s1 + $0x38] sm:$0xff]
    %v41 = vld [vmem:[%s1 + $0x40] sm:$0xff]
    %v42 = vld [vmem:[%s1 + $0x48] sm:$0xff]
    %v43 = vld [vmem:[%s1 + $0x50] sm:$0xff]
    %v44 = vld [vmem:[%s1 + $0x58] sm:$0xff]
    %v45 = vld [vmem:[%s1 + $0x60] sm:$0xff]
    %v46 = vld [vmem:[%s1 + $0x68] sm:$0xff]
    %v47 = vld [vmem:[%s1 + $0x70] sm:$0xff]
    %v48 = vld [vmem:[%s1 + $0x78] sm:$0xff]
    %v49 = vld [vmem:[%s1 + $0x80] sm:$0xff]
    %v50 = vld [vmem:[%s1 + $0x88] sm:$0xff]
    %v51 = vld [vmem:[%s1 + $0x90] sm:$0xff]
    %v52 = vld [vmem:[%s1 + $0x98] sm:$0xff]
    %v53 = vld [vmem:[%s1 + $0xa0] sm:$0xff]
    %v54 = vld [vmem:[%s1 + $0xa8] sm:$0xff]
    %v55 = vld [vmem:[%s1 + $0xb0] sm:$0xff]
    %v56 = vld [vmem:[%s1 + $0xb8] sm:$0xff]
    %v57 = vld [vmem:[%s1 + $0xc0] sm:$0xff]
    %v58 = vld [vmem:[%s1 + $0xc8] sm:$0xff]
    %v59 = vld [vmem:[%s1 + $0xd0] sm:$0xff]
    %v60 = vld [vmem:[%s1 + $0xd8] sm:$0xff]
    %v61 = vld [vmem:[%s1 + $0xe0] sm:$0xff]
    %v62 = vld [vmem:[%s1 + $0xe8] sm:$0xff]
    %v63 = vld [vmem:[%s1 + $0xf0] sm:$0xff]
    %v64 = vld [vmem:[%s1 + $0xf8] sm:$0xff]
    %v65 = vld [vmem:[%s1 + $0x100] sm:$0xff]
    %v66 = vld [vmem:[%s1 + $0x108] sm:$0xff]
    %v67 = vld [vmem:[%s1 + $0x110] sm:$0xff]
    %v68 = vld [vmem:[%s1 + $0x118] sm:$0xff]
    %v69 = vld [vmem:[%s1 + $0x120] sm:$0xff]
    %v70 = vld [vmem:[%s1 + $0x128] sm:$0xff]
    %v71 = vld [vmem:[%s1 + $0x130] sm:$0xff]
    %v72 = vld [vmem:[%s1 + $0x138] sm:$0xff]
    %v73 = vld [vmem:[%s1 + $0x140] sm:$0xff]
    %v74 = vld [vmem:[%s1 + $0x148] sm:$0xff]
    %v75 = vld [vmem:[%s1 + $0x150] sm:$0xff]
    %v76 = vld [vmem:[%s1 + $0x158] sm:$0xff]
    %v77 = vld [vmem:[%s1 + $0x160] sm:$0xff]
    %v78 = vld [vmem:[%s1 + $0x168] sm:$0xff]
    %v79 = vld [vmem:[%s1 + $0x170] sm:$0xff]
    %v80 = vld [vmem:[%s1 + $0x178] sm:$0xff]
    %v81 = vld [vmem:[%s1 + $0x180] sm:$0xff]
    %v82 = vld [vmem:[%s1 + $0x188] sm:$0xff]
    %v83 = vld [vmem:[%s1 + $0x190] sm:$0xff]
    %v84 = vld [vmem:[%s1 + $0x198] sm:$0xff]
    %v85 = vld [vmem:[%s1 + $0x1a0] sm:$0xff]
    %v86 = vld [vmem:[%s1 + $0x1a8] sm:$0xff]
    %v87 = vld [vmem:[%s1 + $0x1b0] sm:$0xff]
    %v88 = vld [vmem:[%s1 + $0x1b8] sm:$0xff]
    %v89 = vld [vmem:[%s1 + $0x1c0] sm:$0xff]
    %v90 = vld [vmem:[%s1 + $0x1c8] sm:$0xff]
    %v91 = vld [vmem:[%s1 + $0x1d0] sm:$0xff]
    %v92 = vld [vmem:[%s1 + $0x1d8] sm:$0xff]
    %v93 = vld [vmem:[%s1 + $0x1e0] sm:$0xff]
    %v94 = vld [vmem:[%s1 + $0x1e8] sm:$0xff]
    %v95 = vld [vmem:[%s1 + $0x1f0] sm:$0xff]
    %v96 = vld [vmem:[%s1 + $0x1f8] sm:$0xff]
    %v97 = vld [vmem:[%s1 + $0x200] sm:$0xff]
    %v98 = vld [vmem:[%s1 + $0x208] sm:$0xff]
    %v99 = vld [vmem:[%s1 + $0x210] sm:$0xff]
    %v100 = vld [vmem:[%s1 + $0x218] sm:$0xff]
    %v101 = vld [vmem:[%s1 + $0x220] sm:$0xff]
    %v102 = vld [vmem:[%s1 + $0x228] sm:$0xff]
    %v103 = vld [vmem:[%s1 + $0x230] sm:$0xff]
    %v104 = vld [vmem:[%s1 + $0x238] sm:$0xff]
    %v105 = vld [vmem:[%s1 + $0x240] sm:$0xff]
    %v106 = vld [vmem:[%s1 + $0x248] sm:$0xff]
    %v107 = vld [vmem:[%s1 + $0x250] sm:$0xff]
    %v108 = vld [vmem:[%s1 + $0x258] sm:$0xff]
    %v109 = vld [vmem:[%s1 + $0x260] sm:$0xff]
    %v110 = vld [vmem:[%s1 + $0x268] sm:$0xff]
    %v111 = vld [vmem:[%s1 + $0x270] sm:$0xff]
    %v112 = vld [vmem:[%s1 + $0x278] sm:$0xff]
    %v113 = vld [vmem:[%s1 + $0x280] sm:$0xff]
    %v114 = vld [vmem:[%s1 + $0x288] sm:$0xff]
    %v115 = vld [vmem:[%s1 + $0x290] sm:$0xff]
    %v116 = vld [vmem:[%s1 + $0x298] sm:$0xff]
    %v117 = vld [vmem:[%s1 + $0x2a0] sm:$0xff]
    %v118 = vld [vmem:[%s1 + $0x2a8] sm:$0xff]
    %v119 = vld [vmem:[%s1 + $0x2b0] sm:$0xff]
    %v120 = vld [vmem:[%s1 + $0x2b8] sm:$0xff]
    %v121 = vld [vmem:[%s1 + $0x2c0] sm:$0xff]
    %v122 = vld [vmem:[%s1 + $0x2c8] sm:$0xff]
    %v123 = vld [vmem:[%s1 + $0x2d0] sm:$0xff]
    %v124 = vld [vmem:[%s1 + $0x2d8] sm:$0xff]
    %v125 = vld [vmem:[%s1 + $0x2e0] sm:$0xff]
    %v126 = vld [vmem:[%s1 + $0x2e8] sm:$0xff]
    %v127 = vld [vmem:[%s1 + $0x2f0] sm:$0xff]
    %v128 = vld [vmem:[%s1 + $0x2f8] sm:$0xff]
    %v129 = vld [vmem:[%s1 + $0x300] sm:$0xff]
    %v130 = vld [vmem:[%s1 + $0x308] sm:$0xff]
    %v131 = vld [vmem:[%s1 + $0x310] sm:$0xff]
    %v132 = vld [vmem:[%s1 + $0x318] sm:$0xff]
    %v133 = vld [vmem:[%s1 + $0x320] sm:$0xff]
    %v134 = vld [vmem:[%s1 + $0x328] sm:$0xff]
    %v135 = vld [vmem:[%s1 + $0x330] sm:$0xff]
    %v136 = vld [vmem:[%s1 + $0x338] sm:$0xff]
    %v137 = vld [vmem:[%s1 + $0x340] sm:$0xff]
    %v138 = vld [vmem:[%s1 + $0x348] sm:$0xff]
    %v139 = vld [vmem:[%s1 + $0x350] sm:$0xff]
    %v140 = vld [vmem:[%s1 + $0x358] sm:$0xff]
    %v141 = vld [vmem:[%s1 + $0x360] sm:$0xff]
    %v142 = vld [vmem:[%s1 + $0x368] sm:$0xff]
    %v143 = vld [vmem:[%s1 + $0x370] sm:$0xff]
    %v144 = vld [vmem:[%s1 + $0x378] sm:$0xff]
    %v145 = vld [vmem:[%s1 + $0x380] sm:$0xff]
    %v146 = vld [vmem:[%s1 + $0x388] sm:$0xff]
    %v147 = vld [vmem:[%s1 + $0x390] sm:$0xff]
    %v148 = vld [vmem:[%s1 + $0x398] sm:$0xff]
    %v149 = vld [vmem:[%s1 + $0x3a0] sm:$0xff]
    %v150 = vld [vmem:[%s1 + $0x3a8] sm:$0xff]
    %v151 = vld [vmem:[%s1 + $0x3b0] sm:$0xff]
    %v152 = vld [vmem:[%s1 + $0x3b8] sm:$0xff]
    %v153 = vld [vmem:[%s1 + $0x3c0] sm:$0xff]
    %v154 = vld [vmem:[%s1 + $0x3c8] sm:$0xff]
    %v155 = vld [vmem:[%s1 + $0x3d0] sm:$0xff]
    %v156 = vld [vmem:[%s1 + $0x3d8] sm:$0xff]
    %v157 = vld [vmem:[%s1 + $0x3e0] sm:$0xff]
    %v158 = vld [vmem:[%s1 + $0x3e8] sm:$0xff]
    %v159 = vld [vmem:[%s1 + $0x3f0] sm:$0xff]
    %v160 = vld [vmem:[%s1 + $0x3f8] sm:$0xff]
    %v161 = vld [vmem:[%s1 + $0x400] sm:$0xff]
    %v162 = vld [vmem:[%s1 + $0x408] sm:$0xff]
    %v163 = vld [vmem:[%s1 + $0x410] sm:$0xff]
    %v164 = vld [vmem:[%s1 + $0x418] sm:$0xff]
    %v165 = vld [vmem:[%s1 + $0x420] sm:$0xff]
    %v166 = vld [vmem:[%s1 + $0x428] sm:$0xff]
    %v167 = vld [vmem:[%s1 + $0x430] sm:$0xff]
    %v168 = vld [vmem:[%s1 + $0x438] sm:$0xff]
    %v169 = vld [vmem:[%s1 + $0x440] sm:$0xff]
    %v170 = vld [vmem:[%s1 + $0x448] sm:$0xff]
    %v171 = vld [vmem:[%s1 + $0x450] sm:$0xff]
    %v172 = vld [vmem:[%s1 + $0x458] sm:$0xff]
    %v173 = vld [vmem:[%s1 + $0x460] sm:$0xff]
    %v174 = vld [vmem:[%s1 + $0x468] sm:$0xff]
    %v175 = vld [vmem:[%s1 + $0x470] sm:$0xff]
    %v176 = vld [vmem:[%s1 + $0x478] sm:$0xff]
    %v177 = vld [vmem:[%s1 + $0x480] sm:$0xff]
    %v178 = vld [vmem:[%s1 + $0x488] sm:$0xff]
    %v179 = vld [vmem:[%s1 + $0x490] sm:$0xff]
    %v180 = vld [vmem:[%s1 + $0x498] sm:$0xff]
    %v181 = vld [vmem:[%s1 + $0x4a0] sm:$0xff]
    %v182 = vld [vmem:[%s1 + $0x4a8] sm:$0xff]
    %v183 = vld [vmem:[%s1 + $0x4b0] sm:$0xff]
    %v184 = vld [vmem:[%s1 + $0x4b8] sm:$0xff]
    %v185 = vld [vmem:[%s1 + $0x4c0] sm:$0xff]
    %v186 = vld [vmem:[%s1 + $0x4c8] sm:$0xff]
    %v187 = vld [vmem:[%s1 + $0x4d0] sm:$0xff]
    %v188 = vld [vmem:[%s1 + $0x4d8] sm:$0xff]
    %v189 = vld [vmem:[%s1 + $0x4e0] sm:$0xff]
    %v190 = vld [vmem:[%s1 + $0x4e8] sm:$0xff]
    %v191 = vld [vmem:[%s1 + $0x4f0] sm:$0xff]
    %v192 = vld [vmem:[%s1 + $0x4f8] sm:$0xff]
    %v193 = vld [vmem:[%s1 + $0x500] sm:$0xff]
    %v194 = vld [vmem:[%s1 + $0x508] sm:$0xff]
    %v195 = vld [vmem:[%s1 + $0x510] sm:$0xff]
    %v196 = vld [vmem:[%s1 + $0x518] sm:$0xff]
    %v197 = vld [vmem:[%s1 + $0x520] sm:$0xff]
    %v198 = vld [vmem:[%s1 + $0x528] sm:$0xff]
    %v199 = vld [vmem:[%s1 + $0x530] sm:$0xff]
    %v200 = vld [vmem:[%s1 + $0x538] sm:$0xff]
    %v201 = vld [vmem:[%s1 + $0x540] sm:$0xff]
    %v202 = vld [vmem:[%s1 + $0x548] sm:$0xff]
    %v203 = vld [vmem:[%s1 + $0x550] sm:$0xff]
    %v204 = vld [vmem:[%s1 + $0x558] sm:$0xff]
    %v205 = vld [vmem:[%s1 + $0x560] sm:$0xff]
    %v206 = vld [vmem:[%s1 + $0x568] sm:$0xff]
    %v207 = vld [vmem:[%s1 + $0x570] sm:$0xff]
    %v208 = vld [vmem:[%s1 + $0x578] sm:$0xff]
    %v209 = vld [vmem:[%s1 + $0x580] sm:$0xff]
    %v210 = vld [vmem:[%s1 + $0x588] sm:$0xff]
    %v211 = vld [vmem:[%s1 + $0x590] sm:$0xff]
    %v212 = vld [vmem:[%s1 + $0x598] sm:$0xff]
    %v213 = vld [vmem:[%s1 + $0x5a0] sm:$0xff]
    %v214 = vld [vmem:[%s1 + $0x5a8] sm:$0xff]
    %v215 = vld [vmem:[%s1 + $0x5b0] sm:$0xff]
    %v216 = vld [vmem:[%s1 + $0x5b8] sm:$0xff]
    %v217 = vld [vmem:[%s1 + $0x5c0] sm:$0xff]
    %v218 = vld [vmem:[%s1 + $0x5c8] sm:$0xff]
    %v219 = vld [vmem:[%s1 + $0x5d0] sm:$0xff]
    %v220 = vld [vmem:[%s1 + $0x5d8] sm:$0xff]
    %v221 = vld [vmem:[%s1 + $0x5e0] sm:$0xff]
    %v222 = vld [vmem:[%s1 + $0x5e8] sm:$0xff]
    %v223 = vld [vmem:[%s1 + $0x5f0] sm:$0xff]
    %v224 = vld [vmem:[%s1 + $0x5f8] sm:$0xff]
    %v225 = vld [vmem:[%s1 + $0x600] sm:$0xff]
    %v226 = vld [vmem:[%s1 + $0x608] sm:$0xff]
    %v227 = vld [vmem:[%s1 + $0x610] sm:$0xff]
    %v228 = vld [vmem:[%s1 + $0x618] sm:$0xff]
    %v229 = vld [vmem:[%s1 + $0x620] sm:$0xff]
    %v230 = vld [vmem:[%s1 + $0x628] sm:$0xff]
    %v231 = vld [vmem:[%s1 + $0x630] sm:$0xff]
    %v232 = vld [vmem:[%s1 + $0x638] sm:$0xff]
    %v233 = vld [vmem:[%s1 + $0x640] sm:$0xff]
    %v234 = vld [vmem:[%s1 + $0x648] sm:$0xff]
    %v235 = vld [vmem:[%s1 + $0x650] sm:$0xff]
    %v236 = vld [vmem:[%s1 + $0x658] sm:$0xff]
    %v237 = vld [vmem:[%s1 + $0x660] sm:$0xff]
    %v238 = vld [vmem:[%s1 + $0x668] sm:$0xff]
    %v239 = vld [vmem:[%s1 + $0x670] sm:$0xff]
    %v240 = vld [vmem:[%s1 + $0x678] sm:$0xff]
    %v241 = vld [vmem:[%s1 + $0x680] sm:$0xff]
    %v242 = vld [vmem:[%s1 + $0x688] sm:$0xff]
    %v243 = vld [vmem:[%s1 + $0x690] sm:$0xff]
    %v244 = vld [vmem:[%s1 + $0x698] sm:$0xff]
    %v245 = vld [vmem:[%s1 + $0x6a0] sm:$0xff]
    %v246 = vld [vmem:[%s1 + $0x6a8] sm:$0xff]
    %v247 = vld [vmem:[%s1 + $0x6b0] sm:$0xff]
    %v248 = vld [vmem:[%s1 + $0x6b8] sm:$0xff]
    %v249 = vld [vmem:[%s1 + $0x6c0] sm:$0xff]
    %v250 = vld [vmem:[%s1 + $0x6c8] sm:$0xff]
    %v251 = vld [vmem:[%s1 + $0x6d0] sm:$0xff]
    %v252 = vld [vmem:[%s1 + $0x6d8] sm:$0xff]
    %v253 = vld [vmem:[%s1 + $0x6e0] sm:$0xff]
    %v254 = vld [vmem:[%s1 + $0x6e8] sm:$0xff]
    %v255 = vld [vmem:[%s1 + $0x6f0] sm:$0xff]
    %v256 = vld [vmem:[%s1 + $0x6f8] sm:$0xff]
    %v257 = vld [vmem:[%s1 + $0x700] sm:$0xff]
    %v258 = vld [vmem:[%s1 + $0x708] sm:$0xff]
    %v259 = vld [vmem:[%s1 + $0x710] sm:$0xff]
    %v260 = vld [vmem:[%s1 + $0x718] sm:$0xff]
    %v261 = vld [vmem:[%s1 + $0x720] sm:$0xff]
    %v262 = vld [vmem:[%s1 + $0x728] sm:$0xff]
    %v263 = vld [vmem:[%s1 + $0x730] sm:$0xff]
    %v264 = vld [vmem:[%s1 + $0x738] sm:$0xff]
    %v265 = vld [vmem:[%s1 + $0x740] sm:$0xff]
    %v266 = vld [vmem:[%s1 + $0x748] sm:$0xff]
    %v267 = vld [vmem:[%s1 + $0x750] sm:$0xff]
    %v268 = vld [vmem:[%s1 + $0x758] sm:$0xff]
    %v269 = vld [vmem:[%s1 + $0x760] sm:$0xff]
    %v270 = vld [vmem:[%s1 + $0x768] sm:$0xff]
    %v271 = vld [vmem:[%s1 + $0x770] sm:$0xff]
    %v272 = vld [vmem:[%s1 + $0x778] sm:$0xff]
    %v273 = vld [vmem:[%s1 + $0x780] sm:$0xff]
    %v274 = vld [vmem:[%s1 + $0x788] sm:$0xff]
    %v275 = vld [vmem:[%s1 + $0x790] sm:$0xff]
    %v276 = vld [vmem:[%s1 + $0x798] sm:$0xff]
    %v277 = vld [vmem:[%s1 + $0x7a0] sm:$0xff]
    %v278 = vld [vmem:[%s1 + $0x7a8] sm:$0xff]
    %v279 = vld [vmem:[%s1 + $0x7b0] sm:$0xff]
    %v280 = vld [vmem:[%s1 + $0x7b8] sm:$0xff]
    %v281 = vld [vmem:[%s1 + $0x7c0] sm:$0xff]
    %v282 = vld [vmem:[%s1 + $0x7c8] sm:$0xff]
    %v283 = vld [vmem:[%s1 + $0x7d0] sm:$0xff]
    %v284 = vld [vmem:[%s1 + $0x7d8] sm:$0xff]
    %v285 = vld [vmem:[%s1 + $0x7e0] sm:$0xff]
    %v286 = vld [vmem:[%s1 + $0x7e8] sm:$0xff]
    %v287 = vld [vmem:[%s1 + $0x7f0] sm:$0xff]
    %v288 = vld [vmem:[%s1 + $0x7f8] sm:$0xff]
    %v289 = vld [vmem:[%s1 + $0x800] sm:$0xff]
    %v290 = vld [vmem:[%s1 + $0x808] sm:$0xff]
    %v291 = vld [vmem:[%s1 + $0x810] sm:$0xff]
    %v292 = vld [vmem:[%s1 + $0x818] sm:$0xff]
    %v293 = vld [vmem:[%s1 + $0x820] sm:$0xff]
    %v294 = vld [vmem:[%s1 + $0x828] sm:$0xff]
    %v295 = vld [vmem:[%s1 + $0x830] sm:$0xff]
    %v296 = vld [vmem:[%s1 + $0x838] sm:$0xff]
    %v297 = vld [vmem:[%s1 + $0x840] sm:$0xff]
    %v298 = vld [vmem:[%s1 + $0x848] sm:$0xff]
    %v299 = vld [vmem:[%s1 + $0x850] sm:$0xff]
    %v300 = vld [vmem:[%s1 + $0x858] sm:$0xff]
    %v301 = vld [vmem:[%s1 + $0x860] sm:$0xff]
    %v302 = vld [vmem:[%s1 + $0x868] sm:$0xff]
    %v303 = vld [vmem:[%s1 + $0x870] sm:$0xff]
    %v304 = vld [vmem:[%s1 + $0x878] sm:$0xff]
    %v305 = vld [vmem:[%s1 + $0x880] sm:$0xff]
    %v306 = vld [vmem:[%s1 + $0x888] sm:$0xff]
    %v307 = vld [vmem:[%s1 + $0x890] sm:$0xff]
    %v308 = vld [vmem:[%s1 + $0x898] sm:$0xff]
    %v309 = vld [vmem:[%s1 + $0x8a0] sm:$0xff]
    %v310 = vld [vmem:[%s1 + $0x8a8] sm:$0xff]
    %v311 = vld [vmem:[%s1 + $0x8b0] sm:$0xff]
    %v312 = vld [vmem:[%s1 + $0x8b8] sm:$0xff]
    %v313 = vld [vmem:[%s1 + $0x8c0] sm:$0xff]
    %v314 = vld [vmem:[%s1 + $0x8c8] sm:$0xff]
    %v315 = vld [vmem:[%s1 + $0x8d0] sm:$0xff]
    %v316 = vld [vmem:[%s1 + $0x8d8] sm:$0xff]
    %v317 = vld [vmem:[%s1 + $0x8e0] sm:$0xff]
    %v318 = vld [vmem:[%s1 + $0x8e8] sm:$0xff]
    %v319 = vld [vmem:[%s1 + $0x8f0] sm:$0xff]
    %v320 = vld [vmem:[%s1 + $0x8f8] sm:$0xff]
    %v321 = vld [vmem:[%s2] sm:$0x3f]
    %v323 = vlaneseq
    %v324 = vshrl.u32 %v323, 7
    %v325 = vsub.s32 0, %v324
    %v326 = vrot.slane %v321, %v325
    %v327 = vlaneseq
    %v328 = vshrl.u32 %v327, 7
    %v329 = vsub.s32 1, %v328
    %v330 = vrot.slane %v321, %v329
    %v331 = vlaneseq
    %v332 = vshrl.u32 %v331, 7
    %v333 = vsub.s32 2, %v332
    %v334 = vrot.slane %v321, %v333
    %v335 = vlaneseq
    %v336 = vshrl.u32 %v335, 7
    %v337 = vsub.s32 3, %v336
    %v338 = vrot.slane %v321, %v337
    %v339 = vlaneseq
    %v340 = vshrl.u32 %v339, 7
    %v341 = vsub.s32 4, %v340
    %v342 = vrot.slane %v321, %v341
    %v343 = vlaneseq
    %v344 = vshrl.u32 %v343, 7
    %v345 = vsub.s32 5, %v344
    %v346 = vrot.slane %v321, %v345
    %v641 = vunpack.c.l.b16 %v33
    %v642 = vunpack.c.h.b16 %v33
    %v643 = vunpack.c.l.b16 %v34
    %v644 = vunpack.c.h.b16 %v34
    %v645 = vunpack.c.l.b16 %v35
    %v646 = vunpack.c.h.b16 %v35
    %v647 = vunpack.c.l.b16 %v36
    %v648 = vunpack.c.h.b16 %v36
    %v649 = vunpack.c.l.b16 %v37
    %v650 = vunpack.c.h.b16 %v37
    %v651 = vunpack.c.l.b16 %v38
    %v652 = vunpack.c.h.b16 %v38
    %v653 = vunpack.c.l.b16 %v39
    %v654 = vunpack.c.h.b16 %v39
    %v655 = vunpack.c.l.b16 %v40
    %v656 = vunpack.c.h.b16 %v40
    %v657 = vunpack.c.l.b16 %v41
    %v658 = vunpack.c.h.b16 %v41
    %v659 = vunpack.c.l.b16 %v42
    %v660 = vunpack.c.h.b16 %v42
    %v661 = vunpack.c.l.b16 %v43
    %v662 = vunpack.c.h.b16 %v43
    %v663 = vunpack.c.l.b16 %v44
    %v664 = vunpack.c.h.b16 %v44
    %v665 = vunpack.c.l.b16 %v45
    %v666 = vunpack.c.h.b16 %v45
    %v667 = vunpack.c.l.b16 %v46
    %v668 = vunpack.c.h.b16 %v46
    %v669 = vunpack.c.l.b16 %v47
    %v670 = vunpack.c.h.b16 %v47
    %v671 = vunpack.c.l.b16 %v48
    %v672 = vunpack.c.h.b16 %v48
    %v673 = vunpack.c.l.b16 %v49
    %v674 = vunpack.c.h.b16 %v49
    %v675 = vunpack.c.l.b16 %v50
    %v676 = vunpack.c.h.b16 %v50
    %v677 = vunpack.c.l.b16 %v51
    %v678 = vunpack.c.h.b16 %v51
    %v679 = vunpack.c.l.b16 %v52
    %v680 = vunpack.c.h.b16 %v52
    %v681 = vunpack.c.l.b16 %v53
    %v682 = vunpack.c.h.b16 %v53
    %v683 = vunpack.c.l.b16 %v54
    %v684 = vunpack.c.h.b16 %v54
    %v685 = vunpack.c.l.b16 %v55
    %v686 = vunpack.c.h.b16 %v55
    %v687 = vunpack.c.l.b16 %v56
    %v688 = vunpack.c.h.b16 %v56
    %v689 = vunpack.c.l.b16 %v57
    %v690 = vunpack.c.h.b16 %v57
    %v691 = vunpack.c.l.b16 %v58
    %v692 = vunpack.c.h.b16 %v58
    %v693 = vunpack.c.l.b16 %v59
    %v694 = vunpack.c.h.b16 %v59
    %v695 = vunpack.c.l.b16 %v60
    %v696 = vunpack.c.h.b16 %v60
    %v697 = vunpack.c.l.b16 %v61
    %v698 = vunpack.c.h.b16 %v61
    %v699 = vunpack.c.l.b16 %v62
    %v700 = vunpack.c.h.b16 %v62
    %v701 = vunpack.c.l.b16 %v63
    %v702 = vunpack.c.h.b16 %v63
    %v703 = vunpack.c.l.b16 %v64
    %v704 = vunpack.c.h.b16 %v64
    %v705 = vunpack.c.l.b16 %v65
    %v706 = vunpack.c.h.b16 %v65
    %v707 = vunpack.c.l.b16 %v66
    %v708 = vunpack.c.h.b16 %v66
    %v709 = vunpack.c.l.b16 %v67
    %v710 = vunpack.c.h.b16 %v67
    %v711 = vunpack.c.l.b16 %v68
    %v712 = vunpack.c.h.b16 %v68
    %v713 = vunpack.c.l.b16 %v69
    %v714 = vunpack.c.h.b16 %v69
    %v715 = vunpack.c.l.b16 %v70
    %v716 = vunpack.c.h.b16 %v70
    %v717 = vunpack.c.l.b16 %v71
    %v718 = vunpack.c.h.b16 %v71
    %v719 = vunpack.c.l.b16 %v72
    %v720 = vunpack.c.h.b16 %v72
    %v721 = vunpack.c.l.b16 %v73
    %v722 = vunpack.c.h.b16 %v73
    %v723 = vunpack.c.l.b16 %v74
    %v724 = vunpack.c.h.b16 %v74
    %v725 = vunpack.c.l.b16 %v75
    %v726 = vunpack.c.h.b16 %v75
    %v727 = vunpack.c.l.b16 %v76
    %v728 = vunpack.c.h.b16 %v76
    %v729 = vunpack.c.l.b16 %v77
    %v730 = vunpack.c.h.b16 %v77
    %v731 = vunpack.c.l.b16 %v78
    %v732 = vunpack.c.h.b16 %v78
    %v733 = vunpack.c.l.b16 %v79
    %v734 = vunpack.c.h.b16 %v79
    %v735 = vunpack.c.l.b16 %v80
    %v736 = vunpack.c.h.b16 %v80
    %v737 = vunpack.c.l.b16 %v81
    %v738 = vunpack.c.h.b16 %v81
    %v739 = vunpack.c.l.b16 %v82
    %v740 = vunpack.c.h.b16 %v82
    %v741 = vunpack.c.l.b16 %v83
    %v742 = vunpack.c.h.b16 %v83
    %v743 = vunpack.c.l.b16 %v84
    %v744 = vunpack.c.h.b16 %v84
    %v745 = vunpack.c.l.b16 %v85
    %v746 = vunpack.c.h.b16 %v85
    %v747 = vunpack.c.l.b16 %v86
    %v748 = vunpack.c.h.b16 %v86
    %v749 = vunpack.c.l.b16 %v87
    %v750 = vunpack.c.h.b16 %v87
    %v751 = vunpack.c.l.b16 %v88
    %v752 = vunpack.c.h.b16 %v88
    %v753 = vunpack.c.l.b16 %v89
    %v754 = vunpack.c.h.b16 %v89
    %v755 = vunpack.c.l.b16 %v90
    %v756 = vunpack.c.h.b16 %v90
    %v757 = vunpack.c.l.b16 %v91
    %v758 = vunpack.c.h.b16 %v91
    %v759 = vunpack.c.l.b16 %v92
    %v760 = vunpack.c.h.b16 %v92
    %v761 = vunpack.c.l.b16 %v93
    %v762 = vunpack.c.h.b16 %v93
    %v763 = vunpack.c.l.b16 %v94
    %v764 = vunpack.c.h.b16 %v94
    %v765 = vunpack.c.l.b16 %v95
    %v766 = vunpack.c.h.b16 %v95
    %v767 = vunpack.c.l.b16 %v96
    %v768 = vunpack.c.h.b16 %v96
    %v769 = vunpack.c.l.b16 %v97
    %v770 = vunpack.c.h.b16 %v97
    %v771 = vunpack.c.l.b16 %v98
    %v772 = vunpack.c.h.b16 %v98
    %v773 = vunpack.c.l.b16 %v99
    %v774 = vunpack.c.h.b16 %v99
    %v775 = vunpack.c.l.b16 %v100
    %v776 = vunpack.c.h.b16 %v100
    %v777 = vunpack.c.l.b16 %v101
    %v778 = vunpack.c.h.b16 %v101
    %v779 = vunpack.c.l.b16 %v102
    %v780 = vunpack.c.h.b16 %v102
    %v781 = vunpack.c.l.b16 %v103
    %v782 = vunpack.c.h.b16 %v103
    %v783 = vunpack.c.l.b16 %v104
    %v784 = vunpack.c.h.b16 %v104
    %v785 = vunpack.c.l.b16 %v105
    %v786 = vunpack.c.h.b16 %v105
    %v787 = vunpack.c.l.b16 %v106
    %v788 = vunpack.c.h.b16 %v106
    %v789 = vunpack.c.l.b16 %v107
    %v790 = vunpack.c.h.b16 %v107
    %v791 = vunpack.c.l.b16 %v108
    %v792 = vunpack.c.h.b16 %v108
    %v793 = vunpack.c.l.b16 %v109
    %v794 = vunpack.c.h.b16 %v109
    %v795 = vunpack.c.l.b16 %v110
    %v796 = vunpack.c.h.b16 %v110
    %v797 = vunpack.c.l.b16 %v111
    %v798 = vunpack.c.h.b16 %v111
    %v799 = vunpack.c.l.b16 %v112
    %v800 = vunpack.c.h.b16 %v112
    %v801 = vunpack.c.l.b16 %v113
    %v802 = vunpack.c.h.b16 %v113
    %v803 = vunpack.c.l.b16 %v114
    %v804 = vunpack.c.h.b16 %v114
    %v805 = vunpack.c.l.b16 %v115
    %v806 = vunpack.c.h.b16 %v115
    %v807 = vunpack.c.l.b16 %v116
    %v808 = vunpack.c.h.b16 %v116
    %v809 = vunpack.c.l.b16 %v117
    %v810 = vunpack.c.h.b16 %v117
    %v811 = vunpack.c.l.b16 %v118
    %v812 = vunpack.c.h.b16 %v118
    %v813 = vunpack.c.l.b16 %v119
    %v814 = vunpack.c.h.b16 %v119
    %v815 = vunpack.c.l.b16 %v120
    %v816 = vunpack.c.h.b16 %v120
    %v817 = vunpack.c.l.b16 %v121
    %v818 = vunpack.c.h.b16 %v121
    %v819 = vunpack.c.l.b16 %v122
    %v820 = vunpack.c.h.b16 %v122
    %v821 = vunpack.c.l.b16 %v123
    %v822 = vunpack.c.h.b16 %v123
    %v823 = vunpack.c.l.b16 %v124
    %v824 = vunpack.c.h.b16 %v124
    %v825 = vunpack.c.l.b16 %v125
    %v826 = vunpack.c.h.b16 %v125
    %v827 = vunpack.c.l.b16 %v126
    %v828 = vunpack.c.h.b16 %v126
    %v829 = vunpack.c.l.b16 %v127
    %v830 = vunpack.c.h.b16 %v127
    %v831 = vunpack.c.l.b16 %v128
    %v832 = vunpack.c.h.b16 %v128
    %v833 = vunpack.c.l.b16 %v129
    %v834 = vunpack.c.h.b16 %v129
    %v835 = vunpack.c.l.b16 %v130
    %v836 = vunpack.c.h.b16 %v130
    %v837 = vunpack.c.l.b16 %v131
    %v838 = vunpack.c.h.b16 %v131
    %v839 = vunpack.c.l.b16 %v132
    %v840 = vunpack.c.h.b16 %v132
    %v841 = vunpack.c.l.b16 %v133
    %v842 = vunpack.c.h.b16 %v133
    %v843 = vunpack.c.l.b16 %v134
    %v844 = vunpack.c.h.b16 %v134
    %v845 = vunpack.c.l.b16 %v135
    %v846 = vunpack.c.h.b16 %v135
    %v847 = vunpack.c.l.b16 %v136
    %v848 = vunpack.c.h.b16 %v136
    %v849 = vunpack.c.l.b16 %v137
    %v850 = vunpack.c.h.b16 %v137
    %v851 = vunpack.c.l.b16 %v138
    %v852 = vunpack.c.h.b16 %v138
    %v853 = vunpack.c.l.b16 %v139
    %v854 = vunpack.c.h.b16 %v139
    %v855 = vunpack.c.l.b16 %v140
    %v856 = vunpack.c.h.b16 %v140
    %v857 = vunpack.c.l.b16 %v141
    %v858 = vunpack.c.h.b16 %v141
    %v859 = vunpack.c.l.b16 %v142
    %v860 = vunpack.c.h.b16 %v142
    %v861 = vunpack.c.l.b16 %v143
    %v862 = vunpack.c.h.b16 %v143
    %v863 = vunpack.c.l.b16 %v144
    %v864 = vunpack.c.h.b16 %v144
    %v865 = vunpack.c.l.b16 %v145
    %v866 = vunpack.c.h.b16 %v145
    %v867 = vunpack.c.l.b16 %v146
    %v868 = vunpack.c.h.b16 %v146
    %v869 = vunpack.c.l.b16 %v147
    %v870 = vunpack.c.h.b16 %v147
    %v871 = vunpack.c.l.b16 %v148
    %v872 = vunpack.c.h.b16 %v148
    %v873 = vunpack.c.l.b16 %v149
    %v874 = vunpack.c.h.b16 %v149
    %v875 = vunpack.c.l.b16 %v150
    %v876 = vunpack.c.h.b16 %v150
    %v877 = vunpack.c.l.b16 %v151
    %v878 = vunpack.c.h.b16 %v151
    %v879 = vunpack.c.l.b16 %v152
    %v880 = vunpack.c.h.b16 %v152
    %v881 = vunpack.c.l.b16 %v153
    %v882 = vunpack.c.h.b16 %v153
    %v883 = vunpack.c.l.b16 %v154
    %v884 = vunpack.c.h.b16 %v154
    %v885 = vunpack.c.l.b16 %v155
    %v886 = vunpack.c.h.b16 %v155
    %v887 = vunpack.c.l.b16 %v156
    %v888 = vunpack.c.h.b16 %v156
    %v889 = vunpack.c.l.b16 %v157
    %v890 = vunpack.c.h.b16 %v157
    %v891 = vunpack.c.l.b16 %v158
    %v892 = vunpack.c.h.b16 %v158
    %v893 = vunpack.c.l.b16 %v159
    %v894 = vunpack.c.h.b16 %v159
    %v895 = vunpack.c.l.b16 %v160
    %v896 = vunpack.c.h.b16 %v160
    %v897 = vunpack.c.l.b16 %v161
    %v898 = vunpack.c.h.b16 %v161
    %v899 = vunpack.c.l.b16 %v162
    %v900 = vunpack.c.h.b16 %v162
    %v901 = vunpack.c.l.b16 %v163
    %v902 = vunpack.c.h.b16 %v163
    %v903 = vunpack.c.l.b16 %v164
    %v904 = vunpack.c.h.b16 %v164
    %v905 = vunpack.c.l.b16 %v165
    %v906 = vunpack.c.h.b16 %v165
    %v907 = vunpack.c.l.b16 %v166
    %v908 = vunpack.c.h.b16 %v166
    %v909 = vunpack.c.l.b16 %v167
    %v910 = vunpack.c.h.b16 %v167
    %v911 = vunpack.c.l.b16 %v168
    %v912 = vunpack.c.h.b16 %v168
    %v913 = vunpack.c.l.b16 %v169
    %v914 = vunpack.c.h.b16 %v169
    %v915 = vunpack.c.l.b16 %v170
    %v916 = vunpack.c.h.b16 %v170
    %v917 = vunpack.c.l.b16 %v171
    %v918 = vunpack.c.h.b16 %v171
    %v919 = vunpack.c.l.b16 %v172
    %v920 = vunpack.c.h.b16 %v172
    %v921 = vunpack.c.l.b16 %v173
    %v922 = vunpack.c.h.b16 %v173
    %v923 = vunpack.c.l.b16 %v174
    %v924 = vunpack.c.h.b16 %v174
    %v925 = vunpack.c.l.b16 %v175
    %v926 = vunpack.c.h.b16 %v175
    %v927 = vunpack.c.l.b16 %v176
    %v928 = vunpack.c.h.b16 %v176
    %v929 = vunpack.c.l.b16 %v177
    %v930 = vunpack.c.h.b16 %v177
    %v931 = vunpack.c.l.b16 %v178
    %v932 = vunpack.c.h.b16 %v178
    %v933 = vunpack.c.l.b16 %v179
    %v934 = vunpack.c.h.b16 %v179
    %v935 = vunpack.c.l.b16 %v180
    %v936 = vunpack.c.h.b16 %v180
    %v937 = vunpack.c.l.b16 %v181
    %v938 = vunpack.c.h.b16 %v181
    %v939 = vunpack.c.l.b16 %v182
    %v940 = vunpack.c.h.b16 %v182
    %v941 = vunpack.c.l.b16 %v183
    %v942 = vunpack.c.h.b16 %v183
    %v943 = vunpack.c.l.b16 %v184
    %v944 = vunpack.c.h.b16 %v184
    %v945 = vunpack.c.l.b16 %v185
    %v946 = vunpack.c.h.b16 %v185
    %v947 = vunpack.c.l.b16 %v186
    %v948 = vunpack.c.h.b16 %v186
    %v949 = vunpack.c.l.b16 %v187
    %v950 = vunpack.c.h.b16 %v187
    %v951 = vunpack.c.l.b16 %v188
    %v952 = vunpack.c.h.b16 %v188
    %v953 = vunpack.c.l.b16 %v189
    %v954 = vunpack.c.h.b16 %v189
    %v955 = vunpack.c.l.b16 %v190
    %v956 = vunpack.c.h.b16 %v190
    %v957 = vunpack.c.l.b16 %v191
    %v958 = vunpack.c.h.b16 %v191
    %v959 = vunpack.c.l.b16 %v192
    %v960 = vunpack.c.h.b16 %v192
    %v961 = vunpack.c.l.b16 %v193
    %v962 = vunpack.c.h.b16 %v193
    %v963 = vunpack.c.l.b16 %v194
    %v964 = vunpack.c.h.b16 %v194
    %v965 = vunpack.c.l.b16 %v195
    %v966 = vunpack.c.h.b16 %v195
    %v967 = vunpack.c.l.b16 %v196
    %v968 = vunpack.c.h.b16 %v196
    %v969 = vunpack.c.l.b16 %v197
    %v970 = vunpack.c.h.b16 %v197
    %v971 = vunpack.c.l.b16 %v198
    %v972 = vunpack.c.h.b16 %v198
    %v973 = vunpack.c.l.b16 %v199
    %v974 = vunpack.c.h.b16 %v199
    %v975 = vunpack.c.l.b16 %v200
    %v976 = vunpack.c.h.b16 %v200
    %v977 = vunpack.c.l.b16 %v201
    %v978 = vunpack.c.h.b16 %v201
    %v979 = vunpack.c.l.b16 %v202
    %v980 = vunpack.c.h.b16 %v202
    %v981 = vunpack.c.l.b16 %v203
    %v982 = vunpack.c.h.b16 %v203
    %v983 = vunpack.c.l.b16 %v204
    %v984 = vunpack.c.h.b16 %v204
    %v985 = vunpack.c.l.b16 %v205
    %v986 = vunpack.c.h.b16 %v205
    %v987 = vunpack.c.l.b16 %v206
    %v988 = vunpack.c.h.b16 %v206
    %v989 = vunpack.c.l.b16 %v207
    %v990 = vunpack.c.h.b16 %v207
    %v991 = vunpack.c.l.b16 %v208
    %v992 = vunpack.c.h.b16 %v208
    %v993 = vunpack.c.l.b16 %v209
    %v994 = vunpack.c.h.b16 %v209
    %v995 = vunpack.c.l.b16 %v210
    %v996 = vunpack.c.h.b16 %v210
    %v997 = vunpack.c.l.b16 %v211
    %v998 = vunpack.c.h.b16 %v211
    %v999 = vunpack.c.l.b16 %v212
    %v1000 = vunpack.c.h.b16 %v212
    %v1001 = vunpack.c.l.b16 %v213
    %v1002 = vunpack.c.h.b16 %v213
    %v1003 = vunpack.c.l.b16 %v214
    %v1004 = vunpack.c.h.b16 %v214
    %v1005 = vunpack.c.l.b16 %v215
    %v1006 = vunpack.c.h.b16 %v215
    %v1007 = vunpack.c.l.b16 %v216
    %v1008 = vunpack.c.h.b16 %v216
    %v1009 = vunpack.c.l.b16 %v217
    %v1010 = vunpack.c.h.b16 %v217
    %v1011 = vunpack.c.l.b16 %v218
    %v1012 = vunpack.c.h.b16 %v218
    %v1013 = vunpack.c.l.b16 %v219
    %v1014 = vunpack.c.h.b16 %v219
    %v1015 = vunpack.c.l.b16 %v220
    %v1016 = vunpack.c.h.b16 %v220
    %v1017 = vunpack.c.l.b16 %v221
    %v1018 = vunpack.c.h.b16 %v221
    %v1019 = vunpack.c.l.b16 %v222
    %v1020 = vunpack.c.h.b16 %v222
    %v1021 = vunpack.c.l.b16 %v223
    %v1022 = vunpack.c.h.b16 %v223
    %v1023 = vunpack.c.l.b16 %v224
    %v1024 = vunpack.c.h.b16 %v224
    %v1025 = vunpack.c.l.b16 %v225
    %v1026 = vunpack.c.h.b16 %v225
    %v1027 = vunpack.c.l.b16 %v226
    %v1028 = vunpack.c.h.b16 %v226
    %v1029 = vunpack.c.l.b16 %v227
    %v1030 = vunpack.c.h.b16 %v227
    %v1031 = vunpack.c.l.b16 %v228
    %v1032 = vunpack.c.h.b16 %v228
    %v1033 = vunpack.c.l.b16 %v229
    %v1034 = vunpack.c.h.b16 %v229
    %v1035 = vunpack.c.l.b16 %v230
    %v1036 = vunpack.c.h.b16 %v230
    %v1037 = vunpack.c.l.b16 %v231
    %v1038 = vunpack.c.h.b16 %v231
    %v1039 = vunpack.c.l.b16 %v232
    %v1040 = vunpack.c.h.b16 %v232
    %v1041 = vunpack.c.l.b16 %v233
    %v1042 = vunpack.c.h.b16 %v233
    %v1043 = vunpack.c.l.b16 %v234
    %v1044 = vunpack.c.h.b16 %v234
    %v1045 = vunpack.c.l.b16 %v235
    %v1046 = vunpack.c.h.b16 %v235
    %v1047 = vunpack.c.l.b16 %v236
    %v1048 = vunpack.c.h.b16 %v236
    %v1049 = vunpack.c.l.b16 %v237
    %v1050 = vunpack.c.h.b16 %v237
    %v1051 = vunpack.c.l.b16 %v238
    %v1052 = vunpack.c.h.b16 %v238
    %v1053 = vunpack.c.l.b16 %v239
    %v1054 = vunpack.c.h.b16 %v239
    %v1055 = vunpack.c.l.b16 %v240
    %v1056 = vunpack.c.h.b16 %v240
    %v1057 = vunpack.c.l.b16 %v241
    %v1058 = vunpack.c.h.b16 %v241
    %v1059 = vunpack.c.l.b16 %v242
    %v1060 = vunpack.c.h.b16 %v242
    %v1061 = vunpack.c.l.b16 %v243
    %v1062 = vunpack.c.h.b16 %v243
    %v1063 = vunpack.c.l.b16 %v244
    %v1064 = vunpack.c.h.b16 %v244
    %v1065 = vunpack.c.l.b16 %v245
    %v1066 = vunpack.c.h.b16 %v245
    %v1067 = vunpack.c.l.b16 %v246
    %v1068 = vunpack.c.h.b16 %v246
    %v1069 = vunpack.c.l.b16 %v247
    %v1070 = vunpack.c.h.b16 %v247
    %v1071 = vunpack.c.l.b16 %v248
    %v1072 = vunpack.c.h.b16 %v248
    %v1073 = vunpack.c.l.b16 %v249
    %v1074 = vunpack.c.h.b16 %v249
    %v1075 = vunpack.c.l.b16 %v250
    %v1076 = vunpack.c.h.b16 %v250
    %v1077 = vunpack.c.l.b16 %v251
    %v1078 = vunpack.c.h.b16 %v251
    %v1079 = vunpack.c.l.b16 %v252
    %v1080 = vunpack.c.h.b16 %v252
    %v1081 = vunpack.c.l.b16 %v253
    %v1082 = vunpack.c.h.b16 %v253
    %v1083 = vunpack.c.l.b16 %v254
    %v1084 = vunpack.c.h.b16 %v254
    %v1085 = vunpack.c.l.b16 %v255
    %v1086 = vunpack.c.h.b16 %v255
    %v1087 = vunpack.c.l.b16 %v256
    %v1088 = vunpack.c.h.b16 %v256
    %v1089 = vunpack.c.l.b16 %v257
    %v1090 = vunpack.c.h.b16 %v257
    %v1091 = vunpack.c.l.b16 %v258
    %v1092 = vunpack.c.h.b16 %v258
    %v1093 = vunpack.c.l.b16 %v259
    %v1094 = vunpack.c.h.b16 %v259
    %v1095 = vunpack.c.l.b16 %v260
    %v1096 = vunpack.c.h.b16 %v260
    %v1097 = vunpack.c.l.b16 %v261
    %v1098 = vunpack.c.h.b16 %v261
    %v1099 = vunpack.c.l.b16 %v262
    %v1100 = vunpack.c.h.b16 %v262
    %v1101 = vunpack.c.l.b16 %v263
    %v1102 = vunpack.c.h.b16 %v263
    %v1103 = vunpack.c.l.b16 %v264
    %v1104 = vunpack.c.h.b16 %v264
    %v1105 = vunpack.c.l.b16 %v265
    %v1106 = vunpack.c.h.b16 %v265
    %v1107 = vunpack.c.l.b16 %v266
    %v1108 = vunpack.c.h.b16 %v266
    %v1109 = vunpack.c.l.b16 %v267
    %v1110 = vunpack.c.h.b16 %v267
    %v1111 = vunpack.c.l.b16 %v268
    %v1112 = vunpack.c.h.b16 %v268
    %v1113 = vunpack.c.l.b16 %v269
    %v1114 = vunpack.c.h.b16 %v269
    %v1115 = vunpack.c.l.b16 %v270
    %v1116 = vunpack.c.h.b16 %v270
    %v1117 = vunpack.c.l.b16 %v271
    %v1118 = vunpack.c.h.b16 %v271
    %v1119 = vunpack.c.l.b16 %v272
    %v1120 = vunpack.c.h.b16 %v272
    %v1121 = vunpack.c.l.b16 %v273
    %v1122 = vunpack.c.h.b16 %v273
    %v1123 = vunpack.c.l.b16 %v274
    %v1124 = vunpack.c.h.b16 %v274
    %v1125 = vunpack.c.l.b16 %v275
    %v1126 = vunpack.c.h.b16 %v275
    %v1127 = vunpack.c.l.b16 %v276
    %v1128 = vunpack.c.h.b16 %v276
    %v1129 = vunpack.c.l.b16 %v277
    %v1130 = vunpack.c.h.b16 %v277
    %v1131 = vunpack.c.l.b16 %v278
    %v1132 = vunpack.c.h.b16 %v278
    %v1133 = vunpack.c.l.b16 %v279
    %v1134 = vunpack.c.h.b16 %v279
    %v1135 = vunpack.c.l.b16 %v280
    %v1136 = vunpack.c.h.b16 %v280
    %v1137 = vunpack.c.l.b16 %v281
    %v1138 = vunpack.c.h.b16 %v281
    %v1139 = vunpack.c.l.b16 %v282
    %v1140 = vunpack.c.h.b16 %v282
    %v1141 = vunpack.c.l.b16 %v283
    %v1142 = vunpack.c.h.b16 %v283
    %v1143 = vunpack.c.l.b16 %v284
    %v1144 = vunpack.c.h.b16 %v284
    %v1145 = vunpack.c.l.b16 %v285
    %v1146 = vunpack.c.h.b16 %v285
    %v1147 = vunpack.c.l.b16 %v286
    %v1148 = vunpack.c.h.b16 %v286
    %v1149 = vunpack.c.l.b16 %v287
    %v1150 = vunpack.c.h.b16 %v287
    %v1151 = vunpack.c.l.b16 %v288
    %v1152 = vunpack.c.h.b16 %v288
    %v1153 = vunpack.c.l.b16 %v289
    %v1154 = vunpack.c.h.b16 %v289
    %v1155 = vunpack.c.l.b16 %v290
    %v1156 = vunpack.c.h.b16 %v290
    %v1157 = vunpack.c.l.b16 %v291
    %v1158 = vunpack.c.h.b16 %v291
    %v1159 = vunpack.c.l.b16 %v292
    %v1160 = vunpack.c.h.b16 %v292
    %v1161 = vunpack.c.l.b16 %v293
    %v1162 = vunpack.c.h.b16 %v293
    %v1163 = vunpack.c.l.b16 %v294
    %v1164 = vunpack.c.h.b16 %v294
    %v1165 = vunpack.c.l.b16 %v295
    %v1166 = vunpack.c.h.b16 %v295
    %v1167 = vunpack.c.l.b16 %v296
    %v1168 = vunpack.c.h.b16 %v296
    %v1169 = vunpack.c.l.b16 %v297
    %v1170 = vunpack.c.h.b16 %v297
    %v1171 = vunpack.c.l.b16 %v298
    %v1172 = vunpack.c.h.b16 %v298
    %v1173 = vunpack.c.l.b16 %v299
    %v1174 = vunpack.c.h.b16 %v299
    %v1175 = vunpack.c.l.b16 %v300
    %v1176 = vunpack.c.h.b16 %v300
    %v1177 = vunpack.c.l.b16 %v301
    %v1178 = vunpack.c.h.b16 %v301
    %v1179 = vunpack.c.l.b16 %v302
    %v1180 = vunpack.c.h.b16 %v302
    %v1181 = vunpack.c.l.b16 %v303
    %v1182 = vunpack.c.h.b16 %v303
    %v1183 = vunpack.c.l.b16 %v304
    %v1184 = vunpack.c.h.b16 %v304
    %v1185 = vunpack.c.l.b16 %v305
    %v1186 = vunpack.c.h.b16 %v305
    %v1187 = vunpack.c.l.b16 %v306
    %v1188 = vunpack.c.h.b16 %v306
    %v1189 = vunpack.c.l.b16 %v307
    %v1190 = vunpack.c.h.b16 %v307
    %v1191 = vunpack.c.l.b16 %v308
    %v1192 = vunpack.c.h.b16 %v308
    %v1193 = vunpack.c.l.b16 %v309
    %v1194 = vunpack.c.h.b16 %v309
    %v1195 = vunpack.c.l.b16 %v310
    %v1196 = vunpack.c.h.b16 %v310
    %v1197 = vunpack.c.l.b16 %v311
    %v1198 = vunpack.c.h.b16 %v311
    %v1199 = vunpack.c.l.b16 %v312
    %v1200 = vunpack.c.h.b16 %v312
    %v1201 = vunpack.c.l.b16 %v313
    %v1202 = vunpack.c.h.b16 %v313
    %v1203 = vunpack.c.l.b16 %v314
    %v1204 = vunpack.c.h.b16 %v314
    %v1205 = vunpack.c.l.b16 %v315
    %v1206 = vunpack.c.h.b16 %v315
    %v1207 = vunpack.c.l.b16 %v316
    %v1208 = vunpack.c.h.b16 %v316
    %v1209 = vunpack.c.l.b16 %v317
    %v1210 = vunpack.c.h.b16 %v317
    %v1211 = vunpack.c.l.b16 %v318
    %v1212 = vunpack.c.h.b16 %v318
    %v1213 = vunpack.c.l.b16 %v319
    %v1214 = vunpack.c.h.b16 %v319
    %v1215 = vunpack.c.l.b16 %v320
    %v1216 = vunpack.c.h.b16 %v320
    %v1217 = vpack.c.b16 %v647, %v641
    %v1218 = vpack.c.b16 %v648, %v642
    %v1219 = vpack.c.b16 %v649, %v643
    %v1220 = vpack.c.b16 %v650, %v644
    %v1221 = vpack.c.b16 %v651, %v645
    %v1222 = vpack.c.b16 %v652, %v646
    %v1223 = vpack.c.b16 %v659, %v653
    %v1224 = vpack.c.b16 %v660, %v654
    %v1225 = vpack.c.b16 %v661, %v655
    %v1226 = vpack.c.b16 %v662, %v656
    %v1227 = vpack.c.b16 %v663, %v657
    %v1228 = vpack.c.b16 %v664, %v658
    %v1229 = vpack.c.b16 %v671, %v665
    %v1230 = vpack.c.b16 %v672, %v666
    %v1231 = vpack.c.b16 %v673, %v667
    %v1232 = vpack.c.b16 %v674, %v668
    %v1233 = vpack.c.b16 %v675, %v669
    %v1234 = vpack.c.b16 %v676, %v670
    %v1235 = vpack.c.b16 %v683, %v677
    %v1236 = vpack.c.b16 %v684, %v678
    %v1237 = vpack.c.b16 %v685, %v679
    %v1238 = vpack.c.b16 %v686, %v680
    %v1239 = vpack.c.b16 %v687, %v681
    %v1240 = vpack.c.b16 %v688, %v682
    %v1241 = vpack.c.b16 %v695, %v689
    %v1242 = vpack.c.b16 %v696, %v690
    %v1243 = vpack.c.b16 %v697, %v691
    %v1244 = vpack.c.b16 %v698, %v692
    %v1245 = vpack.c.b16 %v699, %v693
    %v1246 = vpack.c.b16 %v700, %v694
    %v1247 = vpack.c.b16 %v707, %v701
    %v1248 = vpack.c.b16 %v708, %v702
    %v1249 = vpack.c.b16 %v709, %v703
    %v1250 = vpack.c.b16 %v710, %v704
    %v1251 = vpack.c.b16 %v711, %v705
    %v1252 = vpack.c.b16 %v712, %v706
    %v1253 = vpack.c.b16 %v719, %v713
    %v1254 = vpack.c.b16 %v720, %v714
    %v1255 = vpack.c.b16 %v721, %v715
    %v1256 = vpack.c.b16 %v722, %v716
    %v1257 = vpack.c.b16 %v723, %v717
    %v1258 = vpack.c.b16 %v724, %v718
    %v1259 = vpack.c.b16 %v731, %v725
    %v1260 = vpack.c.b16 %v732, %v726
    %v1261 = vpack.c.b16 %v733, %v727
    %v1262 = vpack.c.b16 %v734, %v728
    %v1263 = vpack.c.b16 %v735, %v729
    %v1264 = vpack.c.b16 %v736, %v730
    %v1265 = vpack.c.b16 %v743, %v737
    %v1266 = vpack.c.b16 %v744, %v738
    %v1267 = vpack.c.b16 %v745, %v739
    %v1268 = vpack.c.b16 %v746, %v740
    %v1269 = vpack.c.b16 %v747, %v741
    %v1270 = vpack.c.b16 %v748, %v742
    %v1271 = vpack.c.b16 %v755, %v749
    %v1272 = vpack.c.b16 %v756, %v750
    %v1273 = vpack.c.b16 %v757, %v751
    %v1274 = vpack.c.b16 %v758, %v752
    %v1275 = vpack.c.b16 %v759, %v753
    %v1276 = vpack.c.b16 %v760, %v754
    %v1277 = vpack.c.b16 %v767, %v761
    %v1278 = vpack.c.b16 %v768, %v762
    %v1279 = vpack.c.b16 %v769, %v763
    %v1280 = vpack.c.b16 %v770, %v764
    %v1281 = vpack.c.b16 %v771, %v765
    %v1282 = vpack.c.b16 %v772, %v766
    %v1283 = vpack.c.b16 %v779, %v773
    %v1284 = vpack.c.b16 %v780, %v774
    %v1285 = vpack.c.b16 %v781, %v775
    %v1286 = vpack.c.b16 %v782, %v776
    %v1287 = vpack.c.b16 %v783, %v777
    %v1288 = vpack.c.b16 %v784, %v778
    %v1289 = vpack.c.b16 %v791, %v785
    %v1290 = vpack.c.b16 %v792, %v786
    %v1291 = vpack.c.b16 %v793, %v787
    %v1292 = vpack.c.b16 %v794, %v788
    %v1293 = vpack.c.b16 %v795, %v789
    %v1294 = vpack.c.b16 %v796, %v790
    %v1295 = vpack.c.b16 %v803, %v797
    %v1296 = vpack.c.b16 %v804, %v798
    %v1297 = vpack.c.b16 %v805, %v799
    %v1298 = vpack.c.b16 %v806, %v800
    %v1299 = vpack.c.b16 %v807, %v801
    %v1300 = vpack.c.b16 %v808, %v802
    %v1301 = vpack.c.b16 %v815, %v809
    %v1302 = vpack.c.b16 %v816, %v810
    %v1303 = vpack.c.b16 %v817, %v811
    %v1304 = vpack.c.b16 %v818, %v812
    %v1305 = vpack.c.b16 %v819, %v813
    %v1306 = vpack.c.b16 %v820, %v814
    %v1307 = vpack.c.b16 %v827, %v821
    %v1308 = vpack.c.b16 %v828, %v822
    %v1309 = vpack.c.b16 %v829, %v823
    %v1310 = vpack.c.b16 %v830, %v824
    %v1311 = vpack.c.b16 %v831, %v825
    %v1312 = vpack.c.b16 %v832, %v826
    %v1313 = vpack.c.b16 %v839, %v833
    %v1314 = vpack.c.b16 %v840, %v834
    %v1315 = vpack.c.b16 %v841, %v835
    %v1316 = vpack.c.b16 %v842, %v836
    %v1317 = vpack.c.b16 %v843, %v837
    %v1318 = vpack.c.b16 %v844, %v838
    %v1319 = vpack.c.b16 %v851, %v845
    %v1320 = vpack.c.b16 %v852, %v846
    %v1321 = vpack.c.b16 %v853, %v847
    %v1322 = vpack.c.b16 %v854, %v848
    %v1323 = vpack.c.b16 %v855, %v849
    %v1324 = vpack.c.b16 %v856, %v850
    %v1325 = vpack.c.b16 %v863, %v857
    %v1326 = vpack.c.b16 %v864, %v858
    %v1327 = vpack.c.b16 %v865, %v859
    %v1328 = vpack.c.b16 %v866, %v860
    %v1329 = vpack.c.b16 %v867, %v861
    %v1330 = vpack.c.b16 %v868, %v862
    %v1331 = vpack.c.b16 %v875, %v869
    %v1332 = vpack.c.b16 %v876, %v870
    %v1333 = vpack.c.b16 %v877, %v871
    %v1334 = vpack.c.b16 %v878, %v872
    %v1335 = vpack.c.b16 %v879, %v873
    %v1336 = vpack.c.b16 %v880, %v874
    %v1337 = vpack.c.b16 %v887, %v881
    %v1338 = vpack.c.b16 %v888, %v882
    %v1339 = vpack.c.b16 %v889, %v883
    %v1340 = vpack.c.b16 %v890, %v884
    %v1341 = vpack.c.b16 %v891, %v885
    %v1342 = vpack.c.b16 %v892, %v886
    %v1343 = vpack.c.b16 %v899, %v893
    %v1344 = vpack.c.b16 %v900, %v894
    %v1345 = vpack.c.b16 %v901, %v895
    %v1346 = vpack.c.b16 %v902, %v896
    %v1347 = vpack.c.b16 %v903, %v897
    %v1348 = vpack.c.b16 %v904, %v898
    %v1349 = vpack.c.b16 %v911, %v905
    %v1350 = vpack.c.b16 %v912, %v906
    %v1351 = vpack.c.b16 %v913, %v907
    %v1352 = vpack.c.b16 %v914, %v908
    %v1353 = vpack.c.b16 %v915, %v909
    %v1354 = vpack.c.b16 %v916, %v910
    %v1355 = vpack.c.b16 %v923, %v917
    %v1356 = vpack.c.b16 %v924, %v918
    %v1357 = vpack.c.b16 %v925, %v919
    %v1358 = vpack.c.b16 %v926, %v920
    %v1359 = vpack.c.b16 %v927, %v921
    %v1360 = vpack.c.b16 %v928, %v922
    %v1361 = vpack.c.b16 %v935, %v929
    %v1362 = vpack.c.b16 %v936, %v930
    %v1363 = vpack.c.b16 %v937, %v931
    %v1364 = vpack.c.b16 %v938, %v932
    %v1365 = vpack.c.b16 %v939, %v933
    %v1366 = vpack.c.b16 %v940, %v934
    %v1367 = vpack.c.b16 %v947, %v941
    %v1368 = vpack.c.b16 %v948, %v942
    %v1369 = vpack.c.b16 %v949, %v943
    %v1370 = vpack.c.b16 %v950, %v944
    %v1371 = vpack.c.b16 %v951, %v945
    %v1372 = vpack.c.b16 %v952, %v946
    %v1373 = vpack.c.b16 %v959, %v953
    %v1374 = vpack.c.b16 %v960, %v954
    %v1375 = vpack.c.b16 %v961, %v955
    %v1376 = vpack.c.b16 %v962, %v956
    %v1377 = vpack.c.b16 %v963, %v957
    %v1378 = vpack.c.b16 %v964, %v958
    %v1379 = vpack.c.b16 %v971, %v965
    %v1380 = vpack.c.b16 %v972, %v966
    %v1381 = vpack.c.b16 %v973, %v967
    %v1382 = vpack.c.b16 %v974, %v968
    %v1383 = vpack.c.b16 %v975, %v969
    %v1384 = vpack.c.b16 %v976, %v970
    %v1385 = vpack.c.b16 %v983, %v977
    %v1386 = vpack.c.b16 %v984, %v978
    %v1387 = vpack.c.b16 %v985, %v979
    %v1388 = vpack.c.b16 %v986, %v980
    %v1389 = vpack.c.b16 %v987, %v981
    %v1390 = vpack.c.b16 %v988, %v982
    %v1391 = vpack.c.b16 %v995, %v989
    %v1392 = vpack.c.b16 %v996, %v990
    %v1393 = vpack.c.b16 %v997, %v991
    %v1394 = vpack.c.b16 %v998, %v992
    %v1395 = vpack.c.b16 %v999, %v993
    %v1396 = vpack.c.b16 %v1000, %v994
    %v1397 = vpack.c.b16 %v1007, %v1001
    %v1398 = vpack.c.b16 %v1008, %v1002
    %v1399 = vpack.c.b16 %v1009, %v1003
    %v1400 = vpack.c.b16 %v1010, %v1004
    %v1401 = vpack.c.b16 %v1011, %v1005
    %v1402 = vpack.c.b16 %v1012, %v1006
    %v1403 = vpack.c.b16 %v1019, %v1013
    %v1404 = vpack.c.b16 %v1020, %v1014
    %v1405 = vpack.c.b16 %v1021, %v1015
    %v1406 = vpack.c.b16 %v1022, %v1016
    %v1407 = vpack.c.b16 %v1023, %v1017
    %v1408 = vpack.c.b16 %v1024, %v1018
    %v1409 = vpack.c.b16 %v1031, %v1025
    %v1410 = vpack.c.b16 %v1032, %v1026
    %v1411 = vpack.c.b16 %v1033, %v1027
    %v1412 = vpack.c.b16 %v1034, %v1028
    %v1413 = vpack.c.b16 %v1035, %v1029
    %v1414 = vpack.c.b16 %v1036, %v1030
    %v1415 = vpack.c.b16 %v1043, %v1037
    %v1416 = vpack.c.b16 %v1044, %v1038
    %v1417 = vpack.c.b16 %v1045, %v1039
    %v1418 = vpack.c.b16 %v1046, %v1040
    %v1419 = vpack.c.b16 %v1047, %v1041
    %v1420 = vpack.c.b16 %v1048, %v1042
    %v1421 = vpack.c.b16 %v1055, %v1049
    %v1422 = vpack.c.b16 %v1056, %v1050
    %v1423 = vpack.c.b16 %v1057, %v1051
    %v1424 = vpack.c.b16 %v1058, %v1052
    %v1425 = vpack.c.b16 %v1059, %v1053
    %v1426 = vpack.c.b16 %v1060, %v1054
    %v1427 = vpack.c.b16 %v1067, %v1061
    %v1428 = vpack.c.b16 %v1068, %v1062
    %v1429 = vpack.c.b16 %v1069, %v1063
    %v1430 = vpack.c.b16 %v1070, %v1064
    %v1431 = vpack.c.b16 %v1071, %v1065
    %v1432 = vpack.c.b16 %v1072, %v1066
    %v1433 = vpack.c.b16 %v1079, %v1073
    %v1434 = vpack.c.b16 %v1080, %v1074
    %v1435 = vpack.c.b16 %v1081, %v1075
    %v1436 = vpack.c.b16 %v1082, %v1076
    %v1437 = vpack.c.b16 %v1083, %v1077
    %v1438 = vpack.c.b16 %v1084, %v1078
    %v1439 = vpack.c.b16 %v1091, %v1085
    %v1440 = vpack.c.b16 %v1092, %v1086
    %v1441 = vpack.c.b16 %v1093, %v1087
    %v1442 = vpack.c.b16 %v1094, %v1088
    %v1443 = vpack.c.b16 %v1095, %v1089
    %v1444 = vpack.c.b16 %v1096, %v1090
    %v1445 = vpack.c.b16 %v1103, %v1097
    %v1446 = vpack.c.b16 %v1104, %v1098
    %v1447 = vpack.c.b16 %v1105, %v1099
    %v1448 = vpack.c.b16 %v1106, %v1100
    %v1449 = vpack.c.b16 %v1107, %v1101
    %v1450 = vpack.c.b16 %v1108, %v1102
    %v1451 = vpack.c.b16 %v1115, %v1109
    %v1452 = vpack.c.b16 %v1116, %v1110
    %v1453 = vpack.c.b16 %v1117, %v1111
    %v1454 = vpack.c.b16 %v1118, %v1112
    %v1455 = vpack.c.b16 %v1119, %v1113
    %v1456 = vpack.c.b16 %v1120, %v1114
    %v1457 = vpack.c.b16 %v1127, %v1121
    %v1458 = vpack.c.b16 %v1128, %v1122
    %v1459 = vpack.c.b16 %v1129, %v1123
    %v1460 = vpack.c.b16 %v1130, %v1124
    %v1461 = vpack.c.b16 %v1131, %v1125
    %v1462 = vpack.c.b16 %v1132, %v1126
    %v1463 = vpack.c.b16 %v1139, %v1133
    %v1464 = vpack.c.b16 %v1140, %v1134
    %v1465 = vpack.c.b16 %v1141, %v1135
    %v1466 = vpack.c.b16 %v1142, %v1136
    %v1467 = vpack.c.b16 %v1143, %v1137
    %v1468 = vpack.c.b16 %v1144, %v1138
    %v1469 = vpack.c.b16 %v1151, %v1145
    %v1470 = vpack.c.b16 %v1152, %v1146
    %v1471 = vpack.c.b16 %v1153, %v1147
    %v1472 = vpack.c.b16 %v1154, %v1148
    %v1473 = vpack.c.b16 %v1155, %v1149
    %v1474 = vpack.c.b16 %v1156, %v1150
    %v1475 = vpack.c.b16 %v1163, %v1157
    %v1476 = vpack.c.b16 %v1164, %v1158
    %v1477 = vpack.c.b16 %v1165, %v1159
    %v1478 = vpack.c.b16 %v1166, %v1160
    %v1479 = vpack.c.b16 %v1167, %v1161
    %v1480 = vpack.c.b16 %v1168, %v1162
    %v1481 = vpack.c.b16 %v1175, %v1169
    %v1482 = vpack.c.b16 %v1176, %v1170
    %v1483 = vpack.c.b16 %v1177, %v1171
    %v1484 = vpack.c.b16 %v1178, %v1172
    %v1485 = vpack.c.b16 %v1179, %v1173
    %v1486 = vpack.c.b16 %v1180, %v1174
    %v1487 = vpack.c.b16 %v1187, %v1181
    %v1488 = vpack.c.b16 %v1188, %v1182
    %v1489 = vpack.c.b16 %v1189, %v1183
    %v1490 = vpack.c.b16 %v1190, %v1184
    %v1491 = vpack.c.b16 %v1191, %v1185
    %v1492 = vpack.c.b16 %v1192, %v1186
    %v1493 = vpack.c.b16 %v1199, %v1193
    %v1494 = vpack.c.b16 %v1200, %v1194
    %v1495 = vpack.c.b16 %v1201, %v1195
    %v1496 = vpack.c.b16 %v1202, %v1196
    %v1497 = vpack.c.b16 %v1203, %v1197
    %v1498 = vpack.c.b16 %v1204, %v1198
    %v1499 = vpack.c.b16 %v1211, %v1205
    %v1500 = vpack.c.b16 %v1212, %v1206
    %v1501 = vpack.c.b16 %v1213, %v1207
    %v1502 = vpack.c.b16 %v1214, %v1208
    %v1503 = vpack.c.b16 %v1215, %v1209
    %v1504 = vpack.c.b16 %v1216, %v1210
    %1793 = vmatprep.subr.bf16.mxu0 %v1218
    %1794 = vmatpush1.bf16.msra.mxu0 %v1217
    %1795 = vmatprep.subr.bf16.mxu0 %v1224
    %1796 = vmatpush1.bf16.msra.mxu0 %v1223
    %1797 = vmatprep.subr.bf16.mxu0 %v1230
    %1798 = vmatpush1.bf16.msra.mxu0 %v1229
    %1799 = vmatprep.subr.bf16.mxu0 %v1236
    %1800 = vmatpush1.bf16.msra.mxu0 %v1235
    %1801 = vmatprep.subr.bf16.mxu0 %v1242
    %1802 = vmatpush1.bf16.msra.mxu0 %v1241
    %1803 = vmatprep.subr.bf16.mxu0 %v1248
    %1804 = vmatpush1.bf16.msra.mxu0 %v1247
    %1805 = vmatprep.subr.bf16.mxu0 %v1254
    %1806 = vmatpush1.bf16.msra.mxu0 %v1253
    %1807 = vmatprep.subr.bf16.mxu0 %v1260
    %1808 = vmatpush1.bf16.msra.mxu0 %v1259
    %1809 = vmatprep.subr.bf16.mxu0 %v1266
    %1810 = vmatpush1.bf16.msra.mxu0 %v1265
    %1811 = vmatprep.subr.bf16.mxu0 %v1272
    %1812 = vmatpush1.bf16.msra.mxu0 %v1271
    %1813 = vmatprep.subr.bf16.mxu0 %v1278
    %1814 = vmatpush1.bf16.msra.mxu0 %v1277
    %1815 = vmatprep.subr.bf16.mxu0 %v1284
    %1816 = vmatpush1.bf16.msra.mxu0 %v1283
    %1817 = vmatprep.subr.bf16.mxu0 %v1290
    %1818 = vmatpush1.bf16.msra.mxu0 %v1289
    %1819 = vmatprep.subr.bf16.mxu0 %v1296
    %1820 = vmatpush1.bf16.msra.mxu0 %v1295
    %1821 = vmatprep.subr.bf16.mxu0 %v1302
    %1822 = vmatpush1.bf16.msra.mxu0 %v1301
    %1823 = vmatprep.subr.bf16.mxu0 %v1308
    %1824 = vmatpush1.bf16.msra.mxu0 %v1307
    %1825 = vmatprep.mubr.bf16.mxu0 %v28
    %1826 = vmatmul.mubr.bf16.gmra.mrb[0].mxu0 %v27
    %v1827 = vpop.f32.mrb[0].mxu0
    %v1828 = vadd.f32 %v326, %v1827
    %v1829 = vpop.f32.mrb[0].mxu0
    %v1830 = vadd.f32 %v330, %v1829
    %v1831 = vpop.f32.mrb[0].mxu0
    %v1832 = vpop.f32.mrb[0].mxu0
    %1833 = vdwg.mxu0
    %1834 = vmatprep.subr.bf16.mxu0 %v1314
    %1835 = vmatpush1.bf16.msra.mxu0 %v1313
    %1836 = vmatprep.subr.bf16.mxu0 %v1320
    %1837 = vmatpush1.bf16.msra.mxu0 %v1319
    %1838 = vmatprep.subr.bf16.mxu0 %v1326
    %1839 = vmatpush1.bf16.msra.mxu0 %v1325
    %1840 = vmatprep.subr.bf16.mxu0 %v1332
    %1841 = vmatpush1.bf16.msra.mxu0 %v1331
    %1842 = vmatprep.subr.bf16.mxu0 %v1338
    %1843 = vmatpush1.bf16.msra.mxu0 %v1337
    %1844 = vmatprep.subr.bf16.mxu0 %v1344
    %1845 = vmatpush1.bf16.msra.mxu0 %v1343
    %1846 = vmatprep.subr.bf16.mxu0 %v1350
    %1847 = vmatpush1.bf16.msra.mxu0 %v1349
    %1848 = vmatprep.subr.bf16.mxu0 %v1356
    %1849 = vmatpush1.bf16.msra.mxu0 %v1355
    %1850 = vmatprep.subr.bf16.mxu0 %v1362
    %1851 = vmatpush1.bf16.msra.mxu0 %v1361
    %1852 = vmatprep.subr.bf16.mxu0 %v1368
    %1853 = vmatpush1.bf16.msra.mxu0 %v1367
    %1854 = vmatprep.subr.bf16.mxu0 %v1374
    %1855 = vmatpush1.bf16.msra.mxu0 %v1373
    %1856 = vmatprep.subr.bf16.mxu0 %v1380
    %1857 = vmatpush1.bf16.msra.mxu0 %v1379
    %1858 = vmatprep.subr.bf16.mxu0 %v1386
    %1859 = vmatpush1.bf16.msra.mxu0 %v1385
    %1860 = vmatprep.subr.bf16.mxu0 %v1392
    %1861 = vmatpush1.bf16.msra.mxu0 %v1391
    %1862 = vmatprep.subr.bf16.mxu0 %v1398
    %1863 = vmatpush1.bf16.msra.mxu0 %v1397
    %1864 = vmatprep.subr.bf16.mxu0 %v1404
    %1865 = vmatpush1.bf16.msra.mxu0 %v1403
    %1866 = vmatprep.mubr.bf16.mxu0 %v30
    %1867 = vmatmul.mubr.bf16.gmra.mrb[0].mxu0 %v29
    %v1868 = vpop.f32.mrb[0].mxu0
    %v1869 = vadd.f32 %v1828, %v1868
    %v1870 = vpop.f32.mrb[0].mxu0
    %v1871 = vadd.f32 %v1830, %v1870
    %v1872 = vpop.f32.mrb[0].mxu0
    %v1873 = vpop.f32.mrb[0].mxu0
    %1874 = vdwg.mxu0
    %1875 = vmatprep.subr.bf16.mxu0 %v1410
    %1876 = vmatpush1.bf16.msra.mxu0 %v1409
    %1877 = vmatprep.subr.bf16.mxu0 %v1416
    %1878 = vmatpush1.bf16.msra.mxu0 %v1415
    %1879 = vmatprep.subr.bf16.mxu0 %v1422
    %1880 = vmatpush1.bf16.msra.mxu0 %v1421
    %1881 = vmatprep.subr.bf16.mxu0 %v1428
    %1882 = vmatpush1.bf16.msra.mxu0 %v1427
    %1883 = vmatprep.subr.bf16.mxu0 %v1434
    %1884 = vmatpush1.bf16.msra.mxu0 %v1433
    %1885 = vmatprep.subr.bf16.mxu0 %v1440
    %1886 = vmatpush1.bf16.msra.mxu0 %v1439
    %1887 = vmatprep.subr.bf16.mxu0 %v1446
    %1888 = vmatpush1.bf16.msra.mxu0 %v1445
    %1889 = vmatprep.subr.bf16.mxu0 %v1452
    %1890 = vmatpush1.bf16.msra.mxu0 %v1451
    %1891 = vmatprep.subr.bf16.mxu0 %v1458
    %1892 = vmatpush1.bf16.msra.mxu0 %v1457
    %1893 = vmatprep.subr.bf16.mxu0 %v1464
    %1894 = vmatpush1.bf16.msra.mxu0 %v1463
    %1895 = vmatprep.subr.bf16.mxu0 %v1470
    %1896 = vmatpush1.bf16.msra.mxu0 %v1469
    %1897 = vmatprep.subr.bf16.mxu0 %v1476
    %1898 = vmatpush1.bf16.msra.mxu0 %v1475
    %1899 = vmatprep.subr.bf16.mxu0 %v1482
    %1900 = vmatpush1.bf16.msra.mxu0 %v1481
    %1901 = vmatprep.subr.bf16.mxu0 %v1488
    %1902 = vmatpush1.bf16.msra.mxu0 %v1487
    %1903 = vmatprep.subr.bf16.mxu0 %v1494
    %1904 = vmatpush1.bf16.msra.mxu0 %v1493
    %1905 = vmatprep.subr.bf16.mxu0 %v1500
    %1906 = vmatpush1.bf16.msra.mxu0 %v1499
    %1907 = vmatprep.mubr.bf16.mxu0 %v32
    %1908 = vmatmul.mubr.bf16.gmra.mrb[0].mxu0 %v31
    %v1909 = vpop.f32.mrb[0].mxu0
    %v1910 = vadd.f32 %v1869, %v1909
    %v1911 = vpop.f32.mrb[0].mxu0
    %v1912 = vadd.f32 %v1871, %v1911
    %v1913 = vpop.f32.mrb[0].mxu0
    %v1914 = vpop.f32.mrb[0].mxu0
    %1915 = vdwg.mxu0
    %1916 = vmatprep.subr.bf16.mxu0 %v1220
    %1917 = vmatpush1.bf16.msra.mxu0 %v1219
    %1918 = vmatprep.subr.bf16.mxu0 %v1226
    %1919 = vmatpush1.bf16.msra.mxu0 %v1225
    %1920 = vmatprep.subr.bf16.mxu0 %v1232
    %1921 = vmatpush1.bf16.msra.mxu0 %v1231
    %1922 = vmatprep.subr.bf16.mxu0 %v1238
    %1923 = vmatpush1.bf16.msra.mxu0 %v1237
    %1924 = vmatprep.subr.bf16.mxu0 %v1244
    %1925 = vmatpush1.bf16.msra.mxu0 %v1243
    %1926 = vmatprep.subr.bf16.mxu0 %v1250
    %1927 = vmatpush1.bf16.msra.mxu0 %v1249
    %1928 = vmatprep.subr.bf16.mxu0 %v1256
    %1929 = vmatpush1.bf16.msra.mxu0 %v1255
    %1930 = vmatprep.subr.bf16.mxu0 %v1262
    %1931 = vmatpush1.bf16.msra.mxu0 %v1261
    %1932 = vmatprep.subr.bf16.mxu0 %v1268
    %1933 = vmatpush1.bf16.msra.mxu0 %v1267
    %1934 = vmatprep.subr.bf16.mxu0 %v1274
    %1935 = vmatpush1.bf16.msra.mxu0 %v1273
    %1936 = vmatprep.subr.bf16.mxu0 %v1280
    %1937 = vmatpush1.bf16.msra.mxu0 %v1279
    %1938 = vmatprep.subr.bf16.mxu0 %v1286
    %1939 = vmatpush1.bf16.msra.mxu0 %v1285
    %1940 = vmatprep.subr.bf16.mxu0 %v1292
    %1941 = vmatpush1.bf16.msra.mxu0 %v1291
    %1942 = vmatprep.subr.bf16.mxu0 %v1298
    %1943 = vmatpush1.bf16.msra.mxu0 %v1297
    %1944 = vmatprep.subr.bf16.mxu0 %v1304
    %1945 = vmatpush1.bf16.msra.mxu0 %v1303
    %1946 = vmatprep.subr.bf16.mxu0 %v1310
    %1947 = vmatpush1.bf16.msra.mxu0 %v1309
    %1948 = vmatprep.mubr.bf16.mxu0 %v28
    %1949 = vmatmul.mubr.bf16.gmra.mrb[0].mxu0 %v27
    %v1950 = vpop.f32.mrb[0].mxu0
    %v1951 = vadd.f32 %v334, %v1950
    %v1952 = vpop.f32.mrb[0].mxu0
    %v1953 = vadd.f32 %v338, %v1952
    %v1954 = vpop.f32.mrb[0].mxu0
    %v1955 = vpop.f32.mrb[0].mxu0
    %1956 = vdwg.mxu0
    %1957 = vmatprep.subr.bf16.mxu0 %v1316
    %1958 = vmatpush1.bf16.msra.mxu0 %v1315
    %1959 = vmatprep.subr.bf16.mxu0 %v1322
    %1960 = vmatpush1.bf16.msra.mxu0 %v1321
    %1961 = vmatprep.subr.bf16.mxu0 %v1328
    %1962 = vmatpush1.bf16.msra.mxu0 %v1327
    %1963 = vmatprep.subr.bf16.mxu0 %v1334
    %1964 = vmatpush1.bf16.msra.mxu0 %v1333
    %1965 = vmatprep.subr.bf16.mxu0 %v1340
    %1966 = vmatpush1.bf16.msra.mxu0 %v1339
    %1967 = vmatprep.subr.bf16.mxu0 %v1346
    %1968 = vmatpush1.bf16.msra.mxu0 %v1345
    %1969 = vmatprep.subr.bf16.mxu0 %v1352
    %1970 = vmatpush1.bf16.msra.mxu0 %v1351
    %1971 = vmatprep.subr.bf16.mxu0 %v1358
    %1972 = vmatpush1.bf16.msra.mxu0 %v1357
    %1973 = vmatprep.subr.bf16.mxu0 %v1364
    %1974 = vmatpush1.bf16.msra.mxu0 %v1363
    %1975 = vmatprep.subr.bf16.mxu0 %v1370
    %1976 = vmatpush1.bf16.msra.mxu0 %v1369
    %1977 = vmatprep.subr.bf16.mxu0 %v1376
    %1978 = vmatpush1.bf16.msra.mxu0 %v1375
    %1979 = vmatprep.subr.bf16.mxu0 %v1382
    %1980 = vmatpush1.bf16.msra.mxu0 %v1381
    %1981 = vmatprep.subr.bf16.mxu0 %v1388
    %1982 = vmatpush1.bf16.msra.mxu0 %v1387
    %1983 = vmatprep.subr.bf16.mxu0 %v1394
    %1984 = vmatpush1.bf16.msra.mxu0 %v1393
    %1985 = vmatprep.subr.bf16.mxu0 %v1400
    %1986 = vmatpush1.bf16.msra.mxu0 %v1399
    %1987 = vmatprep.subr.bf16.mxu0 %v1406
    %1988 = vmatpush1.bf16.msra.mxu0 %v1405
    %1989 = vmatprep.mubr.bf16.mxu0 %v30
    %1990 = vmatmul.mubr.bf16.gmra.mrb[0].mxu0 %v29
    %v1991 = vpop.f32.mrb[0].mxu0
    %v1992 = vadd.f32 %v1951, %v1991
    %v1993 = vpop.f32.mrb[0].mxu0
    %v1994 = vadd.f32 %v1953, %v1993
    %v1995 = vpop.f32.mrb[0].mxu0
    %v1996 = vpop.f32.mrb[0].mxu0
    %1997 = vdwg.mxu0
    %1998 = vmatprep.subr.bf16.mxu0 %v1412
    %1999 = vmatpush1.bf16.msra.mxu0 %v1411
    %2000 = vmatprep.subr.bf16.mxu0 %v1418
    %2001 = vmatpush1.bf16.msra.mxu0 %v1417
    %2002 = vmatprep.subr.bf16.mxu0 %v1424
    %2003 = vmatpush1.bf16.msra.mxu0 %v1423
    %2004 = vmatprep.subr.bf16.mxu0 %v1430
    %2005 = vmatpush1.bf16.msra.mxu0 %v1429
    %2006 = vmatprep.subr.bf16.mxu0 %v1436
    %2007 = vmatpush1.bf16.msra.mxu0 %v1435
    %2008 = vmatprep.subr.bf16.mxu0 %v1442
    %2009 = vmatpush1.bf16.msra.mxu0 %v1441
    %2010 = vmatprep.subr.bf16.mxu0 %v1448
    %2011 = vmatpush1.bf16.msra.mxu0 %v1447
    %2012 = vmatprep.subr.bf16.mxu0 %v1454
    %2013 = vmatpush1.bf16.msra.mxu0 %v1453
    %2014 = vmatprep.subr.bf16.mxu0 %v1460
    %2015 = vmatpush1.bf16.msra.mxu0 %v1459
    %2016 = vmatprep.subr.bf16.mxu0 %v1466
    %2017 = vmatpush1.bf16.msra.mxu0 %v1465
    %2018 = vmatprep.subr.bf16.mxu0 %v1472
    %2019 = vmatpush1.bf16.msra.mxu0 %v1471
    %2020 = vmatprep.subr.bf16.mxu0 %v1478
    %2021 = vmatpush1.bf16.msra.mxu0 %v1477
    %2022 = vmatprep.subr.bf16.mxu0 %v1484
    %2023 = vmatpush1.bf16.msra.mxu0 %v1483
    %2024 = vmatprep.subr.bf16.mxu0 %v1490
    %2025 = vmatpush1.bf16.msra.mxu0 %v1489
    %2026 = vmatprep.subr.bf16.mxu0 %v1496
    %2027 = vmatpush1.bf16.msra.mxu0 %v1495
    %2028 = vmatprep.subr.bf16.mxu0 %v1502
    %2029 = vmatpush1.bf16.msra.mxu0 %v1501
    %2030 = vmatprep.mubr.bf16.mxu0 %v32
    %2031 = vmatmul.mubr.bf16.gmra.mrb[0].mxu0 %v31
    %v2032 = vpop.f32.mrb[0].mxu0
    %v2033 = vadd.f32 %v1992, %v2032
    %v2034 = vpop.f32.mrb[0].mxu0
    %v2035 = vadd.f32 %v1994, %v2034
    %v2036 = vpop.f32.mrb[0].mxu0
    %v2037 = vpop.f32.mrb[0].mxu0
    %2038 = vdwg.mxu0
    %2039 = vmatprep.subr.bf16.mxu0 %v1222
    %2040 = vmatpush1.bf16.msra.mxu0 %v1221
    %2041 = vmatprep.subr.bf16.mxu0 %v1228
    %2042 = vmatpush1.bf16.msra.mxu0 %v1227
    %2043 = vmatprep.subr.bf16.mxu0 %v1234
    %2044 = vmatpush1.bf16.msra.mxu0 %v1233
    %2045 = vmatprep.subr.bf16.mxu0 %v1240
    %2046 = vmatpush1.bf16.msra.mxu0 %v1239
    %2047 = vmatprep.subr.bf16.mxu0 %v1246
    %2048 = vmatpush1.bf16.msra.mxu0 %v1245
    %2049 = vmatprep.subr.bf16.mxu0 %v1252
    %2050 = vmatpush1.bf16.msra.mxu0 %v1251
    %2051 = vmatprep.subr.bf16.mxu0 %v1258
    %2052 = vmatpush1.bf16.msra.mxu0 %v1257
    %2053 = vmatprep.subr.bf16.mxu0 %v1264
    %2054 = vmatpush1.bf16.msra.mxu0 %v1263
    %2055 = vmatprep.subr.bf16.mxu0 %v1270
    %2056 = vmatpush1.bf16.msra.mxu0 %v1269
    %2057 = vmatprep.subr.bf16.mxu0 %v1276
    %2058 = vmatpush1.bf16.msra.mxu0 %v1275
    %2059 = vmatprep.subr.bf16.mxu0 %v1282
    %2060 = vmatpush1.bf16.msra.mxu0 %v1281
    %2061 = vmatprep.subr.bf16.mxu0 %v1288
    %2062 = vmatpush1.bf16.msra.mxu0 %v1287
    %2063 = vmatprep.subr.bf16.mxu0 %v1294
    %2064 = vmatpush1.bf16.msra.mxu0 %v1293
    %2065 = vmatprep.subr.bf16.mxu0 %v1300
    %2066 = vmatpush1.bf16.msra.mxu0 %v1299
    %2067 = vmatprep.subr.bf16.mxu0 %v1306
    %2068 = vmatpush1.bf16.msra.mxu0 %v1305
    %2069 = vmatprep.subr.bf16.mxu0 %v1312
    %2070 = vmatpush1.bf16.msra.mxu0 %v1311
    %2071 = vmatprep.mubr.bf16.mxu0 %v28
    %2072 = vmatmul.mubr.bf16.gmra.mrb[0].mxu0 %v27
    %v2073 = vpop.f32.mrb[0].mxu0
    %v2074 = vadd.f32 %v342, %v2073
    %v2075 = vpop.f32.mrb[0].mxu0
    %v2076 = vadd.f32 %v346, %v2075
    %v2077 = vpop.f32.mrb[0].mxu0
    %v2078 = vpop.f32.mrb[0].mxu0
    %2079 = vdwg.mxu0
    %2080 = vmatprep.subr.bf16.mxu0 %v1318
    %2081 = vmatpush1.bf16.msra.mxu0 %v1317
    %2082 = vmatprep.subr.bf16.mxu0 %v1324
    %2083 = vmatpush1.bf16.msra.mxu0 %v1323
    %2084 = vmatprep.subr.bf16.mxu0 %v1330
    %2085 = vmatpush1.bf16.msra.mxu0 %v1329
    %2086 = vmatprep.subr.bf16.mxu0 %v1336
    %2087 = vmatpush1.bf16.msra.mxu0 %v1335
    %2088 = vmatprep.subr.bf16.mxu0 %v1342
    %2089 = vmatpush1.bf16.msra.mxu0 %v1341
    %2090 = vmatprep.subr.bf16.mxu0 %v1348
    %2091 = vmatpush1.bf16.msra.mxu0 %v1347
    %2092 = vmatprep.subr.bf16.mxu0 %v1354
    %2093 = vmatpush1.bf16.msra.mxu0 %v1353
    %2094 = vmatprep.subr.bf16.mxu0 %v1360
    %2095 = vmatpush1.bf16.msra.mxu0 %v1359
    %2096 = vmatprep.subr.bf16.mxu0 %v1366
    %2097 = vmatpush1.bf16.msra.mxu0 %v1365
    %2098 = vmatprep.subr.bf16.mxu0 %v1372
    %2099 = vmatpush1.bf16.msra.mxu0 %v1371
    %2100 = vmatprep.subr.bf16.mxu0 %v1378
    %2101 = vmatpush1.bf16.msra.mxu0 %v1377
    %2102 = vmatprep.subr.bf16.mxu0 %v1384
    %2103 = vmatpush1.bf16.msra.mxu0 %v1383
    %2104 = vmatprep.subr.bf16.mxu0 %v1390
    %2105 = vmatpush1.bf16.msra.mxu0 %v1389
    %2106 = vmatprep.subr.bf16.mxu0 %v1396
    %2107 = vmatpush1.bf16.msra.mxu0 %v1395
    %2108 = vmatprep.subr.bf16.mxu0 %v1402
    %2109 = vmatpush1.bf16.msra.mxu0 %v1401
    %2110 = vmatprep.subr.bf16.mxu0 %v1408
    %2111 = vmatpush1.bf16.msra.mxu0 %v1407
    %2112 = vmatprep.mubr.bf16.mxu0 %v30
    %2113 = vmatmul.mubr.bf16.gmra.mrb[0].mxu0 %v29
    %v2114 = vpop.f32.mrb[0].mxu0
    %v2115 = vadd.f32 %v2074, %v2114
    %v2116 = vpop.f32.mrb[0].mxu0
    %v2117 = vadd.f32 %v2076, %v2116
    %v2118 = vpop.f32.mrb[0].mxu0
    %v2119 = vpop.f32.mrb[0].mxu0
    %2120 = vdwg.mxu0
    %2121 = vmatprep.subr.bf16.mxu0 %v1414
    %2122 = vmatpush1.bf16.msra.mxu0 %v1413
    %2123 = vmatprep.subr.bf16.mxu0 %v1420
    %2124 = vmatpush1.bf16.msra.mxu0 %v1419
    %2125 = vmatprep.subr.bf16.mxu0 %v1426
    %2126 = vmatpush1.bf16.msra.mxu0 %v1425
    %2127 = vmatprep.subr.bf16.mxu0 %v1432
    %2128 = vmatpush1.bf16.msra.mxu0 %v1431
    %2129 = vmatprep.subr.bf16.mxu0 %v1438
    %2130 = vmatpush1.bf16.msra.mxu0 %v1437
    %2131 = vmatprep.subr.bf16.mxu0 %v1444
    %2132 = vmatpush1.bf16.msra.mxu0 %v1443
    %2133 = vmatprep.subr.bf16.mxu0 %v1450
    %2134 = vmatpush1.bf16.msra.mxu0 %v1449
    %2135 = vmatprep.subr.bf16.mxu0 %v1456
    %2136 = vmatpush1.bf16.msra.mxu0 %v1455
    %2137 = vmatprep.subr.bf16.mxu0 %v1462
    %2138 = vmatpush1.bf16.msra.mxu0 %v1461
    %2139 = vmatprep.subr.bf16.mxu0 %v1468
    %2140 = vmatpush1.bf16.msra.mxu0 %v1467
    %2141 = vmatprep.subr.bf16.mxu0 %v1474
    %2142 = vmatpush1.bf16.msra.mxu0 %v1473
    %2143 = vmatprep.subr.bf16.mxu0 %v1480
    %2144 = vmatpush1.bf16.msra.mxu0 %v1479
    %2145 = vmatprep.subr.bf16.mxu0 %v1486
    %2146 = vmatpush1.bf16.msra.mxu0 %v1485
    %2147 = vmatprep.subr.bf16.mxu0 %v1492
    %2148 = vmatpush1.bf16.msra.mxu0 %v1491
    %2149 = vmatprep.subr.bf16.mxu0 %v1498
    %2150 = vmatpush1.bf16.msra.mxu0 %v1497
    %2151 = vmatprep.subr.bf16.mxu0 %v1504
    %2152 = vmatpush1.bf16.msra.mxu0 %v1503
    %2153 = vmatprep.mubr.bf16.mxu0 %v32
    %2154 = vmatmul.mubr.bf16.gmra.mrb[0].mxu0 %v31
    %v2155 = vpop.f32.mrb[0].mxu0
    %v2156 = vadd.f32 %v2115, %v2155
    %v2157 = vpop.f32.mrb[0].mxu0
    %v2158 = vadd.f32 %v2117, %v2157
    %v2159 = vpop.f32.mrb[0].mxu0
    %v2160 = vpop.f32.mrb[0].mxu0
    %2161 = vdwg.mxu0
    %v2162 = vmax.f32 %v1910, 0.0
    %v2163 = vmax.f32 %v1912, 0.0
    %v2164 = vmax.f32 %v2033, 0.0
    %v2165 = vmax.f32 %v2035, 0.0
    %v2166 = vmax.f32 %v2156, 0.0
    %v2167 = vmax.f32 %v2158, 0.0
    %v2168 = vpack.c.bf16 %v2162, %v2162
    %v2169 = vpack.c.bf16 %v2163, %v2163
    %v2170 = vpack.c.bf16 %v2164, %v2164
    %v2171 = vpack.c.bf16 %v2165, %v2165
    %v2172 = vpack.c.bf16 %v2166, %v2166
    %v2173 = vpack.c.bf16 %v2167, %v2167
    %v2174 = vld [vmem:[%s3] sm:$0xff]
    %v2175 = vld [vmem:[%s3 + $0x8] sm:$0xff]
    %v2176 = vld [vmem:[%s3 + $0x10] sm:$0xff]
    %v2177 = vld [vmem:[%s3 + $0x18] sm:$0xff]
    %v2178 = vld [vmem:[%s3 + $0x20] sm:$0xff]
    %v2179 = vld [vmem:[%s3 + $0x28] sm:$0xff]
    %v2180 = vld [vmem:[%s3 + $0x30] sm:$0xff]
    %v2181 = vld [vmem:[%s3 + $0x38] sm:$0xff]
    %v2182 = vld [vmem:[%s3 + $0x40] sm:$0xff]
    %v2183 = vld [vmem:[%s3 + $0x48] sm:$0xff]
    %v2184 = vld [vmem:[%s3 + $0x50] sm:$0xff]
    %v2185 = vld [vmem:[%s3 + $0x58] sm:$0xff]
    %v2186 = vld [vmem:[%s3 + $0x60] sm:$0xff]
    %v2187 = vld [vmem:[%s3 + $0x68] sm:$0xff]
    %v2188 = vld [vmem:[%s3 + $0x70] sm:$0xff]
    %v2189 = vld [vmem:[%s3 + $0x78] sm:$0xff]
    %v2190 = vld [vmem:[%s3 + $0x80] sm:$0xff]
    %v2191 = vld [vmem:[%s3 + $0x88] sm:$0xff]
    %v2192 = vld [vmem:[%s3 + $0x90] sm:$0xff]
    %v2193 = vld [vmem:[%s3 + $0x98] sm:$0xff]
    %v2194 = vld [vmem:[%s3 + $0xa0] sm:$0xff]
    %v2195 = vld [vmem:[%s3 + $0xa8] sm:$0xff]
    %v2196 = vld [vmem:[%s3 + $0xb0] sm:$0xff]
    %v2197 = vld [vmem:[%s3 + $0xb8] sm:$0xff]
    %v2198 = vld [vmem:[%s3 + $0xc0] sm:$0xff]
    %v2199 = vld [vmem:[%s3 + $0xc8] sm:$0xff]
    %v2200 = vld [vmem:[%s3 + $0xd0] sm:$0xff]
    %v2201 = vld [vmem:[%s3 + $0xd8] sm:$0xff]
    %v2202 = vld [vmem:[%s3 + $0xe0] sm:$0xff]
    %v2203 = vld [vmem:[%s3 + $0xe8] sm:$0xff]
    %v2204 = vld [vmem:[%s3 + $0xf0] sm:$0xff]
    %v2205 = vld [vmem:[%s3 + $0xf8] sm:$0xff]
    %v2206 = vld [vmem:[%s3 + $0x100] sm:$0xff]
    %v2207 = vld [vmem:[%s3 + $0x108] sm:$0xff]
    %v2208 = vld [vmem:[%s3 + $0x110] sm:$0xff]
    %v2209 = vld [vmem:[%s3 + $0x118] sm:$0xff]
    %v2210 = vld [vmem:[%s3 + $0x120] sm:$0xff]
    %v2211 = vld [vmem:[%s3 + $0x128] sm:$0xff]
    %v2212 = vld [vmem:[%s3 + $0x130] sm:$0xff]
    %v2213 = vld [vmem:[%s3 + $0x138] sm:$0xff]
    %v2214 = vld [vmem:[%s3 + $0x140] sm:$0xff]
    %v2215 = vld [vmem:[%s3 + $0x148] sm:$0xff]
    %v2216 = vld [vmem:[%s3 + $0x150] sm:$0xff]
    %v2217 = vld [vmem:[%s3 + $0x158] sm:$0xff]
    %v2218 = vld [vmem:[%s3 + $0x160] sm:$0xff]
    %v2219 = vld [vmem:[%s3 + $0x168] sm:$0xff]
    %v2220 = vld [vmem:[%s3 + $0x170] sm:$0xff]
    %v2221 = vld [vmem:[%s3 + $0x178] sm:$0xff]
    %v2222 = vld [vmem:[%s3 + $0x180] sm:$0xff]
    %v2223 = vld [vmem:[%s3 + $0x188] sm:$0xff]
    %v2224 = vld [vmem:[%s3 + $0x190] sm:$0xff]
    %v2225 = vld [vmem:[%s3 + $0x198] sm:$0xff]
    %v2226 = vld [vmem:[%s3 + $0x1a0] sm:$0xff]
    %v2227 = vld [vmem:[%s3 + $0x1a8] sm:$0xff]
    %v2228 = vld [vmem:[%s3 + $0x1b0] sm:$0xff]
    %v2229 = vld [vmem:[%s3 + $0x1b8] sm:$0xff]
    %v2230 = vld [vmem:[%s3 + $0x1c0] sm:$0xff]
    %v2231 = vld [vmem:[%s3 + $0x1c8] sm:$0xff]
    %v2232 = vld [vmem:[%s3 + $0x1d0] sm:$0xff]
    %v2233 = vld [vmem:[%s3 + $0x1d8] sm:$0xff]
    %v2234 = vld [vmem:[%s3 + $0x1e0] sm:$0xff]
    %v2235 = vld [vmem:[%s3 + $0x1e8] sm:$0xff]
    %v2236 = vld [vmem:[%s3 + $0x1f0] sm:$0xff]
    %v2237 = vld [vmem:[%s3 + $0x1f8] sm:$0xff]
    %v2238 = vld [vmem:[%s3 + $0x200] sm:$0xff]
    %v2239 = vld [vmem:[%s3 + $0x208] sm:$0xff]
    %v2240 = vld [vmem:[%s3 + $0x210] sm:$0xff]
    %v2241 = vld [vmem:[%s3 + $0x218] sm:$0xff]
    %v2242 = vld [vmem:[%s3 + $0x220] sm:$0xff]
    %v2243 = vld [vmem:[%s3 + $0x228] sm:$0xff]
    %v2244 = vld [vmem:[%s3 + $0x230] sm:$0xff]
    %v2245 = vld [vmem:[%s3 + $0x238] sm:$0xff]
    %v2246 = vld [vmem:[%s3 + $0x240] sm:$0xff]
    %v2247 = vld [vmem:[%s3 + $0x248] sm:$0xff]
    %v2248 = vld [vmem:[%s3 + $0x250] sm:$0xff]
    %v2249 = vld [vmem:[%s3 + $0x258] sm:$0xff]
    %v2250 = vld [vmem:[%s3 + $0x260] sm:$0xff]
    %v2251 = vld [vmem:[%s3 + $0x268] sm:$0xff]
    %v2252 = vld [vmem:[%s3 + $0x270] sm:$0xff]
    %v2253 = vld [vmem:[%s3 + $0x278] sm:$0xff]
    %v2254 = vld [vmem:[%s3 + $0x280] sm:$0xff]
    %v2255 = vld [vmem:[%s3 + $0x288] sm:$0xff]
    %v2256 = vld [vmem:[%s3 + $0x290] sm:$0xff]
    %v2257 = vld [vmem:[%s3 + $0x298] sm:$0xff]
    %v2258 = vld [vmem:[%s3 + $0x2a0] sm:$0xff]
    %v2259 = vld [vmem:[%s3 + $0x2a8] sm:$0xff]
    %v2260 = vld [vmem:[%s3 + $0x2b0] sm:$0xff]
    %v2261 = vld [vmem:[%s3 + $0x2b8] sm:$0xff]
    %v2262 = vld [vmem:[%s3 + $0x2c0] sm:$0xff]
    %v2263 = vld [vmem:[%s3 + $0x2c8] sm:$0xff]
    %v2264 = vld [vmem:[%s3 + $0x2d0] sm:$0xff]
    %v2265 = vld [vmem:[%s3 + $0x2d8] sm:$0xff]
    %v2266 = vld [vmem:[%s3 + $0x2e0] sm:$0xff]
    %v2267 = vld [vmem:[%s3 + $0x2e8] sm:$0xff]
    %v2268 = vld [vmem:[%s3 + $0x2f0] sm:$0xff]
    %v2269 = vld [vmem:[%s3 + $0x2f8] sm:$0xff]
    %v2270 = vld [vmem:[%s3 + $0x300] sm:$0xff]
    %v2271 = vld [vmem:[%s3 + $0x308] sm:$0xff]
    %v2272 = vld [vmem:[%s3 + $0x310] sm:$0xff]
    %v2273 = vld [vmem:[%s3 + $0x318] sm:$0xff]
    %v2274 = vld [vmem:[%s3 + $0x320] sm:$0xff]
    %v2275 = vld [vmem:[%s3 + $0x328] sm:$0xff]
    %v2276 = vld [vmem:[%s3 + $0x330] sm:$0xff]
    %v2277 = vld [vmem:[%s3 + $0x338] sm:$0xff]
    %v2278 = vld [vmem:[%s3 + $0x340] sm:$0xff]
    %v2279 = vld [vmem:[%s3 + $0x348] sm:$0xff]
    %v2280 = vld [vmem:[%s3 + $0x350] sm:$0xff]
    %v2281 = vld [vmem:[%s3 + $0x358] sm:$0xff]
    %v2282 = vld [vmem:[%s3 + $0x360] sm:$0xff]
    %v2283 = vld [vmem:[%s3 + $0x368] sm:$0xff]
    %v2284 = vld [vmem:[%s3 + $0x370] sm:$0xff]
    %v2285 = vld [vmem:[%s3 + $0x378] sm:$0xff]
    %v2286 = vld [vmem:[%s3 + $0x380] sm:$0xff]
    %v2287 = vld [vmem:[%s3 + $0x388] sm:$0xff]
    %v2288 = vld [vmem:[%s3 + $0x390] sm:$0xff]
    %v2289 = vld [vmem:[%s3 + $0x398] sm:$0xff]
    %v2290 = vld [vmem:[%s3 + $0x3a0] sm:$0xff]
    %v2291 = vld [vmem:[%s3 + $0x3a8] sm:$0xff]
    %v2292 = vld [vmem:[%s3 + $0x3b0] sm:$0xff]
    %v2293 = vld [vmem:[%s3 + $0x3b8] sm:$0xff]
    %v2294 = vld [vmem:[%s3 + $0x3c0] sm:$0xff]
    %v2295 = vld [vmem:[%s3 + $0x3c8] sm:$0xff]
    %v2296 = vld [vmem:[%s3 + $0x3d0] sm:$0xff]
    %v2297 = vld [vmem:[%s3 + $0x3d8] sm:$0xff]
    %v2298 = vld [vmem:[%s3 + $0x3e0] sm:$0xff]
    %v2299 = vld [vmem:[%s3 + $0x3e8] sm:$0xff]
    %v2300 = vld [vmem:[%s3 + $0x3f0] sm:$0xff]
    %v2301 = vld [vmem:[%s3 + $0x3f8] sm:$0xff]
    %v2302 = vld [vmem:[%s3 + $0x400] sm:$0xff]
    %v2303 = vld [vmem:[%s3 + $0x408] sm:$0xff]
    %v2304 = vld [vmem:[%s3 + $0x410] sm:$0xff]
    %v2305 = vld [vmem:[%s3 + $0x418] sm:$0xff]
    %v2306 = vld [vmem:[%s3 + $0x420] sm:$0xff]
    %v2307 = vld [vmem:[%s3 + $0x428] sm:$0xff]
    %v2308 = vld [vmem:[%s3 + $0x430] sm:$0xff]
    %v2309 = vld [vmem:[%s3 + $0x438] sm:$0xff]
    %v2310 = vld [vmem:[%s3 + $0x440] sm:$0xff]
    %v2311 = vld [vmem:[%s3 + $0x448] sm:$0xff]
    %v2312 = vld [vmem:[%s3 + $0x450] sm:$0xff]
    %v2313 = vld [vmem:[%s3 + $0x458] sm:$0xff]
    %v2314 = vld [vmem:[%s3 + $0x460] sm:$0xff]
    %v2315 = vld [vmem:[%s3 + $0x468] sm:$0xff]
    %v2316 = vld [vmem:[%s3 + $0x470] sm:$0xff]
    %v2317 = vld [vmem:[%s3 + $0x478] sm:$0xff]
    %v2318 = vld [vmem:[%s3 + $0x480] sm:$0xff]
    %v2319 = vld [vmem:[%s3 + $0x488] sm:$0xff]
    %v2320 = vld [vmem:[%s3 + $0x490] sm:$0xff]
    %v2321 = vld [vmem:[%s3 + $0x498] sm:$0xff]
    %v2322 = vld [vmem:[%s3 + $0x4a0] sm:$0xff]
    %v2323 = vld [vmem:[%s3 + $0x4a8] sm:$0xff]
    %v2324 = vld [vmem:[%s3 + $0x4b0] sm:$0xff]
    %v2325 = vld [vmem:[%s3 + $0x4b8] sm:$0xff]
    %v2326 = vld [vmem:[%s3 + $0x4c0] sm:$0xff]
    %v2327 = vld [vmem:[%s3 + $0x4c8] sm:$0xff]
    %v2328 = vld [vmem:[%s3 + $0x4d0] sm:$0xff]
    %v2329 = vld [vmem:[%s3 + $0x4d8] sm:$0xff]
    %v2330 = vld [vmem:[%s3 + $0x4e0] sm:$0xff]
    %v2331 = vld [vmem:[%s3 + $0x4e8] sm:$0xff]
    %v2332 = vld [vmem:[%s3 + $0x4f0] sm:$0xff]
    %v2333 = vld [vmem:[%s3 + $0x4f8] sm:$0xff]
    %v2334 = vld [vmem:[%s3 + $0x500] sm:$0xff]
    %v2335 = vld [vmem:[%s3 + $0x508] sm:$0xff]
    %v2336 = vld [vmem:[%s3 + $0x510] sm:$0xff]
    %v2337 = vld [vmem:[%s3 + $0x518] sm:$0xff]
    %v2338 = vld [vmem:[%s3 + $0x520] sm:$0xff]
    %v2339 = vld [vmem:[%s3 + $0x528] sm:$0xff]
    %v2340 = vld [vmem:[%s3 + $0x530] sm:$0xff]
    %v2341 = vld [vmem:[%s3 + $0x538] sm:$0xff]
    %v2342 = vld [vmem:[%s3 + $0x540] sm:$0xff]
    %v2343 = vld [vmem:[%s3 + $0x548] sm:$0xff]
    %v2344 = vld [vmem:[%s3 + $0x550] sm:$0xff]
    %v2345 = vld [vmem:[%s3 + $0x558] sm:$0xff]
    %v2346 = vld [vmem:[%s3 + $0x560] sm:$0xff]
    %v2347 = vld [vmem:[%s3 + $0x568] sm:$0xff]
    %v2348 = vld [vmem:[%s3 + $0x570] sm:$0xff]
    %v2349 = vld [vmem:[%s3 + $0x578] sm:$0xff]
    %v2350 = vld [vmem:[%s3 + $0x580] sm:$0xff]
    %v2351 = vld [vmem:[%s3 + $0x588] sm:$0xff]
    %v2352 = vld [vmem:[%s3 + $0x590] sm:$0xff]
    %v2353 = vld [vmem:[%s3 + $0x598] sm:$0xff]
    %v2354 = vld [vmem:[%s3 + $0x5a0] sm:$0xff]
    %v2355 = vld [vmem:[%s3 + $0x5a8] sm:$0xff]
    %v2356 = vld [vmem:[%s3 + $0x5b0] sm:$0xff]
    %v2357 = vld [vmem:[%s3 + $0x5b8] sm:$0xff]
    %v2358 = vld [vmem:[%s3 + $0x5c0] sm:$0xff]
    %v2359 = vld [vmem:[%s3 + $0x5c8] sm:$0xff]
    %v2360 = vld [vmem:[%s3 + $0x5d0] sm:$0xff]
    %v2361 = vld [vmem:[%s3 + $0x5d8] sm:$0xff]
    %v2362 = vld [vmem:[%s3 + $0x5e0] sm:$0xff]
    %v2363 = vld [vmem:[%s3 + $0x5e8] sm:$0xff]
    %v2364 = vld [vmem:[%s3 + $0x5f0] sm:$0xff]
    %v2365 = vld [vmem:[%s3 + $0x5f8] sm:$0xff]
    %v2366 = vld [vmem:[%s3 + $0x600] sm:$0xff]
    %v2367 = vld [vmem:[%s3 + $0x608] sm:$0xff]
    %v2368 = vld [vmem:[%s3 + $0x610] sm:$0xff]
    %v2369 = vld [vmem:[%s3 + $0x618] sm:$0xff]
    %v2370 = vld [vmem:[%s3 + $0x620] sm:$0xff]
    %v2371 = vld [vmem:[%s3 + $0x628] sm:$0xff]
    %v2372 = vld [vmem:[%s3 + $0x630] sm:$0xff]
    %v2373 = vld [vmem:[%s3 + $0x638] sm:$0xff]
    %v2374 = vld [vmem:[%s3 + $0x640] sm:$0xff]
    %v2375 = vld [vmem:[%s3 + $0x648] sm:$0xff]
    %v2376 = vld [vmem:[%s3 + $0x650] sm:$0xff]
    %v2377 = vld [vmem:[%s3 + $0x658] sm:$0xff]
    %v2378 = vld [vmem:[%s3 + $0x660] sm:$0xff]
    %v2379 = vld [vmem:[%s3 + $0x668] sm:$0xff]
    %v2380 = vld [vmem:[%s3 + $0x670] sm:$0xff]
    %v2381 = vld [vmem:[%s3 + $0x678] sm:$0xff]
    %v2382 = vld [vmem:[%s3 + $0x680] sm:$0xff]
    %v2383 = vld [vmem:[%s3 + $0x688] sm:$0xff]
    %v2384 = vld [vmem:[%s3 + $0x690] sm:$0xff]
    %v2385 = vld [vmem:[%s3 + $0x698] sm:$0xff]
    %v2386 = vld [vmem:[%s3 + $0x6a0] sm:$0xff]
    %v2387 = vld [vmem:[%s3 + $0x6a8] sm:$0xff]
    %v2388 = vld [vmem:[%s3 + $0x6b0] sm:$0xff]
    %v2389 = vld [vmem:[%s3 + $0x6b8] sm:$0xff]
    %v2390 = vld [vmem:[%s3 + $0x6c0] sm:$0xff]
    %v2391 = vld [vmem:[%s3 + $0x6c8] sm:$0xff]
    %v2392 = vld [vmem:[%s3 + $0x6d0] sm:$0xff]
    %v2393 = vld [vmem:[%s3 + $0x6d8] sm:$0xff]
    %v2394 = vld [vmem:[%s3 + $0x6e0] sm:$0xff]
    %v2395 = vld [vmem:[%s3 + $0x6e8] sm:$0xff]
    %v2396 = vld [vmem:[%s3 + $0x6f0] sm:$0xff]
    %v2397 = vld [vmem:[%s3 + $0x6f8] sm:$0xff]
    %v2398 = vld [vmem:[%s3 + $0x700] sm:$0xff]
    %v2399 = vld [vmem:[%s3 + $0x708] sm:$0xff]
    %v2400 = vld [vmem:[%s3 + $0x710] sm:$0xff]
    %v2401 = vld [vmem:[%s3 + $0x718] sm:$0xff]
    %v2402 = vld [vmem:[%s3 + $0x720] sm:$0xff]
    %v2403 = vld [vmem:[%s3 + $0x728] sm:$0xff]
    %v2404 = vld [vmem:[%s3 + $0x730] sm:$0xff]
    %v2405 = vld [vmem:[%s3 + $0x738] sm:$0xff]
    %v2406 = vld [vmem:[%s3 + $0x740] sm:$0xff]
    %v2407 = vld [vmem:[%s3 + $0x748] sm:$0xff]
    %v2408 = vld [vmem:[%s3 + $0x750] sm:$0xff]
    %v2409 = vld [vmem:[%s3 + $0x758] sm:$0xff]
    %v2410 = vld [vmem:[%s3 + $0x760] sm:$0xff]
    %v2411 = vld [vmem:[%s3 + $0x768] sm:$0xff]
    %v2412 = vld [vmem:[%s3 + $0x770] sm:$0xff]
    %v2413 = vld [vmem:[%s3 + $0x778] sm:$0xff]
    %v2414 = vld [vmem:[%s3 + $0x780] sm:$0xff]
    %v2415 = vld [vmem:[%s3 + $0x788] sm:$0xff]
    %v2416 = vld [vmem:[%s3 + $0x790] sm:$0xff]
    %v2417 = vld [vmem:[%s3 + $0x798] sm:$0xff]
    %v2418 = vld [vmem:[%s3 + $0x7a0] sm:$0xff]
    %v2419 = vld [vmem:[%s3 + $0x7a8] sm:$0xff]
    %v2420 = vld [vmem:[%s3 + $0x7b0] sm:$0xff]
    %v2421 = vld [vmem:[%s3 + $0x7b8] sm:$0xff]
    %v2422 = vld [vmem:[%s3 + $0x7c0] sm:$0xff]
    %v2423 = vld [vmem:[%s3 + $0x7c8] sm:$0xff]
    %v2424 = vld [vmem:[%s3 + $0x7d0] sm:$0xff]
    %v2425 = vld [vmem:[%s3 + $0x7d8] sm:$0xff]
    %v2426 = vld [vmem:[%s3 + $0x7e0] sm:$0xff]
    %v2427 = vld [vmem:[%s3 + $0x7e8] sm:$0xff]
    %v2428 = vld [vmem:[%s3 + $0x7f0] sm:$0xff]
    %v2429 = vld [vmem:[%s3 + $0x7f8] sm:$0xff]
    %v2430 = vld [vmem:[%s3 + $0x800] sm:$0xff]
    %v2431 = vld [vmem:[%s3 + $0x808] sm:$0xff]
    %v2432 = vld [vmem:[%s3 + $0x810] sm:$0xff]
    %v2433 = vld [vmem:[%s3 + $0x818] sm:$0xff]
    %v2434 = vld [vmem:[%s3 + $0x820] sm:$0xff]
    %v2435 = vld [vmem:[%s3 + $0x828] sm:$0xff]
    %v2436 = vld [vmem:[%s3 + $0x830] sm:$0xff]
    %v2437 = vld [vmem:[%s3 + $0x838] sm:$0xff]
    %v2438 = vld [vmem:[%s3 + $0x840] sm:$0xff]
    %v2439 = vld [vmem:[%s3 + $0x848] sm:$0xff]
    %v2440 = vld [vmem:[%s3 + $0x850] sm:$0xff]
    %v2441 = vld [vmem:[%s3 + $0x858] sm:$0xff]
    %v2442 = vld [vmem:[%s3 + $0x860] sm:$0xff]
    %v2443 = vld [vmem:[%s3 + $0x868] sm:$0xff]
    %v2444 = vld [vmem:[%s3 + $0x870] sm:$0xff]
    %v2445 = vld [vmem:[%s3 + $0x878] sm:$0xff]
    %v2446 = vld [vmem:[%s3 + $0x880] sm:$0xff]
    %v2447 = vld [vmem:[%s3 + $0x888] sm:$0xff]
    %v2448 = vld [vmem:[%s3 + $0x890] sm:$0xff]
    %v2449 = vld [vmem:[%s3 + $0x898] sm:$0xff]
    %v2450 = vld [vmem:[%s3 + $0x8a0] sm:$0xff]
    %v2451 = vld [vmem:[%s3 + $0x8a8] sm:$0xff]
    %v2452 = vld [vmem:[%s3 + $0x8b0] sm:$0xff]
    %v2453 = vld [vmem:[%s3 + $0x8b8] sm:$0xff]
    %v2454 = vld [vmem:[%s3 + $0x8c0] sm:$0xff]
    %v2455 = vld [vmem:[%s3 + $0x8c8] sm:$0xff]
    %v2456 = vld [vmem:[%s3 + $0x8d0] sm:$0xff]
    %v2457 = vld [vmem:[%s3 + $0x8d8] sm:$0xff]
    %v2458 = vld [vmem:[%s3 + $0x8e0] sm:$0xff]
    %v2459 = vld [vmem:[%s3 + $0x8e8] sm:$0xff]
    %v2460 = vld [vmem:[%s3 + $0x8f0] sm:$0xff]
    %v2461 = vld [vmem:[%s3 + $0x8f8] sm:$0xff]
    %v2462 = vld [vmem:[%s4] sm:$0x3f]
    %v2464 = vlaneseq
    %v2465 = vshrl.u32 %v2464, 7
    %v2466 = vsub.s32 0, %v2465
    %v2467 = vrot.slane %v2462, %v2466
    %v2468 = vlaneseq
    %v2469 = vshrl.u32 %v2468, 7
    %v2470 = vsub.s32 1, %v2469
    %v2471 = vrot.slane %v2462, %v2470
    %v2472 = vlaneseq
    %v2473 = vshrl.u32 %v2472, 7
    %v2474 = vsub.s32 2, %v2473
    %v2475 = vrot.slane %v2462, %v2474
    %v2476 = vlaneseq
    %v2477 = vshrl.u32 %v2476, 7
    %v2478 = vsub.s32 3, %v2477
    %v2479 = vrot.slane %v2462, %v2478
    %v2480 = vlaneseq
    %v2481 = vshrl.u32 %v2480, 7
    %v2482 = vsub.s32 4, %v2481
    %v2483 = vrot.slane %v2462, %v2482
    %v2484 = vlaneseq
    %v2485 = vshrl.u32 %v2484, 7
    %v2486 = vsub.s32 5, %v2485
    %v2487 = vrot.slane %v2462, %v2486
    %v2782 = vunpack.c.l.b16 %v2174
    %v2783 = vunpack.c.h.b16 %v2174
    %v2784 = vunpack.c.l.b16 %v2175
    %v2785 = vunpack.c.h.b16 %v2175
    %v2786 = vunpack.c.l.b16 %v2176
    %v2787 = vunpack.c.h.b16 %v2176
    %v2788 = vunpack.c.l.b16 %v2177
    %v2789 = vunpack.c.h.b16 %v2177
    %v2790 = vunpack.c.l.b16 %v2178
    %v2791 = vunpack.c.h.b16 %v2178
    %v2792 = vunpack.c.l.b16 %v2179
    %v2793 = vunpack.c.h.b16 %v2179
    %v2794 = vunpack.c.l.b16 %v2180
    %v2795 = vunpack.c.h.b16 %v2180
    %v2796 = vunpack.c.l.b16 %v2181
    %v2797 = vunpack.c.h.b16 %v2181
    %v2798 = vunpack.c.l.b16 %v2182
    %v2799 = vunpack.c.h.b16 %v2182
    %v2800 = vunpack.c.l.b16 %v2183
    %v2801 = vunpack.c.h.b16 %v2183
    %v2802 = vunpack.c.l.b16 %v2184
    %v2803 = vunpack.c.h.b16 %v2184
    %v2804 = vunpack.c.l.b16 %v2185
    %v2805 = vunpack.c.h.b16 %v2185
    %v2806 = vunpack.c.l.b16 %v2186
    %v2807 = vunpack.c.h.b16 %v2186
    %v2808 = vunpack.c.l.b16 %v2187
    %v2809 = vunpack.c.h.b16 %v2187
    %v2810 = vunpack.c.l.b16 %v2188
    %v2811 = vunpack.c.h.b16 %v2188
    %v2812 = vunpack.c.l.b16 %v2189
    %v2813 = vunpack.c.h.b16 %v2189
    %v2814 = vunpack.c.l.b16 %v2190
    %v2815 = vunpack.c.h.b16 %v2190
    %v2816 = vunpack.c.l.b16 %v2191
    %v2817 = vunpack.c.h.b16 %v2191
    %v2818 = vunpack.c.l.b16 %v2192
    %v2819 = vunpack.c.h.b16 %v2192
    %v2820 = vunpack.c.l.b16 %v2193
    %v2821 = vunpack.c.h.b16 %v2193
    %v2822 = vunpack.c.l.b16 %v2194
    %v2823 = vunpack.c.h.b16 %v2194
    %v2824 = vunpack.c.l.b16 %v2195
    %v2825 = vunpack.c.h.b16 %v2195
    %v2826 = vunpack.c.l.b16 %v2196
    %v2827 = vunpack.c.h.b16 %v2196
    %v2828 = vunpack.c.l.b16 %v2197
    %v2829 = vunpack.c.h.b16 %v2197
    %v2830 = vunpack.c.l.b16 %v2198
    %v2831 = vunpack.c.h.b16 %v2198
    %v2832 = vunpack.c.l.b16 %v2199
    %v2833 = vunpack.c.h.b16 %v2199
    %v2834 = vunpack.c.l.b16 %v2200
    %v2835 = vunpack.c.h.b16 %v2200
    %v2836 = vunpack.c.l.b16 %v2201
    %v2837 = vunpack.c.h.b16 %v2201
    %v2838 = vunpack.c.l.b16 %v2202
    %v2839 = vunpack.c.h.b16 %v2202
    %v2840 = vunpack.c.l.b16 %v2203
    %v2841 = vunpack.c.h.b16 %v2203
    %v2842 = vunpack.c.l.b16 %v2204
    %v2843 = vunpack.c.h.b16 %v2204
    %v2844 = vunpack.c.l.b16 %v2205
    %v2845 = vunpack.c.h.b16 %v2205
    %v2846 = vunpack.c.l.b16 %v2206
    %v2847 = vunpack.c.h.b16 %v2206
    %v2848 = vunpack.c.l.b16 %v2207
    %v2849 = vunpack.c.h.b16 %v2207
    %v2850 = vunpack.c.l.b16 %v2208
    %v2851 = vunpack.c.h.b16 %v2208
    %v2852 = vunpack.c.l.b16 %v2209
    %v2853 = vunpack.c.h.b16 %v2209
    %v2854 = vunpack.c.l.b16 %v2210
    %v2855 = vunpack.c.h.b16 %v2210
    %v2856 = vunpack.c.l.b16 %v2211
    %v2857 = vunpack.c.h.b16 %v2211
    %v2858 = vunpack.c.l.b16 %v2212
    %v2859 = vunpack.c.h.b16 %v2212
    %v2860 = vunpack.c.l.b16 %v2213
    %v2861 = vunpack.c.h.b16 %v2213
    %v2862 = vunpack.c.l.b16 %v2214
    %v2863 = vunpack.c.h.b16 %v2214
    %v2864 = vunpack.c.l.b16 %v2215
    %v2865 = vunpack.c.h.b16 %v2215
    %v2866 = vunpack.c.l.b16 %v2216
    %v2867 = vunpack.c.h.b16 %v2216
    %v2868 = vunpack.c.l.b16 %v2217
    %v2869 = vunpack.c.h.b16 %v2217
    %v2870 = vunpack.c.l.b16 %v2218
    %v2871 = vunpack.c.h.b16 %v2218
    %v2872 = vunpack.c.l.b16 %v2219
    %v2873 = vunpack.c.h.b16 %v2219
    %v2874 = vunpack.c.l.b16 %v2220
    %v2875 = vunpack.c.h.b16 %v2220
    %v2876 = vunpack.c.l.b16 %v2221
    %v2877 = vunpack.c.h.b16 %v2221
    %v2878 = vunpack.c.l.b16 %v2222
    %v2879 = vunpack.c.h.b16 %v2222
    %v2880 = vunpack.c.l.b16 %v2223
    %v2881 = vunpack.c.h.b16 %v2223
    %v2882 = vunpack.c.l.b16 %v2224
    %v2883 = vunpack.c.h.b16 %v2224
    %v2884 = vunpack.c.l.b16 %v2225
    %v2885 = vunpack.c.h.b16 %v2225
    %v2886 = vunpack.c.l.b16 %v2226
    %v2887 = vunpack.c.h.b16 %v2226
    %v2888 = vunpack.c.l.b16 %v2227
    %v2889 = vunpack.c.h.b16 %v2227
    %v2890 = vunpack.c.l.b16 %v2228
    %v2891 = vunpack.c.h.b16 %v2228
    %v2892 = vunpack.c.l.b16 %v2229
    %v2893 = vunpack.c.h.b16 %v2229
    %v2894 = vunpack.c.l.b16 %v2230
    %v2895 = vunpack.c.h.b16 %v2230
    %v2896 = vunpack.c.l.b16 %v2231
    %v2897 = vunpack.c.h.b16 %v2231
    %v2898 = vunpack.c.l.b16 %v2232
    %v2899 = vunpack.c.h.b16 %v2232
    %v2900 = vunpack.c.l.b16 %v2233
    %v2901 = vunpack.c.h.b16 %v2233
    %v2902 = vunpack.c.l.b16 %v2234
    %v2903 = vunpack.c.h.b16 %v2234
    %v2904 = vunpack.c.l.b16 %v2235
    %v2905 = vunpack.c.h.b16 %v2235
    %v2906 = vunpack.c.l.b16 %v2236
    %v2907 = vunpack.c.h.b16 %v2236
    %v2908 = vunpack.c.l.b16 %v2237
    %v2909 = vunpack.c.h.b16 %v2237
    %v2910 = vunpack.c.l.b16 %v2238
    %v2911 = vunpack.c.h.b16 %v2238
    %v2912 = vunpack.c.l.b16 %v2239
    %v2913 = vunpack.c.h.b16 %v2239
    %v2914 = vunpack.c.l.b16 %v2240
    %v2915 = vunpack.c.h.b16 %v2240
    %v2916 = vunpack.c.l.b16 %v2241
    %v2917 = vunpack.c.h.b16 %v2241
    %v2918 = vunpack.c.l.b16 %v2242
    %v2919 = vunpack.c.h.b16 %v2242
    %v2920 = vunpack.c.l.b16 %v2243
    %v2921 = vunpack.c.h.b16 %v2243
    %v2922 = vunpack.c.l.b16 %v2244
    %v2923 = vunpack.c.h.b16 %v2244
    %v2924 = vunpack.c.l.b16 %v2245
    %v2925 = vunpack.c.h.b16 %v2245
    %v2926 = vunpack.c.l.b16 %v2246
    %v2927 = vunpack.c.h.b16 %v2246
    %v2928 = vunpack.c.l.b16 %v2247
    %v2929 = vunpack.c.h.b16 %v2247
    %v2930 = vunpack.c.l.b16 %v2248
    %v2931 = vunpack.c.h.b16 %v2248
    %v2932 = vunpack.c.l.b16 %v2249
    %v2933 = vunpack.c.h.b16 %v2249
    %v2934 = vunpack.c.l.b16 %v2250
    %v2935 = vunpack.c.h.b16 %v2250
    %v2936 = vunpack.c.l.b16 %v2251
    %v2937 = vunpack.c.h.b16 %v2251
    %v2938 = vunpack.c.l.b16 %v2252
    %v2939 = vunpack.c.h.b16 %v2252
    %v2940 = vunpack.c.l.b16 %v2253
    %v2941 = vunpack.c.h.b16 %v2253
    %v2942 = vunpack.c.l.b16 %v2254
    %v2943 = vunpack.c.h.b16 %v2254
    %v2944 = vunpack.c.l.b16 %v2255
    %v2945 = vunpack.c.h.b16 %v2255
    %v2946 = vunpack.c.l.b16 %v2256
    %v2947 = vunpack.c.h.b16 %v2256
    %v2948 = vunpack.c.l.b16 %v2257
    %v2949 = vunpack.c.h.b16 %v2257
    %v2950 = vunpack.c.l.b16 %v2258
    %v2951 = vunpack.c.h.b16 %v2258
    %v2952 = vunpack.c.l.b16 %v2259
    %v2953 = vunpack.c.h.b16 %v2259
    %v2954 = vunpack.c.l.b16 %v2260
    %v2955 = vunpack.c.h.b16 %v2260
    %v2956 = vunpack.c.l.b16 %v2261
    %v2957 = vunpack.c.h.b16 %v2261
    %v2958 = vunpack.c.l.b16 %v2262
    %v2959 = vunpack.c.h.b16 %v2262
    %v2960 = vunpack.c.l.b16 %v2263
    %v2961 = vunpack.c.h.b16 %v2263
    %v2962 = vunpack.c.l.b16 %v2264
    %v2963 = vunpack.c.h.b16 %v2264
    %v2964 = vunpack.c.l.b16 %v2265
    %v2965 = vunpack.c.h.b16 %v2265
    %v2966 = vunpack.c.l.b16 %v2266
    %v2967 = vunpack.c.h.b16 %v2266
    %v2968 = vunpack.c.l.b16 %v2267
    %v2969 = vunpack.c.h.b16 %v2267
    %v2970 = vunpack.c.l.b16 %v2268
    %v2971 = vunpack.c.h.b16 %v2268
    %v2972 = vunpack.c.l.b16 %v2269
    %v2973 = vunpack.c.h.b16 %v2269
    %v2974 = vunpack.c.l.b16 %v2270
    %v2975 = vunpack.c.h.b16 %v2270
    %v2976 = vunpack.c.l.b16 %v2271
    %v2977 = vunpack.c.h.b16 %v2271
    %v2978 = vunpack.c.l.b16 %v2272
    %v2979 = vunpack.c.h.b16 %v2272
    %v2980 = vunpack.c.l.b16 %v2273
    %v2981 = vunpack.c.h.b16 %v2273
    %v2982 = vunpack.c.l.b16 %v2274
    %v2983 = vunpack.c.h.b16 %v2274
    %v2984 = vunpack.c.l.b16 %v2275
    %v2985 = vunpack.c.h.b16 %v2275
    %v2986 = vunpack.c.l.b16 %v2276
    %v2987 = vunpack.c.h.b16 %v2276
    %v2988 = vunpack.c.l.b16 %v2277
    %v2989 = vunpack.c.h.b16 %v2277
    %v2990 = vunpack.c.l.b16 %v2278
    %v2991 = vunpack.c.h.b16 %v2278
    %v2992 = vunpack.c.l.b16 %v2279
    %v2993 = vunpack.c.h.b16 %v2279
    %v2994 = vunpack.c.l.b16 %v2280
    %v2995 = vunpack.c.h.b16 %v2280
    %v2996 = vunpack.c.l.b16 %v2281
    %v2997 = vunpack.c.h.b16 %v2281
    %v2998 = vunpack.c.l.b16 %v2282
    %v2999 = vunpack.c.h.b16 %v2282
    %v3000 = vunpack.c.l.b16 %v2283
    %v3001 = vunpack.c.h.b16 %v2283
    %v3002 = vunpack.c.l.b16 %v2284
    %v3003 = vunpack.c.h.b16 %v2284
    %v3004 = vunpack.c.l.b16 %v2285
    %v3005 = vunpack.c.h.b16 %v2285
    %v3006 = vunpack.c.l.b16 %v2286
    %v3007 = vunpack.c.h.b16 %v2286
    %v3008 = vunpack.c.l.b16 %v2287
    %v3009 = vunpack.c.h.b16 %v2287
    %v3010 = vunpack.c.l.b16 %v2288
    %v3011 = vunpack.c.h.b16 %v2288
    %v3012 = vunpack.c.l.b16 %v2289
    %v3013 = vunpack.c.h.b16 %v2289
    %v3014 = vunpack.c.l.b16 %v2290
    %v3015 = vunpack.c.h.b16 %v2290
    %v3016 = vunpack.c.l.b16 %v2291
    %v3017 = vunpack.c.h.b16 %v2291
    %v3018 = vunpack.c.l.b16 %v2292
    %v3019 = vunpack.c.h.b16 %v2292
    %v3020 = vunpack.c.l.b16 %v2293
    %v3021 = vunpack.c.h.b16 %v2293
    %v3022 = vunpack.c.l.b16 %v2294
    %v3023 = vunpack.c.h.b16 %v2294
    %v3024 = vunpack.c.l.b16 %v2295
    %v3025 = vunpack.c.h.b16 %v2295
    %v3026 = vunpack.c.l.b16 %v2296
    %v3027 = vunpack.c.h.b16 %v2296
    %v3028 = vunpack.c.l.b16 %v2297
    %v3029 = vunpack.c.h.b16 %v2297
    %v3030 = vunpack.c.l.b16 %v2298
    %v3031 = vunpack.c.h.b16 %v2298
    %v3032 = vunpack.c.l.b16 %v2299
    %v3033 = vunpack.c.h.b16 %v2299
    %v3034 = vunpack.c.l.b16 %v2300
    %v3035 = vunpack.c.h.b16 %v2300
    %v3036 = vunpack.c.l.b16 %v2301
    %v3037 = vunpack.c.h.b16 %v2301
    %v3038 = vunpack.c.l.b16 %v2302
    %v3039 = vunpack.c.h.b16 %v2302
    %v3040 = vunpack.c.l.b16 %v2303
    %v3041 = vunpack.c.h.b16 %v2303
    %v3042 = vunpack.c.l.b16 %v2304
    %v3043 = vunpack.c.h.b16 %v2304
    %v3044 = vunpack.c.l.b16 %v2305
    %v3045 = vunpack.c.h.b16 %v2305
    %v3046 = vunpack.c.l.b16 %v2306
    %v3047 = vunpack.c.h.b16 %v2306
    %v3048 = vunpack.c.l.b16 %v2307
    %v3049 = vunpack.c.h.b16 %v2307
    %v3050 = vunpack.c.l.b16 %v2308
    %v3051 = vunpack.c.h.b16 %v2308
    %v3052 = vunpack.c.l.b16 %v2309
    %v3053 = vunpack.c.h.b16 %v2309
    %v3054 = vunpack.c.l.b16 %v2310
    %v3055 = vunpack.c.h.b16 %v2310
    %v3056 = vunpack.c.l.b16 %v2311
    %v3057 = vunpack.c.h.b16 %v2311
    %v3058 = vunpack.c.l.b16 %v2312
    %v3059 = vunpack.c.h.b16 %v2312
    %v3060 = vunpack.c.l.b16 %v2313
    %v3061 = vunpack.c.h.b16 %v2313
    %v3062 = vunpack.c.l.b16 %v2314
    %v3063 = vunpack.c.h.b16 %v2314
    %v3064 = vunpack.c.l.b16 %v2315
    %v3065 = vunpack.c.h.b16 %v2315
    %v3066 = vunpack.c.l.b16 %v2316
    %v3067 = vunpack.c.h.b16 %v2316
    %v3068 = vunpack.c.l.b16 %v2317
    %v3069 = vunpack.c.h.b16 %v2317
    %v3070 = vunpack.c.l.b16 %v2318
    %v3071 = vunpack.c.h.b16 %v2318
    %v3072 = vunpack.c.l.b16 %v2319
    %v3073 = vunpack.c.h.b16 %v2319
    %v3074 = vunpack.c.l.b16 %v2320
    %v3075 = vunpack.c.h.b16 %v2320
    %v3076 = vunpack.c.l.b16 %v2321
    %v3077 = vunpack.c.h.b16 %v2321
    %v3078 = vunpack.c.l.b16 %v2322
    %v3079 = vunpack.c.h.b16 %v2322
    %v3080 = vunpack.c.l.b16 %v2323
    %v3081 = vunpack.c.h.b16 %v2323
    %v3082 = vunpack.c.l.b16 %v2324
    %v3083 = vunpack.c.h.b16 %v2324
    %v3084 = vunpack.c.l.b16 %v2325
    %v3085 = vunpack.c.h.b16 %v2325
    %v3086 = vunpack.c.l.b16 %v2326
    %v3087 = vunpack.c.h.b16 %v2326
    %v3088 = vunpack.c.l.b16 %v2327
    %v3089 = vunpack.c.h.b16 %v2327
    %v3090 = vunpack.c.l.b16 %v2328
    %v3091 = vunpack.c.h.b16 %v2328
    %v3092 = vunpack.c.l.b16 %v2329
    %v3093 = vunpack.c.h.b16 %v2329
    %v3094 = vunpack.c.l.b16 %v2330
    %v3095 = vunpack.c.h.b16 %v2330
    %v3096 = vunpack.c.l.b16 %v2331
    %v3097 = vunpack.c.h.b16 %v2331
    %v3098 = vunpack.c.l.b16 %v2332
    %v3099 = vunpack.c.h.b16 %v2332
    %v3100 = vunpack.c.l.b16 %v2333
    %v3101 = vunpack.c.h.b16 %v2333
    %v3102 = vunpack.c.l.b16 %v2334
    %v3103 = vunpack.c.h.b16 %v2334
    %v3104 = vunpack.c.l.b16 %v2335
    %v3105 = vunpack.c.h.b16 %v2335
    %v3106 = vunpack.c.l.b16 %v2336
    %v3107 = vunpack.c.h.b16 %v2336
    %v3108 = vunpack.c.l.b16 %v2337
    %v3109 = vunpack.c.h.b16 %v2337
    %v3110 = vunpack.c.l.b16 %v2338
    %v3111 = vunpack.c.h.b16 %v2338
    %v3112 = vunpack.c.l.b16 %v2339
    %v3113 = vunpack.c.h.b16 %v2339
    %v3114 = vunpack.c.l.b16 %v2340
    %v3115 = vunpack.c.h.b16 %v2340
    %v3116 = vunpack.c.l.b16 %v2341
    %v3117 = vunpack.c.h.b16 %v2341
    %v3118 = vunpack.c.l.b16 %v2342
    %v3119 = vunpack.c.h.b16 %v2342
    %v3120 = vunpack.c.l.b16 %v2343
    %v3121 = vunpack.c.h.b16 %v2343
    %v3122 = vunpack.c.l.b16 %v2344
    %v3123 = vunpack.c.h.b16 %v2344
    %v3124 = vunpack.c.l.b16 %v2345
    %v3125 = vunpack.c.h.b16 %v2345
    %v3126 = vunpack.c.l.b16 %v2346
    %v3127 = vunpack.c.h.b16 %v2346
    %v3128 = vunpack.c.l.b16 %v2347
    %v3129 = vunpack.c.h.b16 %v2347
    %v3130 = vunpack.c.l.b16 %v2348
    %v3131 = vunpack.c.h.b16 %v2348
    %v3132 = vunpack.c.l.b16 %v2349
    %v3133 = vunpack.c.h.b16 %v2349
    %v3134 = vunpack.c.l.b16 %v2350
    %v3135 = vunpack.c.h.b16 %v2350
    %v3136 = vunpack.c.l.b16 %v2351
    %v3137 = vunpack.c.h.b16 %v2351
    %v3138 = vunpack.c.l.b16 %v2352
    %v3139 = vunpack.c.h.b16 %v2352
    %v3140 = vunpack.c.l.b16 %v2353
    %v3141 = vunpack.c.h.b16 %v2353
    %v3142 = vunpack.c.l.b16 %v2354
    %v3143 = vunpack.c.h.b16 %v2354
    %v3144 = vunpack.c.l.b16 %v2355
    %v3145 = vunpack.c.h.b16 %v2355
    %v3146 = vunpack.c.l.b16 %v2356
    %v3147 = vunpack.c.h.b16 %v2356
    %v3148 = vunpack.c.l.b16 %v2357
    %v3149 = vunpack.c.h.b16 %v2357
    %v3150 = vunpack.c.l.b16 %v2358
    %v3151 = vunpack.c.h.b16 %v2358
    %v3152 = vunpack.c.l.b16 %v2359
    %v3153 = vunpack.c.h.b16 %v2359
    %v3154 = vunpack.c.l.b16 %v2360
    %v3155 = vunpack.c.h.b16 %v2360
    %v3156 = vunpack.c.l.b16 %v2361
    %v3157 = vunpack.c.h.b16 %v2361
    %v3158 = vunpack.c.l.b16 %v2362
    %v3159 = vunpack.c.h.b16 %v2362
    %v3160 = vunpack.c.l.b16 %v2363
    %v3161 = vunpack.c.h.b16 %v2363
    %v3162 = vunpack.c.l.b16 %v2364
    %v3163 = vunpack.c.h.b16 %v2364
    %v3164 = vunpack.c.l.b16 %v2365
    %v3165 = vunpack.c.h.b16 %v2365
    %v3166 = vunpack.c.l.b16 %v2366
    %v3167 = vunpack.c.h.b16 %v2366
    %v3168 = vunpack.c.l.b16 %v2367
    %v3169 = vunpack.c.h.b16 %v2367
    %v3170 = vunpack.c.l.b16 %v2368
    %v3171 = vunpack.c.h.b16 %v2368
    %v3172 = vunpack.c.l.b16 %v2369
    %v3173 = vunpack.c.h.b16 %v2369
    %v3174 = vunpack.c.l.b16 %v2370
    %v3175 = vunpack.c.h.b16 %v2370
    %v3176 = vunpack.c.l.b16 %v2371
    %v3177 = vunpack.c.h.b16 %v2371
    %v3178 = vunpack.c.l.b16 %v2372
    %v3179 = vunpack.c.h.b16 %v2372
    %v3180 = vunpack.c.l.b16 %v2373
    %v3181 = vunpack.c.h.b16 %v2373
    %v3182 = vunpack.c.l.b16 %v2374
    %v3183 = vunpack.c.h.b16 %v2374
    %v3184 = vunpack.c.l.b16 %v2375
    %v3185 = vunpack.c.h.b16 %v2375
    %v3186 = vunpack.c.l.b16 %v2376
    %v3187 = vunpack.c.h.b16 %v2376
    %v3188 = vunpack.c.l.b16 %v2377
    %v3189 = vunpack.c.h.b16 %v2377
    %v3190 = vunpack.c.l.b16 %v2378
    %v3191 = vunpack.c.h.b16 %v2378
    %v3192 = vunpack.c.l.b16 %v2379
    %v3193 = vunpack.c.h.b16 %v2379
    %v3194 = vunpack.c.l.b16 %v2380
    %v3195 = vunpack.c.h.b16 %v2380
    %v3196 = vunpack.c.l.b16 %v2381
    %v3197 = vunpack.c.h.b16 %v2381
    %v3198 = vunpack.c.l.b16 %v2382
    %v3199 = vunpack.c.h.b16 %v2382
    %v3200 = vunpack.c.l.b16 %v2383
    %v3201 = vunpack.c.h.b16 %v2383
    %v3202 = vunpack.c.l.b16 %v2384
    %v3203 = vunpack.c.h.b16 %v2384
    %v3204 = vunpack.c.l.b16 %v2385
    %v3205 = vunpack.c.h.b16 %v2385
    %v3206 = vunpack.c.l.b16 %v2386
    %v3207 = vunpack.c.h.b16 %v2386
    %v3208 = vunpack.c.l.b16 %v2387
    %v3209 = vunpack.c.h.b16 %v2387
    %v3210 = vunpack.c.l.b16 %v2388
    %v3211 = vunpack.c.h.b16 %v2388
    %v3212 = vunpack.c.l.b16 %v2389
    %v3213 = vunpack.c.h.b16 %v2389
    %v3214 = vunpack.c.l.b16 %v2390
    %v3215 = vunpack.c.h.b16 %v2390
    %v3216 = vunpack.c.l.b16 %v2391
    %v3217 = vunpack.c.h.b16 %v2391
    %v3218 = vunpack.c.l.b16 %v2392
    %v3219 = vunpack.c.h.b16 %v2392
    %v3220 = vunpack.c.l.b16 %v2393
    %v3221 = vunpack.c.h.b16 %v2393
    %v3222 = vunpack.c.l.b16 %v2394
    %v3223 = vunpack.c.h.b16 %v2394
    %v3224 = vunpack.c.l.b16 %v2395
    %v3225 = vunpack.c.h.b16 %v2395
    %v3226 = vunpack.c.l.b16 %v2396
    %v3227 = vunpack.c.h.b16 %v2396
    %v3228 = vunpack.c.l.b16 %v2397
    %v3229 = vunpack.c.h.b16 %v2397
    %v3230 = vunpack.c.l.b16 %v2398
    %v3231 = vunpack.c.h.b16 %v2398
    %v3232 = vunpack.c.l.b16 %v2399
    %v3233 = vunpack.c.h.b16 %v2399
    %v3234 = vunpack.c.l.b16 %v2400
    %v3235 = vunpack.c.h.b16 %v2400
    %v3236 = vunpack.c.l.b16 %v2401
    %v3237 = vunpack.c.h.b16 %v2401
    %v3238 = vunpack.c.l.b16 %v2402
    %v3239 = vunpack.c.h.b16 %v2402
    %v3240 = vunpack.c.l.b16 %v2403
    %v3241 = vunpack.c.h.b16 %v2403
    %v3242 = vunpack.c.l.b16 %v2404
    %v3243 = vunpack.c.h.b16 %v2404
    %v3244 = vunpack.c.l.b16 %v2405
    %v3245 = vunpack.c.h.b16 %v2405
    %v3246 = vunpack.c.l.b16 %v2406
    %v3247 = vunpack.c.h.b16 %v2406
    %v3248 = vunpack.c.l.b16 %v2407
    %v3249 = vunpack.c.h.b16 %v2407
    %v3250 = vunpack.c.l.b16 %v2408
    %v3251 = vunpack.c.h.b16 %v2408
    %v3252 = vunpack.c.l.b16 %v2409
    %v3253 = vunpack.c.h.b16 %v2409
    %v3254 = vunpack.c.l.b16 %v2410
    %v3255 = vunpack.c.h.b16 %v2410
    %v3256 = vunpack.c.l.b16 %v2411
    %v3257 = vunpack.c.h.b16 %v2411
    %v3258 = vunpack.c.l.b16 %v2412
    %v3259 = vunpack.c.h.b16 %v2412
    %v3260 = vunpack.c.l.b16 %v2413
    %v3261 = vunpack.c.h.b16 %v2413
    %v3262 = vunpack.c.l.b16 %v2414
    %v3263 = vunpack.c.h.b16 %v2414
    %v3264 = vunpack.c.l.b16 %v2415
    %v3265 = vunpack.c.h.b16 %v2415
    %v3266 = vunpack.c.l.b16 %v2416
    %v3267 = vunpack.c.h.b16 %v2416
    %v3268 = vunpack.c.l.b16 %v2417
    %v3269 = vunpack.c.h.b16 %v2417
    %v3270 = vunpack.c.l.b16 %v2418
    %v3271 = vunpack.c.h.b16 %v2418
    %v3272 = vunpack.c.l.b16 %v2419
    %v3273 = vunpack.c.h.b16 %v2419
    %v3274 = vunpack.c.l.b16 %v2420
    %v3275 = vunpack.c.h.b16 %v2420
    %v3276 = vunpack.c.l.b16 %v2421
    %v3277 = vunpack.c.h.b16 %v2421
    %v3278 = vunpack.c.l.b16 %v2422
    %v3279 = vunpack.c.h.b16 %v2422
    %v3280 = vunpack.c.l.b16 %v2423
    %v3281 = vunpack.c.h.b16 %v2423
    %v3282 = vunpack.c.l.b16 %v2424
    %v3283 = vunpack.c.h.b16 %v2424
    %v3284 = vunpack.c.l.b16 %v2425
    %v3285 = vunpack.c.h.b16 %v2425
    %v3286 = vunpack.c.l.b16 %v2426
    %v3287 = vunpack.c.h.b16 %v2426
    %v3288 = vunpack.c.l.b16 %v2427
    %v3289 = vunpack.c.h.b16 %v2427
    %v3290 = vunpack.c.l.b16 %v2428
    %v3291 = vunpack.c.h.b16 %v2428
    %v3292 = vunpack.c.l.b16 %v2429
    %v3293 = vunpack.c.h.b16 %v2429
    %v3294 = vunpack.c.l.b16 %v2430
    %v3295 = vunpack.c.h.b16 %v2430
    %v3296 = vunpack.c.l.b16 %v2431
    %v3297 = vunpack.c.h.b16 %v2431
    %v3298 = vunpack.c.l.b16 %v2432
    %v3299 = vunpack.c.h.b16 %v2432
    %v3300 = vunpack.c.l.b16 %v2433
    %v3301 = vunpack.c.h.b16 %v2433
    %v3302 = vunpack.c.l.b16 %v2434
    %v3303 = vunpack.c.h.b16 %v2434
    %v3304 = vunpack.c.l.b16 %v2435
    %v3305 = vunpack.c.h.b16 %v2435
    %v3306 = vunpack.c.l.b16 %v2436
    %v3307 = vunpack.c.h.b16 %v2436
    %v3308 = vunpack.c.l.b16 %v2437
    %v3309 = vunpack.c.h.b16 %v2437
    %v3310 = vunpack.c.l.b16 %v2438
    %v3311 = vunpack.c.h.b16 %v2438
    %v3312 = vunpack.c.l.b16 %v2439
    %v3313 = vunpack.c.h.b16 %v2439
    %v3314 = vunpack.c.l.b16 %v2440
    %v3315 = vunpack.c.h.b16 %v2440
    %v3316 = vunpack.c.l.b16 %v2441
    %v3317 = vunpack.c.h.b16 %v2441
    %v3318 = vunpack.c.l.b16 %v2442
    %v3319 = vunpack.c.h.b16 %v2442
    %v3320 = vunpack.c.l.b16 %v2443
    %v3321 = vunpack.c.h.b16 %v2443
    %v3322 = vunpack.c.l.b16 %v2444
    %v3323 = vunpack.c.h.b16 %v2444
    %v3324 = vunpack.c.l.b16 %v2445
    %v3325 = vunpack.c.h.b16 %v2445
    %v3326 = vunpack.c.l.b16 %v2446
    %v3327 = vunpack.c.h.b16 %v2446
    %v3328 = vunpack.c.l.b16 %v2447
    %v3329 = vunpack.c.h.b16 %v2447
    %v3330 = vunpack.c.l.b16 %v2448
    %v3331 = vunpack.c.h.b16 %v2448
    %v3332 = vunpack.c.l.b16 %v2449
    %v3333 = vunpack.c.h.b16 %v2449
    %v3334 = vunpack.c.l.b16 %v2450
    %v3335 = vunpack.c.h.b16 %v2450
    %v3336 = vunpack.c.l.b16 %v2451
    %v3337 = vunpack.c.h.b16 %v2451
    %v3338 = vunpack.c.l.b16 %v2452
    %v3339 = vunpack.c.h.b16 %v2452
    %v3340 = vunpack.c.l.b16 %v2453
    %v3341 = vunpack.c.h.b16 %v2453
    %v3342 = vunpack.c.l.b16 %v2454
    %v3343 = vunpack.c.h.b16 %v2454
    %v3344 = vunpack.c.l.b16 %v2455
    %v3345 = vunpack.c.h.b16 %v2455
    %v3346 = vunpack.c.l.b16 %v2456
    %v3347 = vunpack.c.h.b16 %v2456
    %v3348 = vunpack.c.l.b16 %v2457
    %v3349 = vunpack.c.h.b16 %v2457
    %v3350 = vunpack.c.l.b16 %v2458
    %v3351 = vunpack.c.h.b16 %v2458
    %v3352 = vunpack.c.l.b16 %v2459
    %v3353 = vunpack.c.h.b16 %v2459
    %v3354 = vunpack.c.l.b16 %v2460
    %v3355 = vunpack.c.h.b16 %v2460
    %v3356 = vunpack.c.l.b16 %v2461
    %v3357 = vunpack.c.h.b16 %v2461
    %v3358 = vpack.c.b16 %v2788, %v2782
    %v3359 = vpack.c.b16 %v2789, %v2783
    %v3360 = vpack.c.b16 %v2790, %v2784
    %v3361 = vpack.c.b16 %v2791, %v2785
    %v3362 = vpack.c.b16 %v2792, %v2786
    %v3363 = vpack.c.b16 %v2793, %v2787
    %v3364 = vpack.c.b16 %v2800, %v2794
    %v3365 = vpack.c.b16 %v2801, %v2795
    %v3366 = vpack.c.b16 %v2802, %v2796
    %v3367 = vpack.c.b16 %v2803, %v2797
    %v3368 = vpack.c.b16 %v2804, %v2798
    %v3369 = vpack.c.b16 %v2805, %v2799
    %v3370 = vpack.c.b16 %v2812, %v2806
    %v3371 = vpack.c.b16 %v2813, %v2807
    %v3372 = vpack.c.b16 %v2814, %v2808
    %v3373 = vpack.c.b16 %v2815, %v2809
    %v3374 = vpack.c.b16 %v2816, %v2810
    %v3375 = vpack.c.b16 %v2817, %v2811
    %v3376 = vpack.c.b16 %v2824, %v2818
    %v3377 = vpack.c.b16 %v2825, %v2819
    %v3378 = vpack.c.b16 %v2826, %v2820
    %v3379 = vpack.c.b16 %v2827, %v2821
    %v3380 = vpack.c.b16 %v2828, %v2822
    %v3381 = vpack.c.b16 %v2829, %v2823
    %v3382 = vpack.c.b16 %v2836, %v2830
    %v3383 = vpack.c.b16 %v2837, %v2831
    %v3384 = vpack.c.b16 %v2838, %v2832
    %v3385 = vpack.c.b16 %v2839, %v2833
    %v3386 = vpack.c.b16 %v2840, %v2834
    %v3387 = vpack.c.b16 %v2841, %v2835
    %v3388 = vpack.c.b16 %v2848, %v2842
    %v3389 = vpack.c.b16 %v2849, %v2843
    %v3390 = vpack.c.b16 %v2850, %v2844
    %v3391 = vpack.c.b16 %v2851, %v2845
    %v3392 = vpack.c.b16 %v2852, %v2846
    %v3393 = vpack.c.b16 %v2853, %v2847
    %v3394 = vpack.c.b16 %v2860, %v2854
    %v3395 = vpack.c.b16 %v2861, %v2855
    %v3396 = vpack.c.b16 %v2862, %v2856
    %v3397 = vpack.c.b16 %v2863, %v2857
    %v3398 = vpack.c.b16 %v2864, %v2858
    %v3399 = vpack.c.b16 %v2865, %v2859
    %v3400 = vpack.c.b16 %v2872, %v2866
    %v3401 = vpack.c.b16 %v2873, %v2867
    %v3402 = vpack.c.b16 %v2874, %v2868
    %v3403 = vpack.c.b16 %v2875, %v2869
    %v3404 = vpack.c.b16 %v2876, %v2870
    %v3405 = vpack.c.b16 %v2877, %v2871
    %v3406 = vpack.c.b16 %v2884, %v2878
    %v3407 = vpack.c.b16 %v2885, %v2879
    %v3408 = vpack.c.b16 %v2886, %v2880
    %v3409 = vpack.c.b16 %v2887, %v2881
    %v3410 = vpack.c.b16 %v2888, %v2882
    %v3411 = vpack.c.b16 %v2889, %v2883
    %v3412 = vpack.c.b16 %v2896, %v2890
    %v3413 = vpack.c.b16 %v2897, %v2891
    %v3414 = vpack.c.b16 %v2898, %v2892
    %v3415 = vpack.c.b16 %v2899, %v2893
    %v3416 = vpack.c.b16 %v2900, %v2894
    %v3417 = vpack.c.b16 %v2901, %v2895
    %v3418 = vpack.c.b16 %v2908, %v2902
    %v3419 = vpack.c.b16 %v2909, %v2903
    %v3420 = vpack.c.b16 %v2910, %v2904
    %v3421 = vpack.c.b16 %v2911, %v2905
    %v3422 = vpack.c.b16 %v2912, %v2906
    %v3423 = vpack.c.b16 %v2913, %v2907
    %v3424 = vpack.c.b16 %v2920, %v2914
    %v3425 = vpack.c.b16 %v2921, %v2915
    %v3426 = vpack.c.b16 %v2922, %v2916
    %v3427 = vpack.c.b16 %v2923, %v2917
    %v3428 = vpack.c.b16 %v2924, %v2918
    %v3429 = vpack.c.b16 %v2925, %v2919
    %v3430 = vpack.c.b16 %v2932, %v2926
    %v3431 = vpack.c.b16 %v2933, %v2927
    %v3432 = vpack.c.b16 %v2934, %v2928
    %v3433 = vpack.c.b16 %v2935, %v2929
    %v3434 = vpack.c.b16 %v2936, %v2930
    %v3435 = vpack.c.b16 %v2937, %v2931
    %v3436 = vpack.c.b16 %v2944, %v2938
    %v3437 = vpack.c.b16 %v2945, %v2939
    %v3438 = vpack.c.b16 %v2946, %v2940
    %v3439 = vpack.c.b16 %v2947, %v2941
    %v3440 = vpack.c.b16 %v2948, %v2942
    %v3441 = vpack.c.b16 %v2949, %v2943
    %v3442 = vpack.c.b16 %v2956, %v2950
    %v3443 = vpack.c.b16 %v2957, %v2951
    %v3444 = vpack.c.b16 %v2958, %v2952
    %v3445 = vpack.c.b16 %v2959, %v2953
    %v3446 = vpack.c.b16 %v2960, %v2954
    %v3447 = vpack.c.b16 %v2961, %v2955
    %v3448 = vpack.c.b16 %v2968, %v2962
    %v3449 = vpack.c.b16 %v2969, %v2963
    %v3450 = vpack.c.b16 %v2970, %v2964
    %v3451 = vpack.c.b16 %v2971, %v2965
    %v3452 = vpack.c.b16 %v2972, %v2966
    %v3453 = vpack.c.b16 %v2973, %v2967
    %v3454 = vpack.c.b16 %v2980, %v2974
    %v3455 = vpack.c.b16 %v2981, %v2975
    %v3456 = vpack.c.b16 %v2982, %v2976
    %v3457 = vpack.c.b16 %v2983, %v2977
    %v3458 = vpack.c.b16 %v2984, %v2978
    %v3459 = vpack.c.b16 %v2985, %v2979
    %v3460 = vpack.c.b16 %v2992, %v2986
    %v3461 = vpack.c.b16 %v2993, %v2987
    %v3462 = vpack.c.b16 %v2994, %v2988
    %v3463 = vpack.c.b16 %v2995, %v2989
    %v3464 = vpack.c.b16 %v2996, %v2990
    %v3465 = vpack.c.b16 %v2997, %v2991
    %v3466 = vpack.c.b16 %v3004, %v2998
    %v3467 = vpack.c.b16 %v3005, %v2999
    %v3468 = vpack.c.b16 %v3006, %v3000
    %v3469 = vpack.c.b16 %v3007, %v3001
    %v3470 = vpack.c.b16 %v3008, %v3002
    %v3471 = vpack.c.b16 %v3009, %v3003
    %v3472 = vpack.c.b16 %v3016, %v3010
    %v3473 = vpack.c.b16 %v3017, %v3011
    %v3474 = vpack.c.b16 %v3018, %v3012
    %v3475 = vpack.c.b16 %v3019, %v3013
    %v3476 = vpack.c.b16 %v3020, %v3014
    %v3477 = vpack.c.b16 %v3021, %v3015
    %v3478 = vpack.c.b16 %v3028, %v3022
    %v3479 = vpack.c.b16 %v3029, %v3023
    %v3480 = vpack.c.b16 %v3030, %v3024
    %v3481 = vpack.c.b16 %v3031, %v3025
    %v3482 = vpack.c.b16 %v3032, %v3026
    %v3483 = vpack.c.b16 %v3033, %v3027
    %v3484 = vpack.c.b16 %v3040, %v3034
    %v3485 = vpack.c.b16 %v3041, %v3035
    %v3486 = vpack.c.b16 %v3042, %v3036
    %v3487 = vpack.c.b16 %v3043, %v3037
    %v3488 = vpack.c.b16 %v3044, %v3038
    %v3489 = vpack.c.b16 %v3045, %v3039
    %v3490 = vpack.c.b16 %v3052, %v3046
    %v3491 = vpack.c.b16 %v3053, %v3047
    %v3492 = vpack.c.b16 %v3054, %v3048
    %v3493 = vpack.c.b16 %v3055, %v3049
    %v3494 = vpack.c.b16 %v3056, %v3050
    %v3495 = vpack.c.b16 %v3057, %v3051
    %v3496 = vpack.c.b16 %v3064, %v3058
    %v3497 = vpack.c.b16 %v3065, %v3059
    %v3498 = vpack.c.b16 %v3066, %v3060
    %v3499 = vpack.c.b16 %v3067, %v3061
    %v3500 = vpack.c.b16 %v3068, %v3062
    %v3501 = vpack.c.b16 %v3069, %v3063
    %v3502 = vpack.c.b16 %v3076, %v3070
    %v3503 = vpack.c.b16 %v3077, %v3071
    %v3504 = vpack.c.b16 %v3078, %v3072
    %v3505 = vpack.c.b16 %v3079, %v3073
    %v3506 = vpack.c.b16 %v3080, %v3074
    %v3507 = vpack.c.b16 %v3081, %v3075
    %v3508 = vpack.c.b16 %v3088, %v3082
    %v3509 = vpack.c.b16 %v3089, %v3083
    %v3510 = vpack.c.b16 %v3090, %v3084
    %v3511 = vpack.c.b16 %v3091, %v3085
    %v3512 = vpack.c.b16 %v3092, %v3086
    %v3513 = vpack.c.b16 %v3093, %v3087
    %v3514 = vpack.c.b16 %v3100, %v3094
    %v3515 = vpack.c.b16 %v3101, %v3095
    %v3516 = vpack.c.b16 %v3102, %v3096
    %v3517 = vpack.c.b16 %v3103, %v3097
    %v3518 = vpack.c.b16 %v3104, %v3098
    %v3519 = vpack.c.b16 %v3105, %v3099
    %v3520 = vpack.c.b16 %v3112, %v3106
    %v3521 = vpack.c.b16 %v3113, %v3107
    %v3522 = vpack.c.b16 %v3114, %v3108
    %v3523 = vpack.c.b16 %v3115, %v3109
    %v3524 = vpack.c.b16 %v3116, %v3110
    %v3525 = vpack.c.b16 %v3117, %v3111
    %v3526 = vpack.c.b16 %v3124, %v3118
    %v3527 = vpack.c.b16 %v3125, %v3119
    %v3528 = vpack.c.b16 %v3126, %v3120
    %v3529 = vpack.c.b16 %v3127, %v3121
    %v3530 = vpack.c.b16 %v3128, %v3122
    %v3531 = vpack.c.b16 %v3129, %v3123
    %v3532 = vpack.c.b16 %v3136, %v3130
    %v3533 = vpack.c.b16 %v3137, %v3131
    %v3534 = vpack.c.b16 %v3138, %v3132
    %v3535 = vpack.c.b16 %v3139, %v3133
    %v3536 = vpack.c.b16 %v3140, %v3134
    %v3537 = vpack.c.b16 %v3141, %v3135
    %v3538 = vpack.c.b16 %v3148, %v3142
    %v3539 = vpack.c.b16 %v3149, %v3143
    %v3540 = vpack.c.b16 %v3150, %v3144
    %v3541 = vpack.c.b16 %v3151, %v3145
    %v3542 = vpack.c.b16 %v3152, %v3146
    %v3543 = vpack.c.b16 %v3153, %v3147
    %v3544 = vpack.c.b16 %v3160, %v3154
    %v3545 = vpack.c.b16 %v3161, %v3155
    %v3546 = vpack.c.b16 %v3162, %v3156
    %v3547 = vpack.c.b16 %v3163, %v3157
    %v3548 = vpack.c.b16 %v3164, %v3158
    %v3549 = vpack.c.b16 %v3165, %v3159
    %v3550 = vpack.c.b16 %v3172, %v3166
    %v3551 = vpack.c.b16 %v3173, %v3167
    %v3552 = vpack.c.b16 %v3174, %v3168
    %v3553 = vpack.c.b16 %v3175, %v3169
    %v3554 = vpack.c.b16 %v3176, %v3170
    %v3555 = vpack.c.b16 %v3177, %v3171
    %v3556 = vpack.c.b16 %v3184, %v3178
    %v3557 = vpack.c.b16 %v3185, %v3179
    %v3558 = vpack.c.b16 %v3186, %v3180
    %v3559 = vpack.c.b16 %v3187, %v3181
    %v3560 = vpack.c.b16 %v3188, %v3182
    %v3561 = vpack.c.b16 %v3189, %v3183
    %v3562 = vpack.c.b16 %v3196, %v3190
    %v3563 = vpack.c.b16 %v3197, %v3191
    %v3564 = vpack.c.b16 %v3198, %v3192
    %v3565 = vpack.c.b16 %v3199, %v3193
    %v3566 = vpack.c.b16 %v3200, %v3194
    %v3567 = vpack.c.b16 %v3201, %v3195
    %v3568 = vpack.c.b16 %v3208, %v3202
    %v3569 = vpack.c.b16 %v3209, %v3203
    %v3570 = vpack.c.b16 %v3210, %v3204
    %v3571 = vpack.c.b16 %v3211, %v3205
    %v3572 = vpack.c.b16 %v3212, %v3206
    %v3573 = vpack.c.b16 %v3213, %v3207
    %v3574 = vpack.c.b16 %v3220, %v3214
    %v3575 = vpack.c.b16 %v3221, %v3215
    %v3576 = vpack.c.b16 %v3222, %v3216
    %v3577 = vpack.c.b16 %v3223, %v3217
    %v3578 = vpack.c.b16 %v3224, %v3218
    %v3579 = vpack.c.b16 %v3225, %v3219
    %v3580 = vpack.c.b16 %v3232, %v3226
    %v3581 = vpack.c.b16 %v3233, %v3227
    %v3582 = vpack.c.b16 %v3234, %v3228
    %v3583 = vpack.c.b16 %v3235, %v3229
    %v3584 = vpack.c.b16 %v3236, %v3230
    %v3585 = vpack.c.b16 %v3237, %v3231
    %v3586 = vpack.c.b16 %v3244, %v3238
    %v3587 = vpack.c.b16 %v3245, %v3239
    %v3588 = vpack.c.b16 %v3246, %v3240
    %v3589 = vpack.c.b16 %v3247, %v3241
    %v3590 = vpack.c.b16 %v3248, %v3242
    %v3591 = vpack.c.b16 %v3249, %v3243
    %v3592 = vpack.c.b16 %v3256, %v3250
    %v3593 = vpack.c.b16 %v3257, %v3251
    %v3594 = vpack.c.b16 %v3258, %v3252
    %v3595 = vpack.c.b16 %v3259, %v3253
    %v3596 = vpack.c.b16 %v3260, %v3254
    %v3597 = vpack.c.b16 %v3261, %v3255
    %v3598 = vpack.c.b16 %v3268, %v3262
    %v3599 = vpack.c.b16 %v3269, %v3263
    %v3600 = vpack.c.b16 %v3270, %v3264
    %v3601 = vpack.c.b16 %v3271, %v3265
    %v3602 = vpack.c.b16 %v3272, %v3266
    %v3603 = vpack.c.b16 %v3273, %v3267
    %v3604 = vpack.c.b16 %v3280, %v3274
    %v3605 = vpack.c.b16 %v3281, %v3275
    %v3606 = vpack.c.b16 %v3282, %v3276
    %v3607 = vpack.c.b16 %v3283, %v3277
    %v3608 = vpack.c.b16 %v3284, %v3278
    %v3609 = vpack.c.b16 %v3285, %v3279
    %v3610 = vpack.c.b16 %v3292, %v3286
    %v3611 = vpack.c.b16 %v3293, %v3287
    %v3612 = vpack.c.b16 %v3294, %v3288
    %v3613 = vpack.c.b16 %v3295, %v3289
    %v3614 = vpack.c.b16 %v3296, %v3290
    %v3615 = vpack.c.b16 %v3297, %v3291
    %v3616 = vpack.c.b16 %v3304, %v3298
    %v3617 = vpack.c.b16 %v3305, %v3299
    %v3618 = vpack.c.b16 %v3306, %v3300
    %v3619 = vpack.c.b16 %v3307, %v3301
    %v3620 = vpack.c.b16 %v3308, %v3302
    %v3621 = vpack.c.b16 %v3309, %v3303
    %v3622 = vpack.c.b16 %v3316, %v3310
    %v3623 = vpack.c.b16 %v3317, %v3311
    %v3624 = vpack.c.b16 %v3318, %v3312
    %v3625 = vpack.c.b16 %v3319, %v3313
    %v3626 = vpack.c.b16 %v3320, %v3314
    %v3627 = vpack.c.b16 %v3321, %v3315
    %v3628 = vpack.c.b16 %v3328, %v3322
    %v3629 = vpack.c.b16 %v3329, %v3323
    %v3630 = vpack.c.b16 %v3330, %v3324
    %v3631 = vpack.c.b16 %v3331, %v3325
    %v3632 = vpack.c.b16 %v3332, %v3326
    %v3633 = vpack.c.b16 %v3333, %v3327
    %v3634 = vpack.c.b16 %v3340, %v3334
    %v3635 = vpack.c.b16 %v3341, %v3335
    %v3636 = vpack.c.b16 %v3342, %v3336
    %v3637 = vpack.c.b16 %v3343, %v3337
    %v3638 = vpack.c.b16 %v3344, %v3338
    %v3639 = vpack.c.b16 %v3345, %v3339
    %v3640 = vpack.c.b16 %v3352, %v3346
    %v3641 = vpack.c.b16 %v3353, %v3347
    %v3642 = vpack.c.b16 %v3354, %v3348
    %v3643 = vpack.c.b16 %v3355, %v3349
    %v3644 = vpack.c.b16 %v3356, %v3350
    %v3645 = vpack.c.b16 %v3357, %v3351
    %3934 = vmatprep.subr.bf16.mxu0 %v3359
    %3935 = vmatpush1.bf16.msra.mxu0 %v3358
    %3936 = vmatprep.subr.bf16.mxu0 %v3365
    %3937 = vmatpush1.bf16.msra.mxu0 %v3364
    %3938 = vmatprep.subr.bf16.mxu0 %v3371
    %3939 = vmatpush1.bf16.msra.mxu0 %v3370
    %3940 = vmatprep.subr.bf16.mxu0 %v3377
    %3941 = vmatpush1.bf16.msra.mxu0 %v3376
    %3942 = vmatprep.subr.bf16.mxu0 %v3383
    %3943 = vmatpush1.bf16.msra.mxu0 %v3382
    %3944 = vmatprep.subr.bf16.mxu0 %v3389
    %3945 = vmatpush1.bf16.msra.mxu0 %v3388
    %3946 = vmatprep.subr.bf16.mxu0 %v3395
    %3947 = vmatpush1.bf16.msra.mxu0 %v3394
    %3948 = vmatprep.subr.bf16.mxu0 %v3401
    %3949 = vmatpush1.bf16.msra.mxu0 %v3400
    %3950 = vmatprep.subr.bf16.mxu0 %v3407
    %3951 = vmatpush1.bf16.msra.mxu0 %v3406
    %3952 = vmatprep.subr.bf16.mxu0 %v3413
    %3953 = vmatpush1.bf16.msra.mxu0 %v3412
    %3954 = vmatprep.subr.bf16.mxu0 %v3419
    %3955 = vmatpush1.bf16.msra.mxu0 %v3418
    %3956 = vmatprep.subr.bf16.mxu0 %v3425
    %3957 = vmatpush1.bf16.msra.mxu0 %v3424
    %3958 = vmatprep.subr.bf16.mxu0 %v3431
    %3959 = vmatpush1.bf16.msra.mxu0 %v3430
    %3960 = vmatprep.subr.bf16.mxu0 %v3437
    %3961 = vmatpush1.bf16.msra.mxu0 %v3436
    %3962 = vmatprep.subr.bf16.mxu0 %v3443
    %3963 = vmatpush1.bf16.msra.mxu0 %v3442
    %3964 = vmatprep.subr.bf16.mxu0 %v3449
    %3965 = vmatpush1.bf16.msra.mxu0 %v3448
    %3966 = vmatprep.mubr.bf16.mxu0 %v2169
    %3967 = vmatmul.mubr.bf16.gmra.mrb[0].mxu0 %v2168
    %v3968 = vpop.f32.mrb[0].mxu0
    %v3969 = vadd.f32 %v2467, %v3968
    %v3970 = vpop.f32.mrb[0].mxu0
    %v3971 = vadd.f32 %v2471, %v3970
    %v3972 = vpop.f32.mrb[0].mxu0
    %v3973 = vpop.f32.mrb[0].mxu0
    %3974 = vdwg.mxu0
    %3975 = vmatprep.subr.bf16.mxu0 %v3455
    %3976 = vmatpush1.bf16.msra.mxu0 %v3454
    %3977 = vmatprep.subr.bf16.mxu0 %v3461
    %3978 = vmatpush1.bf16.msra.mxu0 %v3460
    %3979 = vmatprep.subr.bf16.mxu0 %v3467
    %3980 = vmatpush1.bf16.msra.mxu0 %v3466
    %3981 = vmatprep.subr.bf16.mxu0 %v3473
    %3982 = vmatpush1.bf16.msra.mxu0 %v3472
    %3983 = vmatprep.subr.bf16.mxu0 %v3479
    %3984 = vmatpush1.bf16.msra.mxu0 %v3478
    %3985 = vmatprep.subr.bf16.mxu0 %v3485
    %3986 = vmatpush1.bf16.msra.mxu0 %v3484
    %3987 = vmatprep.subr.bf16.mxu0 %v3491
    %3988 = vmatpush1.bf16.msra.mxu0 %v3490
    %3989 = vmatprep.subr.bf16.mxu0 %v3497
    %3990 = vmatpush1.bf16.msra.mxu0 %v3496
    %3991 = vmatprep.subr.bf16.mxu0 %v3503
    %3992 = vmatpush1.bf16.msra.mxu0 %v3502
    %3993 = vmatprep.subr.bf16.mxu0 %v3509
    %3994 = vmatpush1.bf16.msra.mxu0 %v3508
    %3995 = vmatprep.subr.bf16.mxu0 %v3515
    %3996 = vmatpush1.bf16.msra.mxu0 %v3514
    %3997 = vmatprep.subr.bf16.mxu0 %v3521
    %3998 = vmatpush1.bf16.msra.mxu0 %v3520
    %3999 = vmatprep.subr.bf16.mxu0 %v3527
    %4000 = vmatpush1.bf16.msra.mxu0 %v3526
    %4001 = vmatprep.subr.bf16.mxu0 %v3533
    %4002 = vmatpush1.bf16.msra.mxu0 %v3532
    %4003 = vmatprep.subr.bf16.mxu0 %v3539
    %4004 = vmatpush1.bf16.msra.mxu0 %v3538
    %4005 = vmatprep.subr.bf16.mxu0 %v3545
    %4006 = vmatpush1.bf16.msra.mxu0 %v3544
    %4007 = vmatprep.mubr.bf16.mxu0 %v2171
    %4008 = vmatmul.mubr.bf16.gmra.mrb[0].mxu0 %v2170
    %v4009 = vpop.f32.mrb[0].mxu0
    %v4010 = vadd.f32 %v3969, %v4009
    %v4011 = vpop.f32.mrb[0].mxu0
    %v4012 = vadd.f32 %v3971, %v4011
    %v4013 = vpop.f32.mrb[0].mxu0
    %v4014 = vpop.f32.mrb[0].mxu0
    %4015 = vdwg.mxu0
    %4016 = vmatprep.subr.bf16.mxu0 %v3551
    %4017 = vmatpush1.bf16.msra.mxu0 %v3550
    %4018 = vmatprep.subr.bf16.mxu0 %v3557
    %4019 = vmatpush1.bf16.msra.mxu0 %v3556
    %4020 = vmatprep.subr.bf16.mxu0 %v3563
    %4021 = vmatpush1.bf16.msra.mxu0 %v3562
    %4022 = vmatprep.subr.bf16.mxu0 %v3569
    %4023 = vmatpush1.bf16.msra.mxu0 %v3568
    %4024 = vmatprep.subr.bf16.mxu0 %v3575
    %4025 = vmatpush1.bf16.msra.mxu0 %v3574
    %4026 = vmatprep.subr.bf16.mxu0 %v3581
    %4027 = vmatpush1.bf16.msra.mxu0 %v3580
    %4028 = vmatprep.subr.bf16.mxu0 %v3587
    %4029 = vmatpush1.bf16.msra.mxu0 %v3586
    %4030 = vmatprep.subr.bf16.mxu0 %v3593
    %4031 = vmatpush1.bf16.msra.mxu0 %v3592
    %4032 = vmatprep.subr.bf16.mxu0 %v3599
    %4033 = vmatpush1.bf16.msra.mxu0 %v3598
    %4034 = vmatprep.subr.bf16.mxu0 %v3605
    %4035 = vmatpush1.bf16.msra.mxu0 %v3604
    %4036 = vmatprep.subr.bf16.mxu0 %v3611
    %4037 = vmatpush1.bf16.msra.mxu0 %v3610
    %4038 = vmatprep.subr.bf16.mxu0 %v3617
    %4039 = vmatpush1.bf16.msra.mxu0 %v3616
    %4040 = vmatprep.subr.bf16.mxu0 %v3623
    %4041 = vmatpush1.bf16.msra.mxu0 %v3622
    %4042 = vmatprep.subr.bf16.mxu0 %v3629
    %4043 = vmatpush1.bf16.msra.mxu0 %v3628
    %4044 = vmatprep.subr.bf16.mxu0 %v3635
    %4045 = vmatpush1.bf16.msra.mxu0 %v3634
    %4046 = vmatprep.subr.bf16.mxu0 %v3641
    %4047 = vmatpush1.bf16.msra.mxu0 %v3640
    %4048 = vmatprep.mubr.bf16.mxu0 %v2173
    %4049 = vmatmul.mubr.bf16.gmra.mrb[0].mxu0 %v2172
    %v4050 = vpop.f32.mrb[0].mxu0
    %v4051 = vadd.f32 %v4010, %v4050
    %v4052 = vpop.f32.mrb[0].mxu0
    %v4053 = vadd.f32 %v4012, %v4052
    %v4054 = vpop.f32.mrb[0].mxu0
    %v4055 = vpop.f32.mrb[0].mxu0
    %4056 = vdwg.mxu0
    %4057 = vmatprep.subr.bf16.mxu0 %v3361
    %4058 = vmatpush1.bf16.msra.mxu0 %v3360
    %4059 = vmatprep.subr.bf16.mxu0 %v3367
    %4060 = vmatpush1.bf16.msra.mxu0 %v3366
    %4061 = vmatprep.subr.bf16.mxu0 %v3373
    %4062 = vmatpush1.bf16.msra.mxu0 %v3372
    %4063 = vmatprep.subr.bf16.mxu0 %v3379
    %4064 = vmatpush1.bf16.msra.mxu0 %v3378
    %4065 = vmatprep.subr.bf16.mxu0 %v3385
    %4066 = vmatpush1.bf16.msra.mxu0 %v3384
    %4067 = vmatprep.subr.bf16.mxu0 %v3391
    %4068 = vmatpush1.bf16.msra.mxu0 %v3390
    %4069 = vmatprep.subr.bf16.mxu0 %v3397
    %4070 = vmatpush1.bf16.msra.mxu0 %v3396
    %4071 = vmatprep.subr.bf16.mxu0 %v3403
    %4072 = vmatpush1.bf16.msra.mxu0 %v3402
    %4073 = vmatprep.subr.bf16.mxu0 %v3409
    %4074 = vmatpush1.bf16.msra.mxu0 %v3408
    %4075 = vmatprep.subr.bf16.mxu0 %v3415
    %4076 = vmatpush1.bf16.msra.mxu0 %v3414
    %4077 = vmatprep.subr.bf16.mxu0 %v3421
    %4078 = vmatpush1.bf16.msra.mxu0 %v3420
    %4079 = vmatprep.subr.bf16.mxu0 %v3427
    %4080 = vmatpush1.bf16.msra.mxu0 %v3426
    %4081 = vmatprep.subr.bf16.mxu0 %v3433
    %4082 = vmatpush1.bf16.msra.mxu0 %v3432
    %4083 = vmatprep.subr.bf16.mxu0 %v3439
    %4084 = vmatpush1.bf16.msra.mxu0 %v3438
    %4085 = vmatprep.subr.bf16.mxu0 %v3445
    %4086 = vmatpush1.bf16.msra.mxu0 %v3444
    %4087 = vmatprep.subr.bf16.mxu0 %v3451
    %4088 = vmatpush1.bf16.msra.mxu0 %v3450
    %4089 = vmatprep.mubr.bf16.mxu0 %v2169
    %4090 = vmatmul.mubr.bf16.gmra.mrb[0].mxu0 %v2168
    %v4091 = vpop.f32.mrb[0].mxu0
    %v4092 = vadd.f32 %v2475, %v4091
    %v4093 = vpop.f32.mrb[0].mxu0
    %v4094 = vadd.f32 %v2479, %v4093
    %v4095 = vpop.f32.mrb[0].mxu0
    %v4096 = vpop.f32.mrb[0].mxu0
    %4097 = vdwg.mxu0
    %4098 = vmatprep.subr.bf16.mxu0 %v3457
    %4099 = vmatpush1.bf16.msra.mxu0 %v3456
    %4100 = vmatprep.subr.bf16.mxu0 %v3463
    %4101 = vmatpush1.bf16.msra.mxu0 %v3462
    %4102 = vmatprep.subr.bf16.mxu0 %v3469
    %4103 = vmatpush1.bf16.msra.mxu0 %v3468
    %4104 = vmatprep.subr.bf16.mxu0 %v3475
    %4105 = vmatpush1.bf16.msra.mxu0 %v3474
    %4106 = vmatprep.subr.bf16.mxu0 %v3481
    %4107 = vmatpush1.bf16.msra.mxu0 %v3480
    %4108 = vmatprep.subr.bf16.mxu0 %v3487
    %4109 = vmatpush1.bf16.msra.mxu0 %v3486
    %4110 = vmatprep.subr.bf16.mxu0 %v3493
    %4111 = vmatpush1.bf16.msra.mxu0 %v3492
    %4112 = vmatprep.subr.bf16.mxu0 %v3499
    %4113 = vmatpush1.bf16.msra.mxu0 %v3498
    %4114 = vmatprep.subr.bf16.mxu0 %v3505
    %4115 = vmatpush1.bf16.msra.mxu0 %v3504
    %4116 = vmatprep.subr.bf16.mxu0 %v3511
    %4117 = vmatpush1.bf16.msra.mxu0 %v3510
    %4118 = vmatprep.subr.bf16.mxu0 %v3517
    %4119 = vmatpush1.bf16.msra.mxu0 %v3516
    %4120 = vmatprep.subr.bf16.mxu0 %v3523
    %4121 = vmatpush1.bf16.msra.mxu0 %v3522
    %4122 = vmatprep.subr.bf16.mxu0 %v3529
    %4123 = vmatpush1.bf16.msra.mxu0 %v3528
    %4124 = vmatprep.subr.bf16.mxu0 %v3535
    %4125 = vmatpush1.bf16.msra.mxu0 %v3534
    %4126 = vmatprep.subr.bf16.mxu0 %v3541
    %4127 = vmatpush1.bf16.msra.mxu0 %v3540
    %4128 = vmatprep.subr.bf16.mxu0 %v3547
    %4129 = vmatpush1.bf16.msra.mxu0 %v3546
    %4130 = vmatprep.mubr.bf16.mxu0 %v2171
    %4131 = vmatmul.mubr.bf16.gmra.mrb[0].mxu0 %v2170
    %v4132 = vpop.f32.mrb[0].mxu0
    %v4133 = vadd.f32 %v4092, %v4132
    %v4134 = vpop.f32.mrb[0].mxu0
    %v4135 = vadd.f32 %v4094, %v4134
    %v4136 = vpop.f32.mrb[0].mxu0
    %v4137 = vpop.f32.mrb[0].mxu0
    %4138 = vdwg.mxu0
    %4139 = vmatprep.subr.bf16.mxu0 %v3553
    %4140 = vmatpush1.bf16.msra.mxu0 %v3552
    %4141 = vmatprep.subr.bf16.mxu0 %v3559
    %4142 = vmatpush1.bf16.msra.mxu0 %v3558
    %4143 = vmatprep.subr.bf16.mxu0 %v3565
    %4144 = vmatpush1.bf16.msra.mxu0 %v3564
    %4145 = vmatprep.subr.bf16.mxu0 %v3571
    %4146 = vmatpush1.bf16.msra.mxu0 %v3570
    %4147 = vmatprep.subr.bf16.mxu0 %v3577
    %4148 = vmatpush1.bf16.msra.mxu0 %v3576
    %4149 = vmatprep.subr.bf16.mxu0 %v3583
    %4150 = vmatpush1.bf16.msra.mxu0 %v3582
    %4151 = vmatprep.subr.bf16.mxu0 %v3589
    %4152 = vmatpush1.bf16.msra.mxu0 %v3588
    %4153 = vmatprep.subr.bf16.mxu0 %v3595
    %4154 = vmatpush1.bf16.msra.mxu0 %v3594
    %4155 = vmatprep.subr.bf16.mxu0 %v3601
    %4156 = vmatpush1.bf16.msra.mxu0 %v3600
    %4157 = vmatprep.subr.bf16.mxu0 %v3607
    %4158 = vmatpush1.bf16.msra.mxu0 %v3606
    %4159 = vmatprep.subr.bf16.mxu0 %v3613
    %4160 = vmatpush1.bf16.msra.mxu0 %v3612
    %4161 = vmatprep.subr.bf16.mxu0 %v3619
    %4162 = vmatpush1.bf16.msra.mxu0 %v3618
    %4163 = vmatprep.subr.bf16.mxu0 %v3625
    %4164 = vmatpush1.bf16.msra.mxu0 %v3624
    %4165 = vmatprep.subr.bf16.mxu0 %v3631
    %4166 = vmatpush1.bf16.msra.mxu0 %v3630
    %4167 = vmatprep.subr.bf16.mxu0 %v3637
    %4168 = vmatpush1.bf16.msra.mxu0 %v3636
    %4169 = vmatprep.subr.bf16.mxu0 %v3643
    %4170 = vmatpush1.bf16.msra.mxu0 %v3642
    %4171 = vmatprep.mubr.bf16.mxu0 %v2173
    %4172 = vmatmul.mubr.bf16.gmra.mrb[0].mxu0 %v2172
    %v4173 = vpop.f32.mrb[0].mxu0
    %v4174 = vadd.f32 %v4133, %v4173
    %v4175 = vpop.f32.mrb[0].mxu0
    %v4176 = vadd.f32 %v4135, %v4175
    %v4177 = vpop.f32.mrb[0].mxu0
    %v4178 = vpop.f32.mrb[0].mxu0
    %4179 = vdwg.mxu0
    %4180 = vmatprep.subr.bf16.mxu0 %v3363
    %4181 = vmatpush1.bf16.msra.mxu0 %v3362
    %4182 = vmatprep.subr.bf16.mxu0 %v3369
    %4183 = vmatpush1.bf16.msra.mxu0 %v3368
    %4184 = vmatprep.subr.bf16.mxu0 %v3375
    %4185 = vmatpush1.bf16.msra.mxu0 %v3374
    %4186 = vmatprep.subr.bf16.mxu0 %v3381
    %4187 = vmatpush1.bf16.msra.mxu0 %v3380
    %4188 = vmatprep.subr.bf16.mxu0 %v3387
    %4189 = vmatpush1.bf16.msra.mxu0 %v3386
    %4190 = vmatprep.subr.bf16.mxu0 %v3393
    %4191 = vmatpush1.bf16.msra.mxu0 %v3392
    %4192 = vmatprep.subr.bf16.mxu0 %v3399
    %4193 = vmatpush1.bf16.msra.mxu0 %v3398
    %4194 = vmatprep.subr.bf16.mxu0 %v3405
    %4195 = vmatpush1.bf16.msra.mxu0 %v3404
    %4196 = vmatprep.subr.bf16.mxu0 %v3411
    %4197 = vmatpush1.bf16.msra.mxu0 %v3410
    %4198 = vmatprep.subr.bf16.mxu0 %v3417
    %4199 = vmatpush1.bf16.msra.mxu0 %v3416
    %4200 = vmatprep.subr.bf16.mxu0 %v3423
    %4201 = vmatpush1.bf16.msra.mxu0 %v3422
    %4202 = vmatprep.subr.bf16.mxu0 %v3429
    %4203 = vmatpush1.bf16.msra.mxu0 %v3428
    %4204 = vmatprep.subr.bf16.mxu0 %v3435
    %4205 = vmatpush1.bf16.msra.mxu0 %v3434
    %4206 = vmatprep.subr.bf16.mxu0 %v3441
    %4207 = vmatpush1.bf16.msra.mxu0 %v3440
    %4208 = vmatprep.subr.bf16.mxu0 %v3447
    %4209 = vmatpush1.bf16.msra.mxu0 %v3446
    %4210 = vmatprep.subr.bf16.mxu0 %v3453
    %4211 = vmatpush1.bf16.msra.mxu0 %v3452
    %4212 = vmatprep.mubr.bf16.mxu0 %v2169
    %4213 = vmatmul.mubr.bf16.gmra.mrb[0].mxu0 %v2168
    %v4214 = vpop.f32.mrb[0].mxu0
    %v4215 = vadd.f32 %v2483, %v4214
    %v4216 = vpop.f32.mrb[0].mxu0
    %v4217 = vadd.f32 %v2487, %v4216
    %v4218 = vpop.f32.mrb[0].mxu0
    %v4219 = vpop.f32.mrb[0].mxu0
    %4220 = vdwg.mxu0
    %4221 = vmatprep.subr.bf16.mxu0 %v3459
    %4222 = vmatpush1.bf16.msra.mxu0 %v3458
    %4223 = vmatprep.subr.bf16.mxu0 %v3465
    %4224 = vmatpush1.bf16.msra.mxu0 %v3464
    %4225 = vmatprep.subr.bf16.mxu0 %v3471
    %4226 = vmatpush1.bf16.msra.mxu0 %v3470
    %4227 = vmatprep.subr.bf16.mxu0 %v3477
    %4228 = vmatpush1.bf16.msra.mxu0 %v3476
    %4229 = vmatprep.subr.bf16.mxu0 %v3483
    %4230 = vmatpush1.bf16.msra.mxu0 %v3482
    %4231 = vmatprep.subr.bf16.mxu0 %v3489
    %4232 = vmatpush1.bf16.msra.mxu0 %v3488
    %4233 = vmatprep.subr.bf16.mxu0 %v3495
    %4234 = vmatpush1.bf16.msra.mxu0 %v3494
    %4235 = vmatprep.subr.bf16.mxu0 %v3501
    %4236 = vmatpush1.bf16.msra.mxu0 %v3500
    %4237 = vmatprep.subr.bf16.mxu0 %v3507
    %4238 = vmatpush1.bf16.msra.mxu0 %v3506
    %4239 = vmatprep.subr.bf16.mxu0 %v3513
    %4240 = vmatpush1.bf16.msra.mxu0 %v3512
    %4241 = vmatprep.subr.bf16.mxu0 %v3519
    %4242 = vmatpush1.bf16.msra.mxu0 %v3518
    %4243 = vmatprep.subr.bf16.mxu0 %v3525
    %4244 = vmatpush1.bf16.msra.mxu0 %v3524
    %4245 = vmatprep.subr.bf16.mxu0 %v3531
    %4246 = vmatpush1.bf16.msra.mxu0 %v3530
    %4247 = vmatprep.subr.bf16.mxu0 %v3537
    %4248 = vmatpush1.bf16.msra.mxu0 %v3536
    %4249 = vmatprep.subr.bf16.mxu0 %v3543
    %4250 = vmatpush1.bf16.msra.mxu0 %v3542
    %4251 = vmatprep.subr.bf16.mxu0 %v3549
    %4252 = vmatpush1.bf16.msra.mxu0 %v3548
    %4253 = vmatprep.mubr.bf16.mxu0 %v2171
    %4254 = vmatmul.mubr.bf16.gmra.mrb[0].mxu0 %v2170
    %v4255 = vpop.f32.mrb[0].mxu0
    %v4256 = vadd.f32 %v4215, %v4255
    %v4257 = vpop.f32.mrb[0].mxu0
    %v4258 = vadd.f32 %v4217, %v4257
    %v4259 = vpop.f32.mrb[0].mxu0
    %v4260 = vpop.f32.mrb[0].mxu0
    %4261 = vdwg.mxu0
    %4262 = vmatprep.subr.bf16.mxu0 %v3555
    %4263 = vmatpush1.bf16.msra.mxu0 %v3554
    %4264 = vmatprep.subr.bf16.mxu0 %v3561
    %4265 = vmatpush1.bf16.msra.mxu0 %v3560
    %4266 = vmatprep.subr.bf16.mxu0 %v3567
    %4267 = vmatpush1.bf16.msra.mxu0 %v3566
    %4268 = vmatprep.subr.bf16.mxu0 %v3573
    %4269 = vmatpush1.bf16.msra.mxu0 %v3572
    %4270 = vmatprep.subr.bf16.mxu0 %v3579
    %4271 = vmatpush1.bf16.msra.mxu0 %v3578
    %4272 = vmatprep.subr.bf16.mxu0 %v3585
    %4273 = vmatpush1.bf16.msra.mxu0 %v3584
    %4274 = vmatprep.subr.bf16.mxu0 %v3591
    %4275 = vmatpush1.bf16.msra.mxu0 %v3590
    %4276 = vmatprep.subr.bf16.mxu0 %v3597
    %4277 = vmatpush1.bf16.msra.mxu0 %v3596
    %4278 = vmatprep.subr.bf16.mxu0 %v3603
    %4279 = vmatpush1.bf16.msra.mxu0 %v3602
    %4280 = vmatprep.subr.bf16.mxu0 %v3609
    %4281 = vmatpush1.bf16.msra.mxu0 %v3608
    %4282 = vmatprep.subr.bf16.mxu0 %v3615
    %4283 = vmatpush1.bf16.msra.mxu0 %v3614
    %4284 = vmatprep.subr.bf16.mxu0 %v3621
    %4285 = vmatpush1.bf16.msra.mxu0 %v3620
    %4286 = vmatprep.subr.bf16.mxu0 %v3627
    %4287 = vmatpush1.bf16.msra.mxu0 %v3626
    %4288 = vmatprep.subr.bf16.mxu0 %v3633
    %4289 = vmatpush1.bf16.msra.mxu0 %v3632
    %4290 = vmatprep.subr.bf16.mxu0 %v3639
    %4291 = vmatpush1.bf16.msra.mxu0 %v3638
    %4292 = vmatprep.subr.bf16.mxu0 %v3645
    %4293 = vmatpush1.bf16.msra.mxu0 %v3644
    %4294 = vmatprep.mubr.bf16.mxu0 %v2173
    %4295 = vmatmul.mubr.bf16.gmra.mrb[0].mxu0 %v2172
    %v4296 = vpop.f32.mrb[0].mxu0
    %v4297 = vadd.f32 %v4256, %v4296
    %v4298 = vpop.f32.mrb[0].mxu0
    %v4299 = vadd.f32 %v4258, %v4298
    %v4300 = vpop.f32.mrb[0].mxu0
    %v4301 = vpop.f32.mrb[0].mxu0
    %4302 = vdwg.mxu0
    %4303 = vst [vmem:[#allocation2] sm:$0xff] %v4051
    %4304 = vst [vmem:[#allocation2 + $0x8] sm:$0xff] %v4053
    %4305 = vst [vmem:[#allocation2 + $0x10] sm:$0xff] %v4174
    %4306 = vst [vmem:[#allocation2 + $0x18] sm:$0xff] %v4176
    %4307 = vst [vmem:[#allocation2 + $0x20] sm:$0xff] %v4297
    %4308 = vst [vmem:[#allocation2 + $0x28] sm:$0xff] %v4299
    // Predicated region
    $region22: #{forward.1} parent=1 // pred_check
      _
    $region23: #{forward.1} parent=1 // pred_check_branch
      %4310 = sbr.rel (0) target = $region25
    $region24: #{forward.1} parent=1 // pred_region
      %s4312 = ssub.s32 768, 768
      %4313 = vsyncadd [#allocation3], %s4312
      %s4315 = sshll.u32 [#allocation2], 4
      %s4316 = int_to_ptr.vmem [resolvable:$true] %s4315
      %4318 = dma.vmem_to_hbm [thread:$0]  %s4316, 768, %s5, [#allocation3]
    $region25: #{forward.1} parent=1 // pred_fallthru
      _
    // Predicated region
    $region26: #{forward.1} parent=1 // pred_check
      _
    $region27: #{forward.1} parent=1 // pred_check_branch
      %4320 = sbr.rel (0) target = $region29
    $region28: #{forward.1} parent=1 // pred_region
      %4321 = dma.done [#allocation3], 768
    $region29: #{forward.1} parent=1 // pred_fallthru
      _
    %4322 = vsyncpa [#allocation3], 1

</llo_original>
